<compile_context>
chip_gen: v5e
topology: v5e:2x2
jax: 0.10.0
libtpu: 0.0.40
codegen_flags: <defaults>
</compile_context>

<pallas_src>
import jax
import jax.numpy as jnp
import numpy as np
from jax.experimental import pallas as pl
from jax.experimental.pallas import tpu as pltpu


_VMEM_LIMIT = 32 * 1024 * 1024  # explicit so v5e's 16 MiB scoped default never bites

# ----- static shape constants implied by the module (fc1 expects 100*8*8) -------------
_H, _W = 32, 32
_WP1 = _W + 2                        # 34  : padded row width, layer 1
_L1 = _H * _WP1                      # 1088: flat conv1-output length (incl. junk cols)
_FLAT1 = (_H + 2) * _WP1 + 2         # 1158: padded flat input incl. worst tap overshoot
_M1 = _L1 - _WP1 - 1                 # 1053: valid 2x2 pool-window top-left positions

_H2, _W2 = _H // 2, _W // 2          # 16
_WP2 = _W2 + 2                       # 18
_L2 = _H2 * _WP2                     # 288
_FLAT2 = 384                         # >= 2*_WP2 + 2 + _L2 = 326, padded for tap overshoot
_M2 = _L2 - _WP2 - 1                 # 269

_C1 = 8                              # conv1 Cout padded 6 -> 8 (keeps concat tile-aligned)
_C2 = 100
_POOL2_N = (_H2 // 2) * (_W2 // 2)   # 64 pooled positions after layer 2


# ---------------------------------------------------------------------------
# Static 0/1 pool-selection matrices (built once, passed as bf16 constants)
# ---------------------------------------------------------------------------
def _pool_selector(h, w, n_cols, col_of):
    """S[p, q] = 1 where p = 2i*(w+2)+2j is the flat top-left index of pool window
    (i, j) and q = col_of(i, j).  Shape ((h*(w+2)) - (w+2) - 1, n_cols)."""
    wp = w + 2
    s = np.zeros((h * wp - wp - 1, n_cols), np.float32)
    for i in range(h // 2):
        for j in range(w // 2):
            s[2 * i * wp + 2 * j, col_of(i, j)] = 1.0
    return s


# ---------------------------------------------------------------------------
# Kernel 1: conv1 + bias + ReLU + pool + conv2 + bias + ReLU + pool  (one image / step)
# ---------------------------------------------------------------------------
def _pool2x2_max(acc, wp):
    """m[p] = max(acc[p], acc[p+1], acc[p+wp], acc[p+wp+1]) via shifted static slices
    and jnp.maximum only (no iota, no selection matmuls)."""
    n = acc.shape[-1] - wp - 1
    top = jnp.maximum(acc[:, 0:n], acc[:, 1:n + 1])
    bot = jnp.maximum(acc[:, wp:wp + n], acc[:, wp + 1:wp + 1 + n])
    return jnp.maximum(top, bot)


def _conv_tower_kernel(xk_ref, w1_ref, b1_ref, s1_ref, w2_ref, b2_ref, s2_ref, o_ref):
    # conv1 (3x3, pad=1): single (8, 27) x (27, 1088) MXU matmul over pre-stacked taps.
    acc1 = jnp.dot(w1_ref[...], xk_ref[...], preferred_element_type=jnp.float32)
    acc1 = jnp.maximum(acc1 + b1_ref[...], 0.0)                       # bias + ReLU (f32)
    m1 = _pool2x2_max(acc1, _WP1)                                     # (8, 1053)

    # Pool-select + zero-pad re-layout into conv2's flat padded input: ONE matmul
    # against the precomputed 0/1 matrix (exact: one bf16 value per output column).
    x2 = jnp.dot(m1.astype(jnp.bfloat16), s1_ref[...],
                 preferred_element_type=jnp.float32)                  # (8, 384)

    # conv2 (3x3, pad=1): stack the 9 shifted taps (each 8 sublane rows -> tile-aligned
    # concat) and do a single K=72 MXU matmul.
    taps = [x2[:, kh * _WP2 + kw: kh * _WP2 + kw + _L2]
            for kh in range(3) for kw in range(3)]
    xk2 = jnp.concatenate(taps, axis=0).astype(jnp.bfloat16)          # (72, 288)
    acc2 = jnp.dot(w2_ref[...], xk2, preferred_element_type=jnp.float32)
    acc2 = jnp.maximum(acc2 + b2_ref[...], 0.0)                       # (100, 288)
    m2 = _pool2x2_max(acc2, _WP2)                                     # (100, 269)
    pooled = jnp.dot(m2.astype(jnp.bfloat16), s2_ref[...],
                     preferred_element_type=jnp.float32)              # (100, 64)
    o_ref[...] = pooled.astype(o_ref.dtype)


def conv_tower(xk, p):
    b = xk.shape[0]
    return pl.pallas_call(
        _conv_tower_kernel,
        grid=(b,),
        in_specs=[
            pl.BlockSpec((None, 27, _L1), lambda i: (i, 0, 0)),       # stacked conv1 taps
            pl.BlockSpec((_C1, 27), lambda i: (0, 0)),                # conv1 w (resident)
            pl.BlockSpec((_C1, 1), lambda i: (0, 0)),
            pl.BlockSpec((_M1, _FLAT2), lambda i: (0, 0)),            # pool1 selector
            pl.BlockSpec((_C2, 9 * _C1), lambda i: (0, 0)),           # conv2 w (resident)
            pl.BlockSpec((_C2, 1), lambda i: (0, 0)),
            pl.BlockSpec((_M2, _POOL2_N), lambda i: (0, 0)),          # pool2 selector
        ],
        out_specs=pl.BlockSpec((None, _C2, _POOL2_N), lambda i: (i, 0, 0)),
        out_shape=jax.ShapeDtypeStruct((b, _C2, _POOL2_N), jnp.bfloat16),
        compiler_params=pltpu.CompilerParams(
            dimension_semantics=("parallel",),   # B>=2 feeds both v7x TensorCores
            vmem_limit_bytes=_VMEM_LIMIT,
        ),
    )(xk, p["conv1_w"], p["conv1_b"], p["s1"], p["conv2_w"], p["conv2_b"], p["s2"])


# ---------------------------------------------------------------------------
# Kernel 2: fc1 + ReLU + fc2 + ReLU + fc3 fused, all weights VMEM-resident
# ---------------------------------------------------------------------------
def _mlp_head_kernel(x_ref, w1_ref, b1_ref, w2_ref, b2_ref, w3_ref, b3_ref, o_ref):
    h = jnp.dot(x_ref[...].astype(jnp.bfloat16), w1_ref[...],
                preferred_element_type=jnp.float32) + b1_ref[...]
    h = jnp.maximum(h, 0.0)
    h = jnp.dot(h.astype(jnp.bfloat16), w2_ref[...],
                preferred_element_type=jnp.float32) + b2_ref[...]
    h = jnp.maximum(h, 0.0)
    o_ref[...] = jnp.dot(h.astype(jnp.bfloat16), w3_ref[...],
                         preferred_element_type=jnp.float32) + b3_ref[...]


def mlp_head(feats, p):
    b = feats.shape[0]
    return pl.pallas_call(
        _mlp_head_kernel,
        out_shape=jax.ShapeDtypeStruct((b, 10), jnp.float32),
        compiler_params=pltpu.CompilerParams(vmem_limit_bytes=_VMEM_LIMIT),
    )(feats, p["fc1_w"], p["fc1_b"], p["fc2_w"], p["fc2_b"], p["fc3_w"], p["fc3_b"])


# ---------------------------------------------------------------------------
# Parameters (PyTorch layout) + one-time repack into kernel layout
# ---------------------------------------------------------------------------
def init_params(key):
    ks = jax.random.split(key, 10)

    def u(k, shape, fan_in):
        bound = 1.0 / jnp.sqrt(fan_in)
        return jax.random.uniform(k, shape, jnp.float32, -bound, bound)

    return {
        "conv1_w": u(ks[0], (6, 3, 3, 3), 3 * 9),
        "conv1_b": u(ks[1], (6,), 3 * 9),
        "conv2_w": u(ks[2], (100, 6, 3, 3), 6 * 9),
        "conv2_b": u(ks[3], (100,), 6 * 9),
        "fc1_w": u(ks[4], (120, 100 * 8 * 8), 100 * 8 * 8),
        "fc1_b": u(ks[5], (120,), 100 * 8 * 8),
        "fc2_w": u(ks[6], (84, 120), 120),
        "fc2_b": u(ks[7], (84,), 120),
        "fc3_w": u(ks[8], (10, 84), 84),
        "fc3_b": u(ks[9], (10,), 84),
    }


def pack_params(p):
    """One-time repack (outside the forward): conv weights -> (Cout, 9*Cin) with K order
    (kh*3+kw)*Cin + cin (conv1 Cout and conv2 Cin zero-padded to 8); fc weights
    pre-transposed; matmul operands stored bf16, biases f32 2-D; static pool selectors."""
    w1 = jnp.transpose(p["conv1_w"], (0, 2, 3, 1)).reshape(6, 27)
    w1 = jnp.pad(w1, ((0, _C1 - 6), (0, 0)))
    b1 = jnp.pad(p["conv1_b"], (0, _C1 - 6)).reshape(_C1, 1)
    w2 = jnp.transpose(p["conv2_w"], (0, 2, 3, 1))                       # (100, 3, 3, 6)
    w2 = jnp.pad(w2, ((0, 0), (0, 0), (0, 0), (0, _C1 - 6))).reshape(_C2, 9 * _C1)
    s1 = _pool_selector(_H, _W, _FLAT2, lambda i, j: (i + 1) * _WP2 + (j + 1))
    s2 = _pool_selector(_H2, _W2, _POOL2_N, lambda i, j: i * (_W2 // 2) + j)
    return {
        "conv1_w": w1.astype(jnp.bfloat16),
        "conv1_b": b1.astype(jnp.float32),
        "conv2_w": w2.astype(jnp.bfloat16),
        "conv2_b": p["conv2_b"].reshape(_C2, 1).astype(jnp.float32),
        "s1": jnp.asarray(s1, jnp.bfloat16),
        "s2": jnp.asarray(s2, jnp.bfloat16),
        "fc1_w": p["fc1_w"].T.astype(jnp.bfloat16),
        "fc1_b": p["fc1_b"].reshape(1, -1).astype(jnp.float32),
        "fc2_w": p["fc2_w"].T.astype(jnp.bfloat16),
        "fc2_b": p["fc2_b"].reshape(1, -1).astype(jnp.float32),
        "fc3_w": p["fc3_w"].T.astype(jnp.bfloat16),
        "fc3_b": p["fc3_b"].reshape(1, -1).astype(jnp.float32),
    }


def _stack_conv1_taps(x):
    """XLA-side prep: zero-pad by 1, flatten rows, stack the 9 shifted tap views along a
    new K axis so conv1 is one (8,27)x(27,1088) matmul in-kernel (~60 KB/image bf16)."""
    b = x.shape[0]
    xp = jnp.pad(x, ((0, 0), (0, 0), (1, 1), (1, 1)))                    # (B, 3, 34, 34)
    xf = xp.reshape(b, 3, (_H + 2) * _WP1)
    xf = jnp.pad(xf, ((0, 0), (0, 0), (0, _FLAT1 - (_H + 2) * _WP1)))
    taps = [xf[:, :, kh * _WP1 + kw: kh * _WP1 + kw + _L1]
            for kh in range(3) for kw in range(3)]
    return jnp.concatenate(taps, axis=1).astype(jnp.bfloat16)            # (B, 27, 1088)


# ---------------------------------------------------------------------------
# Forward pass (LipschitzConvModel.forward == ConvModel.forward)
# ---------------------------------------------------------------------------
def lipschitz_conv_model_forward(packed, x):
    b = x.shape[0]
    xk = _stack_conv1_taps(x)
    feats = conv_tower(xk, packed)                       # (B, 100, 64) bf16
    feats = feats.reshape(b, _C2 * _POOL2_N)             # == torch .view(-1, 100*8*8)
    return mlp_head(feats, packed)                       # (B, 10) f32


# ---------------------------------------------------------------------------
# Pure-JAX reference (f32) for a correctness check
# ---------------------------------------------------------------------------
def _reference_forward(p, x):
    dn = ("NCHW", "OIHW", "NCHW")
    y = jax.lax.conv_general_dilated(x, p["conv1_w"], (1, 1), [(1, 1), (1, 1)],
                                     dimension_numbers=dn)
    y = jax.nn.relu(y + p["conv1_b"].reshape(1, -1, 1, 1))
    y = jax.lax.reduce_window(y, -jnp.inf, jax.lax.max, (1, 1, 2, 2), (1, 1, 2, 2), "VALID")
    y = jax.lax.conv_general_dilated(y, p["conv2_w"], (1, 1), [(1, 1), (1, 1)],
                                     dimension_numbers=dn)
    y = jax.nn.relu(y + p["conv2_b"].reshape(1, -1, 1, 1))
    y = jax.lax.reduce_window(y, -jnp.inf, jax.lax.max, (1, 1, 2, 2), (1, 1, 2, 2), "VALID")
    y = y.reshape(x.shape[0], -1)
    y = jax.nn.relu(y @ p["fc1_w"].T + p["fc1_b"])
    y = jax.nn.relu(y @ p["fc2_w"].T + p["fc2_b"])
    return y @ p["fc3_w"].T + p["fc3_b"]


if __name__ == "__main__":
    key = jax.random.PRNGKey(0)
    pkey, xkey = jax.random.split(key)
    raw = init_params(pkey)
    packed = pack_params(raw)
    # Spatial size 32 is implied by fc1's 100*8*8 input after two 2x pools.
    x = jax.random.normal(xkey, (2, 3, _H, _W), dtype=jnp.float32)

    fwd = jax.jit(lipschitz_conv_model_forward)
    out = jax.block_until_ready(fwd(packed, x))
    assert out.shape == (2, 10), out.shape

    ref = jax.block_until_ready(jax.jit(_reference_forward)(raw, x))
    # bf16 MXU operands / f32 accumulation -> small deviation from the f32 reference.
    np.testing.assert_allclose(np.asarray(out), np.asarray(ref), atol=5e-2, rtol=5e-2)
    print("KERNEL_OK")
</pallas_src>

<mosaic_0001>
module attributes {stable_mosaic.version = 11 : i64} {
  func.func @_conv_tower_kernel(%arg0: i32, %arg1: memref<1x27x1088xbf16, #tpu.memory_space<vmem>>, %arg2: memref<8x27xbf16, #tpu.memory_space<vmem>>, %arg3: memref<8x1xf32, #tpu.memory_space<vmem>>, %arg4: memref<1053x384xbf16, #tpu.memory_space<vmem>>, %arg5: memref<100x72xbf16, #tpu.memory_space<vmem>>, %arg6: memref<100x1xf32, #tpu.memory_space<vmem>>, %arg7: memref<269x64xbf16, #tpu.memory_space<vmem>>, %arg8: memref<1x100x64xbf16, #tpu.memory_space<vmem>>) attributes {dimension_semantics = [#tpu.dimension_semantics<parallel>], iteration_bounds = array<i64: 2>, scalar_prefetch = 0 : i64, scratch_operands = 0 : i64, tpu.core_type = #tpu.core_type<tc>, window_params = [{transform_indices = @transform_0, window_bounds = array<i64: 1, 27, 1088>}, {pipeline_mode = #tpu.pipeline_mode<synchronous>, transform_indices = @transform_1, window_bounds = array<i64: 8, 27>}, {pipeline_mode = #tpu.pipeline_mode<synchronous>, transform_indices = @transform_2, window_bounds = array<i64: 8, 1>}, {pipeline_mode = #tpu.pipeline_mode<synchronous>, transform_indices = @transform_3, window_bounds = array<i64: 1053, 384>}, {pipeline_mode = #tpu.pipeline_mode<synchronous>, transform_indices = @transform_4, window_bounds = array<i64: 100, 72>}, {pipeline_mode = #tpu.pipeline_mode<synchronous>, transform_indices = @transform_5, window_bounds = array<i64: 100, 1>}, {pipeline_mode = #tpu.pipeline_mode<synchronous>, transform_indices = @transform_6, window_bounds = array<i64: 269, 64>}, {transform_indices = @transform_7, window_bounds = array<i64: 1, 100, 64>}]} {
    %c0 = arith.constant 0 : index
    %c0_0 = arith.constant 0 : index
    %0 = vector.load %arg2[%c0, %c0_0] : memref<8x27xbf16, #tpu.memory_space<vmem>>, vector<8x27xbf16>
    %c0_1 = arith.constant 0 : index
    %c0_2 = arith.constant 0 : index
    %c0_3 = arith.constant 0 : index
    %1 = vector.load %arg1[%c0_1, %c0_2, %c0_3] : memref<1x27x1088xbf16, #tpu.memory_space<vmem>>, vector<1x27x1088xbf16>
    %2 = vector.shape_cast %1 : vector<1x27x1088xbf16> to vector<27x1088xbf16>
    %cst = arith.constant dense<0.000000e+00> : vector<8x1088xf32>
    %3 = tpu.matmul %0, %2, %cst {dimension_numbers = #tpu.dot_dimension_numbers<[1], [0], [0], [1], [0, 0, 1, 1], [], []>} : vector<8x27xbf16>, vector<27x1088xbf16>, vector<8x1088xf32> -> vector<8x1088xf32>
    %c0_4 = arith.constant 0 : index
    %c0_5 = arith.constant 0 : index
    %4 = vector.load %arg3[%c0_4, %c0_5] : memref<8x1xf32, #tpu.memory_space<vmem>>, vector<8x1xf32>
    %5 = vector.broadcast %4 : vector<8x1xf32> to vector<8x1088xf32>
    %6 = arith.addf %3, %5 : vector<8x1088xf32>
    %cst_6 = arith.constant 0.000000e+00 : f32
    %7 = vector.broadcast %cst_6 : f32 to vector<8x1088xf32>
    %8 = arith.maximumf %6, %7 : vector<8x1088xf32>
    %9 = vector.extract_strided_slice %8 {offsets = [0, 0], sizes = [8, 1053], strides = [1, 1]} : vector<8x1088xf32> to vector<8x1053xf32>
    %10 = vector.extract_strided_slice %8 {offsets = [0, 1], sizes = [8, 1053], strides = [1, 1]} : vector<8x1088xf32> to vector<8x1053xf32>
    %11 = arith.maximumf %9, %10 : vector<8x1053xf32>
    %12 = vector.extract_strided_slice %8 {offsets = [0, 34], sizes = [8, 1053], strides = [1, 1]} : vector<8x1088xf32> to vector<8x1053xf32>
    %13 = vector.extract_strided_slice %8 {offsets = [0, 35], sizes = [8, 1053], strides = [1, 1]} : vector<8x1088xf32> to vector<8x1053xf32>
    %14 = arith.maximumf %12, %13 : vector<8x1053xf32>
    %15 = arith.maximumf %11, %14 : vector<8x1053xf32>
    %16 = arith.truncf %15 : vector<8x1053xf32> to vector<8x1053xbf16>
    %c0_7 = arith.constant 0 : index
    %c0_8 = arith.constant 0 : index
    %17 = vector.load %arg4[%c0_7, %c0_8] : memref<1053x384xbf16, #tpu.memory_space<vmem>>, vector<1053x384xbf16>
    %cst_9 = arith.constant dense<0.000000e+00> : vector<8x384xf32>
    %18 = tpu.matmul %16, %17, %cst_9 {dimension_numbers = #tpu.dot_dimension_numbers<[1], [0], [0], [1], [0, 0, 1, 1], [], []>} : vector<8x1053xbf16>, vector<1053x384xbf16>, vector<8x384xf32> -> vector<8x384xf32>
    %19 = vector.extract_strided_slice %18 {offsets = [0, 0], sizes = [8, 288], strides = [1, 1]} : vector<8x384xf32> to vector<8x288xf32>
    %20 = vector.extract_strided_slice %18 {offsets = [0, 1], sizes = [8, 288], strides = [1, 1]} : vector<8x384xf32> to vector<8x288xf32>
    %21 = vector.extract_strided_slice %18 {offsets = [0, 2], sizes = [8, 288], strides = [1, 1]} : vector<8x384xf32> to vector<8x288xf32>
    %22 = vector.extract_strided_slice %18 {offsets = [0, 18], sizes = [8, 288], strides = [1, 1]} : vector<8x384xf32> to vector<8x288xf32>
    %23 = vector.extract_strided_slice %18 {offsets = [0, 19], sizes = [8, 288], strides = [1, 1]} : vector<8x384xf32> to vector<8x288xf32>
    %24 = vector.extract_strided_slice %18 {offsets = [0, 20], sizes = [8, 288], strides = [1, 1]} : vector<8x384xf32> to vector<8x288xf32>
    %25 = vector.extract_strided_slice %18 {offsets = [0, 36], sizes = [8, 288], strides = [1, 1]} : vector<8x384xf32> to vector<8x288xf32>
    %26 = vector.extract_strided_slice %18 {offsets = [0, 37], sizes = [8, 288], strides = [1, 1]} : vector<8x384xf32> to vector<8x288xf32>
    %27 = vector.extract_strided_slice %18 {offsets = [0, 38], sizes = [8, 288], strides = [1, 1]} : vector<8x384xf32> to vector<8x288xf32>
    %28 = tpu.concatenate %19, %20, %21, %22, %23, %24, %25, %26, %27 in 0 : vector<8x288xf32>, vector<8x288xf32>, vector<8x288xf32>, vector<8x288xf32>, vector<8x288xf32>, vector<8x288xf32>, vector<8x288xf32>, vector<8x288xf32>, vector<8x288xf32> -> vector<72x288xf32>
    %29 = arith.truncf %28 : vector<72x288xf32> to vector<72x288xbf16>
    %c0_10 = arith.constant 0 : index
    %c0_11 = arith.constant 0 : index
    %30 = vector.load %arg5[%c0_10, %c0_11] : memref<100x72xbf16, #tpu.memory_space<vmem>>, vector<100x72xbf16>
    %cst_12 = arith.constant dense<0.000000e+00> : vector<100x288xf32>
    %31 = tpu.matmul %30, %29, %cst_12 {dimension_numbers = #tpu.dot_dimension_numbers<[1], [0], [0], [1], [0, 0, 1, 1], [], []>} : vector<100x72xbf16>, vector<72x288xbf16>, vector<100x288xf32> -> vector<100x288xf32>
    %c0_13 = arith.constant 0 : index
    %c0_14 = arith.constant 0 : index
    %32 = vector.load %arg6[%c0_13, %c0_14] : memref<100x1xf32, #tpu.memory_space<vmem>>, vector<100x1xf32>
    %33 = vector.broadcast %32 : vector<100x1xf32> to vector<100x288xf32>
    %34 = arith.addf %31, %33 : vector<100x288xf32>
    %cst_15 = arith.constant 0.000000e+00 : f32
    %35 = vector.broadcast %cst_15 : f32 to vector<100x288xf32>
    %36 = arith.maximumf %34, %35 : vector<100x288xf32>
    %37 = vector.extract_strided_slice %36 {offsets = [0, 0], sizes = [100, 269], strides = [1, 1]} : vector<100x288xf32> to vector<100x269xf32>
    %38 = vector.extract_strided_slice %36 {offsets = [0, 1], sizes = [100, 269], strides = [1, 1]} : vector<100x288xf32> to vector<100x269xf32>
    %39 = arith.maximumf %37, %38 : vector<100x269xf32>
    %40 = vector.extract_strided_slice %36 {offsets = [0, 18], sizes = [100, 269], strides = [1, 1]} : vector<100x288xf32> to vector<100x269xf32>
    %41 = vector.extract_strided_slice %36 {offsets = [0, 19], sizes = [100, 269], strides = [1, 1]} : vector<100x288xf32> to vector<100x269xf32>
    %42 = arith.maximumf %40, %41 : vector<100x269xf32>
    %43 = arith.maximumf %39, %42 : vector<100x269xf32>
    %44 = arith.truncf %43 : vector<100x269xf32> to vector<100x269xbf16>
    %c0_16 = arith.constant 0 : index
    %c0_17 = arith.constant 0 : index
    %45 = vector.load %arg7[%c0_16, %c0_17] : memref<269x64xbf16, #tpu.memory_space<vmem>>, vector<269x64xbf16>
    %cst_18 = arith.constant dense<0.000000e+00> : vector<100x64xf32>
    %46 = tpu.matmul %44, %45, %cst_18 {dimension_numbers = #tpu.dot_dimension_numbers<[1], [0], [0], [1], [0, 0, 1, 1], [], []>} : vector<100x269xbf16>, vector<269x64xbf16>, vector<100x64xf32> -> vector<100x64xf32>
    %47 = arith.truncf %46 : vector<100x64xf32> to vector<100x64xbf16>
    %c0_19 = arith.constant 0 : index
    %c0_20 = arith.constant 0 : index
    %c0_21 = arith.constant 0 : index
    %48 = vector.load %arg8[%c0_19, %c0_20, %c0_21] : memref<1x100x64xbf16, #tpu.memory_space<vmem>>, vector<1x100x64xbf16>
    %49 = vector.shape_cast %48 : vector<1x100x64xbf16> to vector<100x64xbf16>
    %50 = vector.shape_cast %47 : vector<100x64xbf16> to vector<1x100x64xbf16>
    tpu.vector_store %arg8[%c0_19, %c0_20, %c0_21], %50 {strides = array<i32>} : memref<1x100x64xbf16, #tpu.memory_space<vmem>>, vector<1x100x64xbf16>,
    return
  }
  func.func @transform_0(%arg0: i32) -> (i32, i32, i32) {
    %c0_i32 = arith.constant 0 : i32
    %c0_i32_0 = arith.constant 0 : i32
    %c0_i32_1 = arith.constant 0 : i32
    return %arg0, %c0_i32, %c0_i32_0 : i32, i32, i32
  }
  func.func @transform_1(%arg0: i32) -> (i32, i32) {
    %c0_i32 = arith.constant 0 : i32
    %c0_i32_0 = arith.constant 0 : i32
    %c0_i32_1 = arith.constant 0 : i32
    return %c0_i32, %c0_i32_0 : i32, i32
  }
  func.func @transform_2(%arg0: i32) -> (i32, i32) {
    %c0_i32 = arith.constant 0 : i32
    %c0_i32_0 = arith.constant 0 : i32
    %c0_i32_1 = arith.constant 0 : i32
    return %c0_i32, %c0_i32_0 : i32, i32
  }
  func.func @transform_3(%arg0: i32) -> (i32, i32) {
    %c0_i32 = arith.constant 0 : i32
    %c0_i32_0 = arith.constant 0 : i32
    %c0_i32_1 = arith.constant 0 : i32
    return %c0_i32, %c0_i32_0 : i32, i32
  }
  func.func @transform_4(%arg0: i32) -> (i32, i32) {
    %c0_i32 = arith.constant 0 : i32
    %c0_i32_0 = arith.constant 0 : i32
    %c0_i32_1 = arith.constant 0 : i32
    return %c0_i32, %c0_i32_0 : i32, i32
  }
  func.func @transform_5(%arg0: i32) -> (i32, i32) {
    %c0_i32 = arith.constant 0 : i32
    %c0_i32_0 = arith.constant 0 : i32
    %c0_i32_1 = arith.constant 0 : i32
    return %c0_i32, %c0_i32_0 : i32, i32
  }
  func.func @transform_6(%arg0: i32) -> (i32, i32) {
    %c0_i32 = arith.constant 0 : i32
    %c0_i32_0 = arith.constant 0 : i32
    %c0_i32_1 = arith.constant 0 : i32
    return %c0_i32, %c0_i32_0 : i32, i32
  }
  func.func @transform_7(%arg0: i32) -> (i32, i32, i32) {
    %c0_i32 = arith.constant 0 : i32
    %c0_i32_0 = arith.constant 0 : i32
    %c0_i32_1 = arith.constant 0 : i32
    return %arg0, %c0_i32, %c0_i32_0 : i32, i32, i32
  }
}

module attributes {stable_mosaic.version = 11 : i64} {
  func.func @_mlp_head_kernel(%arg0: memref<2x6400xbf16, #tpu.memory_space<vmem>>, %arg1: memref<6400x120xbf16, #tpu.memory_space<vmem>>, %arg2: memref<1x120xf32, #tpu.memory_space<vmem>>, %arg3: memref<120x84xbf16, #tpu.memory_space<vmem>>, %arg4: memref<1x84xf32, #tpu.memory_space<vmem>>, %arg5: memref<84x10xbf16, #tpu.memory_space<vmem>>, %arg6: memref<1x10xf32, #tpu.memory_space<vmem>>, %arg7: memref<2x10xf32, #tpu.memory_space<vmem>>) attributes {dimension_semantics = [], scalar_prefetch = 0 : i64, scratch_operands = 0 : i64, tpu.core_type = #tpu.core_type<tc>} {
    %c0 = arith.constant 0 : index
    %c0_0 = arith.constant 0 : index
    %0 = vector.load %arg0[%c0, %c0_0] : memref<2x6400xbf16, #tpu.memory_space<vmem>>, vector<2x6400xbf16>
    %c0_1 = arith.constant 0 : index
    %c0_2 = arith.constant 0 : index
    %1 = vector.load %arg1[%c0_1, %c0_2] : memref<6400x120xbf16, #tpu.memory_space<vmem>>, vector<6400x120xbf16>
    %cst = arith.constant dense<0.000000e+00> : vector<2x120xf32>
    %2 = tpu.matmul %0, %1, %cst {dimension_numbers = #tpu.dot_dimension_numbers<[1], [0], [0], [1], [0, 0, 1, 1], [], []>} : vector<2x6400xbf16>, vector<6400x120xbf16>, vector<2x120xf32> -> vector<2x120xf32>
    %c0_3 = arith.constant 0 : index
    %c0_4 = arith.constant 0 : index
    %3 = vector.load %arg2[%c0_3, %c0_4] : memref<1x120xf32, #tpu.memory_space<vmem>>, vector<1x120xf32>
    %4 = vector.broadcast %3 : vector<1x120xf32> to vector<2x120xf32>
    %5 = arith.addf %2, %4 : vector<2x120xf32>
    %cst_5 = arith.constant 0.000000e+00 : f32
    %6 = vector.broadcast %cst_5 : f32 to vector<2x120xf32>
    %7 = arith.maximumf %5, %6 : vector<2x120xf32>
    %8 = arith.truncf %7 : vector<2x120xf32> to vector<2x120xbf16>
    %c0_6 = arith.constant 0 : index
    %c0_7 = arith.constant 0 : index
    %9 = vector.load %arg3[%c0_6, %c0_7] : memref<120x84xbf16, #tpu.memory_space<vmem>>, vector<120x84xbf16>
    %cst_8 = arith.constant dense<0.000000e+00> : vector<2x84xf32>
    %10 = tpu.matmul %8, %9, %cst_8 {dimension_numbers = #tpu.dot_dimension_numbers<[1], [0], [0], [1], [0, 0, 1, 1], [], []>} : vector<2x120xbf16>, vector<120x84xbf16>, vector<2x84xf32> -> vector<2x84xf32>
    %c0_9 = arith.constant 0 : index
    %c0_10 = arith.constant 0 : index
    %11 = vector.load %arg4[%c0_9, %c0_10] : memref<1x84xf32, #tpu.memory_space<vmem>>, vector<1x84xf32>
    %12 = vector.broadcast %11 : vector<1x84xf32> to vector<2x84xf32>
    %13 = arith.addf %10, %12 : vector<2x84xf32>
    %cst_11 = arith.constant 0.000000e+00 : f32
    %14 = vector.broadcast %cst_11 : f32 to vector<2x84xf32>
    %15 = arith.maximumf %13, %14 : vector<2x84xf32>
    %16 = arith.truncf %15 : vector<2x84xf32> to vector<2x84xbf16>
    %c0_12 = arith.constant 0 : index
    %c0_13 = arith.constant 0 : index
    %17 = vector.load %arg5[%c0_12, %c0_13] : memref<84x10xbf16, #tpu.memory_space<vmem>>, vector<84x10xbf16>
    %cst_14 = arith.constant dense<0.000000e+00> : vector<2x10xf32>
    %18 = tpu.matmul %16, %17, %cst_14 {dimension_numbers = #tpu.dot_dimension_numbers<[1], [0], [0], [1], [0, 0, 1, 1], [], []>} : vector<2x84xbf16>, vector<84x10xbf16>, vector<2x10xf32> -> vector<2x10xf32>
    %c0_15 = arith.constant 0 : index
    %c0_16 = arith.constant 0 : index
    %19 = vector.load %arg6[%c0_15, %c0_16] : memref<1x10xf32, #tpu.memory_space<vmem>>, vector<1x10xf32>
    %20 = vector.broadcast %19 : vector<1x10xf32> to vector<2x10xf32>
    %21 = arith.addf %18, %20 : vector<2x10xf32>
    %c0_17 = arith.constant 0 : index
    %c0_18 = arith.constant 0 : index
    %22 = vector.load %arg7[%c0_17, %c0_18] : memref<2x10xf32, #tpu.memory_space<vmem>>, vector<2x10xf32>
    tpu.vector_store %arg7[%c0_17, %c0_18], %21 {strides = array<i32>} : memref<2x10xf32, #tpu.memory_space<vmem>>, vector<2x10xf32>,
    return
  }
}

</mosaic_0001>

<llo_original>
// kernel: lipschitz_conv_model_forward.2
$region0: #{lipschitz_conv_model_forward.2}
  #allocation0 [shape = 'u32[]', space=smem, size = 0x4, offset = 0x4, fixed_abs, tag = 'smem constant byte address 0x4 - core index']
  #allocation1 [shape = 'u32[72,128]{1,0:T(1,128)}', space=vmem, size = 0x9000, scoped, tag = 'internal scratch']
  %s0 = inlined_call_operand.vmem [shape: bf16[2,27,1088], index: 0, kind: input, shape index: {}]
  %s1 = inlined_call_operand.hbm [shape: bf16[8,27], index: 1, kind: input, shape index: {}]
  %s2 = inlined_call_operand.vmem [shape: f32[8,1], index: 2, kind: input, shape index: {}]
  %s3 = inlined_call_operand.hbm [shape: bf16[1053,384], index: 3, kind: input, shape index: {}]
  %s4 = inlined_call_operand.vmem [shape: bf16[100,72], index: 4, kind: input, shape index: {}]
  %s5 = inlined_call_operand.vmem [shape: f32[100,1], index: 5, kind: input, shape index: {}]
  %s6 = inlined_call_operand.vmem [shape: bf16[269,64], index: 6, kind: input, shape index: {}]
  %s7 = inlined_call_operand.vmem [shape: bf16[2,100,64], index: 7, kind: output, shape index: {}]
  %s8 = sld [smem:[#allocation0]]
  $region69: #{lipschitz_conv_model_forward.2} parent=0
    _
  %s10 = ssub.s32 1, %s8
  %s11 = scalar_select 0, %s10, %s8
  $region1: #{lipschitz_conv_model_forward.2} parent=0
    #allocation2 [shape = 'u8[2048]{0}', space=vmem, size = 0x800, scoped, tag = 'input window, operand 1, single buffered']
    #allocation3 [shape = 's32[2]{0}', space=sflag, size = 0x8, scoped, tag = 'scoped memory for lipschitz_conv_model_forward.2']
    #allocation4 [shape = 'u8[811008]{0}', space=vmem, size = 0xc6000, scoped, tag = 'input window, operand 3, single buffered']
    #allocation5 [shape = 's32[1]{0}', space=sflag, size = 0x4, scoped, tag = 'scoped memory for lipschitz_conv_model_forward.2']
    %12 = vsyncpa [#allocation3], 0
    %13 = vsyncpa [#allocation5], 0
    loop: start=0, step=1, limit=4
    $region2: #{lipschitz_conv_model_forward.2} parent=1 // loop_pre_header
      _
    $region3: #{lipschitz_conv_model_forward.2} parent=1 // loop_header
      %s15 = sphi 0, %s19
      %p16 = scmp.ge.s32.totalorder %s15, 4
      %s25 = sphi 0, %s27
      %s28 = sphi 0, %s25
      %s29 = sphi 0, %s28
      %s45 = sphi 0, %s29
      %s49 = sphi 0, %s49
      %s51 = sphi 0, %s49
      %s52 = sphi 0, %s51
      %s66 = sphi 0, %s52
      %s70 = sphi 0, %s70
      %s72 = sphi 0, %s70
      %s73 = sphi 0, %s72
      %s87 = sphi 0, %s73
      %s91 = sphi 0, %s91
      %s93 = sphi 0, %s91
      %s94 = sphi 0, %s93
      %s108 = sphi 0, %s94
      %s112 = sphi 0, %s112
      %s114 = sphi 0, %s112
      %s115 = sphi 0, %s114
      %s129 = sphi 0, %s115
      %s133 = sphi 0, %s133
      %s135 = sphi 0, %s133
      %s136 = sphi 0, %s135
      %s150 = sphi 0, %s136
      %s154 = sphi 0, %s154
      %s156 = sphi 0, %s154
      %s157 = sphi 0, %s156
      %s171 = sphi 0, %s157
      %s177 = sphi 0, %s179
      %s180 = sphi 0, %s177
      %s181 = sphi 0, %s180
      %s197 = sphi 0, %s181
    $region4: #{lipschitz_conv_model_forward.2} parent=1 // loop_header_branch
      %18 = sbr.rel (%p16) target = $region8
    $region5: #{lipschitz_conv_model_forward.2} parent=1 // loop_body
      %s20 = ssub.s32 %s15, 1
      %s21 = ssub.s32 %s15, 2
      %s22 = sadd.s32 %s15, 1
      %s23 = ssub.s32 %s15, %s22
      %p24 = scmp.eq.s32.totalorder %s23, 0
      %s26 = sadd.s32 %s25, 1
      %s27 = scalar_select %p24, %s25, %s26
      %p30 = pneg %p24
      %p31 = scmp.eq.s32.totalorder %s15, 1
      %p32 = por %p30, %p31
      %p33 = scmp.ne.s32.totalorder %s25, %s28
      %p34 = scmp.eq.s32.totalorder %s15, 0
      %p35 = por %p33, %p34
      %p36 = scmp.ne.s32.totalorder %s25, %s28
      %p37 = scmp.eq.s32.totalorder %s20, 1
      %p38 = por %p36, %p37
      %p39 = scmp.ne.s32.totalorder %s28, %s29
      %p40 = scmp.eq.s32.totalorder %s20, 0
      %p41 = por %p39, %p40
      %p42 = scmp.ne.s32.totalorder %s28, %s29
      %p43 = scmp.eq.s32.totalorder %s21, 1
      %p44 = por %p42, %p43
      %p46 = scmp.ne.s32.totalorder %s29, %s45
      %p47 = scmp.eq.s32.totalorder %s21, 0
      %p48 = por %p46, %p47
      %s50 = sadd.s32 %s49, 1
      %p53 = scmp.eq.s32.totalorder %s15, 1
      %p54 = scmp.ne.s32.totalorder %s49, %s51
      %p55 = scmp.eq.s32.totalorder %s15, 0
      %p56 = por %p54, %p55
      %p57 = scmp.ne.s32.totalorder %s49, %s51
      %p58 = scmp.eq.s32.totalorder %s20, 1
      %p59 = por %p57, %p58
      %p60 = scmp.ne.s32.totalorder %s51, %s52
      %p61 = scmp.eq.s32.totalorder %s20, 0
      %p62 = por %p60, %p61
      %p63 = scmp.ne.s32.totalorder %s51, %s52
      %p64 = scmp.eq.s32.totalorder %s21, 1
      %p65 = por %p63, %p64
      %p67 = scmp.ne.s32.totalorder %s52, %s66
      %p68 = scmp.eq.s32.totalorder %s21, 0
      %p69 = por %p67, %p68
      %s71 = sadd.s32 %s70, 1
      %p74 = scmp.eq.s32.totalorder %s15, 1
      %p75 = scmp.ne.s32.totalorder %s70, %s72
      %p76 = scmp.eq.s32.totalorder %s15, 0
      %p77 = por %p75, %p76
      %p78 = scmp.ne.s32.totalorder %s70, %s72
      %p79 = scmp.eq.s32.totalorder %s20, 1
      %p80 = por %p78, %p79
      %p81 = scmp.ne.s32.totalorder %s72, %s73
      %p82 = scmp.eq.s32.totalorder %s20, 0
      %p83 = por %p81, %p82
      %p84 = scmp.ne.s32.totalorder %s72, %s73
      %p85 = scmp.eq.s32.totalorder %s21, 1
      %p86 = por %p84, %p85
      %p88 = scmp.ne.s32.totalorder %s73, %s87
      %p89 = scmp.eq.s32.totalorder %s21, 0
      %p90 = por %p88, %p89
      %s92 = sadd.s32 %s91, 1
      %p95 = scmp.eq.s32.totalorder %s15, 1
      %p96 = scmp.ne.s32.totalorder %s91, %s93
      %p97 = scmp.eq.s32.totalorder %s15, 0
      %p98 = por %p96, %p97
      %p99 = scmp.ne.s32.totalorder %s91, %s93
      %p100 = scmp.eq.s32.totalorder %s20, 1
      %p101 = por %p99, %p100
      %p102 = scmp.ne.s32.totalorder %s93, %s94
      %p103 = scmp.eq.s32.totalorder %s20, 0
      %p104 = por %p102, %p103
      %p105 = scmp.ne.s32.totalorder %s93, %s94
      %p106 = scmp.eq.s32.totalorder %s21, 1
      %p107 = por %p105, %p106
      %p109 = scmp.ne.s32.totalorder %s94, %s108
      %p110 = scmp.eq.s32.totalorder %s21, 0
      %p111 = por %p109, %p110
      %s113 = sadd.s32 %s112, 1
      %p116 = scmp.eq.s32.totalorder %s15, 1
      %p117 = scmp.ne.s32.totalorder %s112, %s114
      %p118 = scmp.eq.s32.totalorder %s15, 0
      %p119 = por %p117, %p118
      %p120 = scmp.ne.s32.totalorder %s112, %s114
      %p121 = scmp.eq.s32.totalorder %s20, 1
      %p122 = por %p120, %p121
      %p123 = scmp.ne.s32.totalorder %s114, %s115
      %p124 = scmp.eq.s32.totalorder %s20, 0
      %p125 = por %p123, %p124
      %p126 = scmp.ne.s32.totalorder %s114, %s115
      %p127 = scmp.eq.s32.totalorder %s21, 1
      %p128 = por %p126, %p127
      %p130 = scmp.ne.s32.totalorder %s115, %s129
      %p131 = scmp.eq.s32.totalorder %s21, 0
      %p132 = por %p130, %p131
      %s134 = sadd.s32 %s133, 1
      %p137 = scmp.eq.s32.totalorder %s15, 1
      %p138 = scmp.ne.s32.totalorder %s133, %s135
      %p139 = scmp.eq.s32.totalorder %s15, 0
      %p140 = por %p138, %p139
      %p141 = scmp.ne.s32.totalorder %s133, %s135
      %p142 = scmp.eq.s32.totalorder %s20, 1
      %p143 = por %p141, %p142
      %p144 = scmp.ne.s32.totalorder %s135, %s136
      %p145 = scmp.eq.s32.totalorder %s20, 0
      %p146 = por %p144, %p145
      %p147 = scmp.ne.s32.totalorder %s135, %s136
      %p148 = scmp.eq.s32.totalorder %s21, 1
      %p149 = por %p147, %p148
      %p151 = scmp.ne.s32.totalorder %s136, %s150
      %p152 = scmp.eq.s32.totalorder %s21, 0
      %p153 = por %p151, %p152
      %s155 = sadd.s32 %s154, 1
      %p158 = scmp.eq.s32.totalorder %s15, 1
      %p159 = scmp.ne.s32.totalorder %s154, %s156
      %p160 = scmp.eq.s32.totalorder %s15, 0
      %p161 = por %p159, %p160
      %p162 = scmp.ne.s32.totalorder %s154, %s156
      %p163 = scmp.eq.s32.totalorder %s20, 1
      %p164 = por %p162, %p163
      %p165 = scmp.ne.s32.totalorder %s156, %s157
      %p166 = scmp.eq.s32.totalorder %s20, 0
      %p167 = por %p165, %p166
      %p168 = scmp.ne.s32.totalorder %s156, %s157
      %p169 = scmp.eq.s32.totalorder %s21, 1
      %p170 = por %p168, %p169
      %p172 = scmp.ne.s32.totalorder %s157, %s171
      %p173 = scmp.eq.s32.totalorder %s21, 0
      %p174 = por %p172, %p173
      %s175 = ssub.s32 %s15, %s22
      %p176 = scmp.eq.s32.totalorder %s175, 0
      %s178 = sadd.s32 %s177, 1
      %s179 = scalar_select %p176, %s177, %s178
      %p182 = pneg %p176
      %p183 = scmp.eq.s32.totalorder %s15, 1
      %p184 = por %p182, %p183
      %p185 = scmp.ne.s32.totalorder %s177, %s180
      %p186 = scmp.eq.s32.totalorder %s15, 0
      %p187 = por %p185, %p186
      %p188 = scmp.ne.s32.totalorder %s177, %s180
      %p189 = scmp.eq.s32.totalorder %s20, 1
      %p190 = por %p188, %p189
      %p191 = scmp.ne.s32.totalorder %s180, %s181
      %p192 = scmp.eq.s32.totalorder %s20, 0
      %p193 = por %p191, %p192
      %p194 = scmp.ne.s32.totalorder %s180, %s181
      %p195 = scmp.eq.s32.totalorder %s21, 1
      %p196 = por %p194, %p195
      %p198 = scmp.ne.s32.totalorder %s181, %s197
      %p199 = scmp.eq.s32.totalorder %s21, 0
      %p200 = por %p198, %p199
      %p201 = scmp.le.s32.totalorder 1, %s15
      %p202 = scmp.lt.s32.totalorder %s15, 3
      %p203 = pnand %p201, %p202
      %p204 = pneg %p203
      // Predicated region
      $region9: #{lipschitz_conv_model_forward.2} parent=5 // pred_check
        _
      $region10: #{lipschitz_conv_model_forward.2} parent=5 // pred_check_branch
        %206 = sbr.rel (%p203) target = $region12
      $region11: #{lipschitz_conv_model_forward.2} parent=5 // pred_region
        %s207 = ssub.s32 %s15, 1
        // Predicated region
        $region13: #{lipschitz_conv_model_forward.2} parent=11 // pred_check
          %p208 = pneg %p62
        $region14: #{lipschitz_conv_model_forward.2} parent=11 // pred_check_branch
          %210 = sbr.rel (%p208) target = $region16
        $region15: #{lipschitz_conv_model_forward.2} parent=11 // pred_region
          %212 = vsyncadd [#allocation3], 0
          %s214 = sshll.u32 %s1, 4
          %s215 = int_to_ptr.hbm [resolvable:$true] %s214
          %s216 = sshll.u32 [#allocation2], 4
          %s217 = int_to_ptr.vmem [resolvable:$true] %s216
          %219 = dma.hbm_to_vmem [thread:$0]  %s215, 64, %s217, [#allocation3]
        $region16: #{lipschitz_conv_model_forward.2} parent=11 // pred_fallthru
          _
        // Predicated region
        $region17: #{lipschitz_conv_model_forward.2} parent=11 // pred_check
          %p220 = pneg %p83
        $region18: #{lipschitz_conv_model_forward.2} parent=11 // pred_check_branch
          %222 = sbr.rel (%p220) target = $region20
        $region19: #{lipschitz_conv_model_forward.2} parent=11 // pred_region
          _
        $region20: #{lipschitz_conv_model_forward.2} parent=11 // pred_fallthru
          _
        // Predicated region
        $region21: #{lipschitz_conv_model_forward.2} parent=11 // pred_check
          %p223 = pneg %p104
        $region22: #{lipschitz_conv_model_forward.2} parent=11 // pred_check_branch
          %225 = sbr.rel (%p223) target = $region24
        $region23: #{lipschitz_conv_model_forward.2} parent=11 // pred_region
          %227 = vsyncadd [#allocation5], 0
          %s228 = sshll.u32 %s3, 4
          %s229 = int_to_ptr.hbm [resolvable:$true] %s228
          %s230 = sshll.u32 [#allocation4], 4
          %s231 = int_to_ptr.vmem [resolvable:$true] %s230
          %236 = dma.hbm_to_vmem [thread:$0]  %s229, 25344, %s231, [#allocation5], 192, 192, 12
        $region24: #{lipschitz_conv_model_forward.2} parent=11 // pred_fallthru
          _
        // Predicated region
        $region25: #{lipschitz_conv_model_forward.2} parent=11 // pred_check
          %p237 = pneg %p125
        $region26: #{lipschitz_conv_model_forward.2} parent=11 // pred_check_branch
          %239 = sbr.rel (%p237) target = $region28
        $region27: #{lipschitz_conv_model_forward.2} parent=11 // pred_region
          _
        $region28: #{lipschitz_conv_model_forward.2} parent=11 // pred_fallthru
          _
        // Predicated region
        $region29: #{lipschitz_conv_model_forward.2} parent=11 // pred_check
          %p240 = pneg %p146
        $region30: #{lipschitz_conv_model_forward.2} parent=11 // pred_check_branch
          %242 = sbr.rel (%p240) target = $region32
        $region31: #{lipschitz_conv_model_forward.2} parent=11 // pred_region
          _
        $region32: #{lipschitz_conv_model_forward.2} parent=11 // pred_fallthru
          _
        // Predicated region
        $region33: #{lipschitz_conv_model_forward.2} parent=11 // pred_check
          %p243 = pneg %p167
        $region34: #{lipschitz_conv_model_forward.2} parent=11 // pred_check_branch
          %245 = sbr.rel (%p243) target = $region36
        $region35: #{lipschitz_conv_model_forward.2} parent=11 // pred_region
          _
        $region36: #{lipschitz_conv_model_forward.2} parent=11 // pred_fallthru
          _
      $region12: #{lipschitz_conv_model_forward.2} parent=5 // pred_fallthru
        _
      %p246 = scmp.lt.s32.totalorder %s15, 2
      // Predicated region
      $region37: #{lipschitz_conv_model_forward.2} parent=5 // pred_check
        %p247 = pneg %p246
      $region38: #{lipschitz_conv_model_forward.2} parent=5 // pred_check_branch
        %249 = sbr.rel (%p247) target = $region40
      $region39: #{lipschitz_conv_model_forward.2} parent=5 // pred_region
        // Predicated region
        $region41: #{lipschitz_conv_model_forward.2} parent=39 // pred_check
          %p250 = pneg %p35
        $region42: #{lipschitz_conv_model_forward.2} parent=39 // pred_check_branch
          %252 = sbr.rel (%p250) target = $region44
        $region43: #{lipschitz_conv_model_forward.2} parent=39 // pred_region
          %p253 = scmp.lt.s32.totalorder %s15, 1
          %s254 = scalar_select %p253, %s15, 1
          %s255 = smul.addr %s254, 36
          %s256 = smul.addr %s255, 4
          %s257 = scalar_lea.vmem %s0, %s256
        $region44: #{lipschitz_conv_model_forward.2} parent=39 // pred_fallthru
          _
      $region40: #{lipschitz_conv_model_forward.2} parent=5 // pred_fallthru
        _
      %p258 = scmp.le.s32.totalorder 1, %s15
      %p259 = scmp.lt.s32.totalorder %s15, 3
      %p260 = pnand %p258, %p259
      %p261 = pneg %p260
      // Predicated region
      $region45: #{lipschitz_conv_model_forward.2} parent=5 // pred_check
        _
      $region46: #{lipschitz_conv_model_forward.2} parent=5 // pred_check_branch
        %263 = sbr.rel (%p260) target = $region48
      $region47: #{lipschitz_conv_model_forward.2} parent=5 // pred_region
        %s264 = ssub.s32 %s15, 1
        // Predicated region
        $region49: #{lipschitz_conv_model_forward.2} parent=47 // pred_check
          %p265 = pneg %p62
        $region50: #{lipschitz_conv_model_forward.2} parent=47 // pred_check_branch
          %267 = sbr.rel (%p265) target = $region52
        $region51: #{lipschitz_conv_model_forward.2} parent=47 // pred_region
          %269 = dma.done [#allocation3], 64
        $region52: #{lipschitz_conv_model_forward.2} parent=47 // pred_fallthru
          _
        // Predicated region
        $region53: #{lipschitz_conv_model_forward.2} parent=47 // pred_check
          %p270 = pneg %p104
        $region54: #{lipschitz_conv_model_forward.2} parent=47 // pred_check_branch
          %272 = sbr.rel (%p270) target = $region56
        $region55: #{lipschitz_conv_model_forward.2} parent=47 // pred_region
          %274 = dma.done [#allocation5], 25344
        $region56: #{lipschitz_conv_model_forward.2} parent=47 // pred_fallthru
          _
        %p275 = scmp.lt.s32.totalorder %s20, 1
        %s276 = scalar_select %p275, %s20, 1
        %s277 = smul.addr %s276, 36
        %s278 = smul.addr %s277, 4
        %s279 = scalar_lea.vmem %s0, %s278
        %p280 = pneg %p41
        %p281 = pneg %p38
        %p282 = pneg %p62
        %p283 = pneg %p59
        %p284 = pneg %p83
        %p285 = pneg %p80
        %p286 = pneg %p104
        %p287 = pneg %p101
        %p288 = pneg %p125
        %p289 = pneg %p122
        %p290 = pneg %p146
        %p291 = pneg %p143
        %p292 = pneg %p167
        %p293 = pneg %p164
        %p294 = pneg %p193
        %p295 = pneg %p190
        %p296 = scmp.lt.s32.totalorder %s20, 1
        %s297 = scalar_select %p296, %s20, 1
        %s298 = smul.addr %s297, 13
        %s299 = smul.addr %s298, 4
        %s300 = scalar_lea.vmem %s7, %s299
        %p301 = scmp.lt.s32.totalorder %s20, 1
        %s302 = scalar_select %p301, %s20, 1
        %s303 = smul.addr %s302, 36
        %s304 = smul.addr %s303, 4
        %s305 = scalar_lea.vmem %s0, %s304
        %p306 = scmp.lt.s32.totalorder %s20, 1
        %s307 = scalar_select %p306, %s20, 1
        %s308 = smul.addr %s307, 13
        %s309 = smul.addr %s308, 4
        %s310 = scalar_lea.vmem %s7, %s309
        %v312 = vld [vmem:[#allocation2] sm:$0xf]
        %v313 = vld [vmem:[%s305] sm:$0xff]
        %v314 = vld [vmem:[%s305 + $0x8] sm:$0xff]
        %v315 = vld [vmem:[%s305 + $0x10] sm:$0xff]
        %v316 = vld [vmem:[%s305 + $0x18] sm:$0xff]
        %v317 = vld [vmem:[%s305 + $0x20] sm:$0xf]
        %v318 = vld [vmem:[%s305 + $0x24] sm:$0xff]
        %v319 = vld [vmem:[%s305 + $0x2c] sm:$0xff]
        %v320 = vld [vmem:[%s305 + $0x34] sm:$0xff]
        %v321 = vld [vmem:[%s305 + $0x3c] sm:$0xff]
        %v322 = vld [vmem:[%s305 + $0x44] sm:$0xf]
        %v323 = vld [vmem:[%s305 + $0x48] sm:$0xff]
        %v324 = vld [vmem:[%s305 + $0x50] sm:$0xff]
        %v325 = vld [vmem:[%s305 + $0x58] sm:$0xff]
        %v326 = vld [vmem:[%s305 + $0x60] sm:$0xff]
        %v327 = vld [vmem:[%s305 + $0x68] sm:$0xf]
        %v328 = vld [vmem:[%s305 + $0x6c] sm:$0x33]
        %v329 = vld [vmem:[%s305 + $0x74] sm:$0x33]
        %v330 = vld [vmem:[%s305 + $0x7c] sm:$0x33]
        %v331 = vld [vmem:[%s305 + $0x84] sm:$0x33]
        %v332 = vld [vmem:[%s305 + $0x8c] sm:$0x3]
        %v333 = vld [vmem:[%s2] sm:$0xff]
        %335 = vset.pattern.permute.xlu0 0
        %336 = vperm.xlu0 %335, %v333
        %v337 = vpop.permute.xlu0 %336
        %v359 = vunpack.c.l.b16 %v313
        %v360 = vunpack.c.h.b16 %v313
        %v361 = vunpack.c.l.b16 %v314
        %v362 = vunpack.c.h.b16 %v314
        %v363 = vunpack.c.l.b16 %v315
        %v364 = vunpack.c.h.b16 %v315
        %v365 = vunpack.c.l.b16 %v316
        %v366 = vunpack.c.h.b16 %v316
        %v367 = vunpack.c.l.b16 %v317
        %v368 = vunpack.c.l.b16 %v318
        %v369 = vunpack.c.h.b16 %v318
        %v370 = vunpack.c.l.b16 %v319
        %v371 = vunpack.c.h.b16 %v319
        %v372 = vunpack.c.l.b16 %v320
        %v373 = vunpack.c.h.b16 %v320
        %v374 = vunpack.c.l.b16 %v321
        %v375 = vunpack.c.h.b16 %v321
        %v376 = vunpack.c.l.b16 %v322
        %v377 = vunpack.c.l.b16 %v323
        %v378 = vunpack.c.h.b16 %v323
        %v379 = vunpack.c.l.b16 %v324
        %v380 = vunpack.c.h.b16 %v324
        %v381 = vunpack.c.l.b16 %v325
        %v382 = vunpack.c.h.b16 %v325
        %v383 = vunpack.c.l.b16 %v326
        %v384 = vunpack.c.h.b16 %v326
        %v385 = vunpack.c.l.b16 %v327
        %v386 = vunpack.c.l.b16 %v328
        %v387 = vunpack.c.h.b16 %v328
        %v388 = vunpack.c.l.b16 %v329
        %v389 = vunpack.c.h.b16 %v329
        %v390 = vunpack.c.l.b16 %v330
        %v391 = vunpack.c.h.b16 %v330
        %v392 = vunpack.c.l.b16 %v331
        %v393 = vunpack.c.h.b16 %v331
        %v394 = vunpack.c.l.b16 %v332
        %v395 = vpack.c.b16 %v368, %v359
        %v396 = vpack.c.b16 %v369, %v360
        %v397 = vpack.c.b16 %v370, %v361
        %v398 = vpack.c.b16 %v371, %v362
        %v399 = vpack.c.b16 %v372, %v363
        %v400 = vpack.c.b16 %v373, %v364
        %v401 = vpack.c.b16 %v374, %v365
        %v402 = vpack.c.b16 %v375, %v366
        %v403 = vpack.c.b16 %v376, %v367
        %v404 = vpack.c.b16 %v386, %v377
        %v405 = vpack.c.b16 %v387, %v378
        %v406 = vpack.c.b16 %v388, %v379
        %v407 = vpack.c.b16 %v389, %v380
        %v408 = vpack.c.b16 %v390, %v381
        %v409 = vpack.c.b16 %v391, %v382
        %v410 = vpack.c.b16 %v392, %v383
        %v411 = vpack.c.b16 %v393, %v384
        %v412 = vpack.c.b16 %v394, %v385
        %vm422 = vcmask 220160
        %v424 = vsel %vm422, %v312, 0
        %vm426 = vcmask 1044480
        %vm427 = vcmask 1045504
        %v428 = vsel %vm426, 4294967295, 65535
        %v429 = vsel %vm427, %v428, 0
        %v431 = vand.u32 %v404, %v429
        %v434 = vand.u32 %v405, %v429
        %v437 = vand.u32 %v406, %v429
        %v440 = vand.u32 %v407, %v429
        %v443 = vand.u32 %v408, %v429
        %v446 = vand.u32 %v409, %v429
        %v449 = vand.u32 %v410, %v429
        %v452 = vand.u32 %v411, %v429
        %v455 = vand.u32 %v412, %v429
        %457 = vmatpush.bf16.msra.mxu0 0
        %458 = vmatpush.bf16.msra.mxu0 0
        %459 = vmatpush.bf16.msra.mxu0 0
        %460 = vmatpush.bf16.msra.mxu0 0
        %461 = vmatpush.bf16.msra.mxu0 0
        %462 = vmatpush.bf16.msra.mxu0 0
        %463 = vmatpush.bf16.msra.mxu0 %v431
        %464 = vmatpush.bf16.msra.mxu0 %v395
        %465 = vmatmul.bf16.gmra.mxu0 %v424
        %v466 = vpop.f32.mrf.mxu0
        %v467 = vadd.f32 %v337, %v466
        %v468 = vpop.f32.mrf.mxu0
        %469 = vdwg.mxu0
        %470 = vmatpush.bf16.msra.mxu0 0
        %471 = vmatpush.bf16.msra.mxu0 0
        %472 = vmatpush.bf16.msra.mxu0 0
        %473 = vmatpush.bf16.msra.mxu0 0
        %474 = vmatpush.bf16.msra.mxu0 0
        %475 = vmatpush.bf16.msra.mxu0 0
        %476 = vmatpush.bf16.msra.mxu0 %v434
        %477 = vmatpush.bf16.msra.mxu0 %v396
        %478 = vmatmul.bf16.gmra.mxu0 %v424
        %v479 = vpop.f32.mrf.mxu0
        %v480 = vadd.f32 %v337, %v479
        %v481 = vpop.f32.mrf.mxu0
        %482 = vdwg.mxu0
        %483 = vmatpush.bf16.msra.mxu0 0
        %484 = vmatpush.bf16.msra.mxu0 0
        %485 = vmatpush.bf16.msra.mxu0 0
        %486 = vmatpush.bf16.msra.mxu0 0
        %487 = vmatpush.bf16.msra.mxu0 0
        %488 = vmatpush.bf16.msra.mxu0 0
        %489 = vmatpush.bf16.msra.mxu0 %v437
        %490 = vmatpush.bf16.msra.mxu0 %v397
        %491 = vmatmul.bf16.gmra.mxu0 %v424
        %v492 = vpop.f32.mrf.mxu0
        %v493 = vadd.f32 %v337, %v492
        %v494 = vpop.f32.mrf.mxu0
        %495 = vdwg.mxu0
        %496 = vmatpush.bf16.msra.mxu0 0
        %497 = vmatpush.bf16.msra.mxu0 0
        %498 = vmatpush.bf16.msra.mxu0 0
        %499 = vmatpush.bf16.msra.mxu0 0
        %500 = vmatpush.bf16.msra.mxu0 0
        %501 = vmatpush.bf16.msra.mxu0 0
        %502 = vmatpush.bf16.msra.mxu0 %v440
        %503 = vmatpush.bf16.msra.mxu0 %v398
        %504 = vmatmul.bf16.gmra.mxu0 %v424
        %v505 = vpop.f32.mrf.mxu0
        %v506 = vadd.f32 %v337, %v505
        %v507 = vpop.f32.mrf.mxu0
        %508 = vdwg.mxu0
        %509 = vmatpush.bf16.msra.mxu0 0
        %510 = vmatpush.bf16.msra.mxu0 0
        %511 = vmatpush.bf16.msra.mxu0 0
        %512 = vmatpush.bf16.msra.mxu0 0
        %513 = vmatpush.bf16.msra.mxu0 0
        %514 = vmatpush.bf16.msra.mxu0 0
        %515 = vmatpush.bf16.msra.mxu0 %v443
        %516 = vmatpush.bf16.msra.mxu0 %v399
        %517 = vmatmul.bf16.gmra.mxu0 %v424
        %v518 = vpop.f32.mrf.mxu0
        %v519 = vadd.f32 %v337, %v518
        %v520 = vpop.f32.mrf.mxu0
        %521 = vdwg.mxu0
        %522 = vmatpush.bf16.msra.mxu0 0
        %523 = vmatpush.bf16.msra.mxu0 0
        %524 = vmatpush.bf16.msra.mxu0 0
        %525 = vmatpush.bf16.msra.mxu0 0
        %526 = vmatpush.bf16.msra.mxu0 0
        %527 = vmatpush.bf16.msra.mxu0 0
        %528 = vmatpush.bf16.msra.mxu0 %v446
        %529 = vmatpush.bf16.msra.mxu0 %v400
        %530 = vmatmul.bf16.gmra.mxu0 %v424
        %v531 = vpop.f32.mrf.mxu0
        %v532 = vadd.f32 %v337, %v531
        %v533 = vpop.f32.mrf.mxu0
        %534 = vdwg.mxu0
        %535 = vmatpush.bf16.msra.mxu0 0
        %536 = vmatpush.bf16.msra.mxu0 0
        %537 = vmatpush.bf16.msra.mxu0 0
        %538 = vmatpush.bf16.msra.mxu0 0
        %539 = vmatpush.bf16.msra.mxu0 0
        %540 = vmatpush.bf16.msra.mxu0 0
        %541 = vmatpush.bf16.msra.mxu0 %v449
        %542 = vmatpush.bf16.msra.mxu0 %v401
        %543 = vmatmul.bf16.gmra.mxu0 %v424
        %v544 = vpop.f32.mrf.mxu0
        %v545 = vadd.f32 %v337, %v544
        %v546 = vpop.f32.mrf.mxu0
        %547 = vdwg.mxu0
        %548 = vmatpush.bf16.msra.mxu0 0
        %549 = vmatpush.bf16.msra.mxu0 0
        %550 = vmatpush.bf16.msra.mxu0 0
        %551 = vmatpush.bf16.msra.mxu0 0
        %552 = vmatpush.bf16.msra.mxu0 0
        %553 = vmatpush.bf16.msra.mxu0 0
        %554 = vmatpush.bf16.msra.mxu0 %v452
        %555 = vmatpush.bf16.msra.mxu0 %v402
        %556 = vmatmul.bf16.gmra.mxu0 %v424
        %v557 = vpop.f32.mrf.mxu0
        %v558 = vadd.f32 %v337, %v557
        %v559 = vpop.f32.mrf.mxu0
        %560 = vdwg.mxu0
        %561 = vmatpush.bf16.msra.mxu0 0
        %562 = vmatpush.bf16.msra.mxu0 0
        %563 = vmatpush.bf16.msra.mxu0 0
        %564 = vmatpush.bf16.msra.mxu0 0
        %565 = vmatpush.bf16.msra.mxu0 0
        %566 = vmatpush.bf16.msra.mxu0 0
        %567 = vmatpush.bf16.msra.mxu0 %v455
        %568 = vmatpush.bf16.msra.mxu0 %v403
        %569 = vmatmul.bf16.gmra.mxu0 %v424
        %v570 = vpop.f32.mrf.mxu0
        %v571 = vadd.f32 %v337, %v570
        %v572 = vpop.f32.mrf.mxu0
        %573 = vdwg.mxu0
        %v574 = vmax.f32 %v467, 0.0
        %v575 = vmax.f32 %v480, 0.0
        %v576 = vmax.f32 %v493, 0.0
        %v577 = vmax.f32 %v506, 0.0
        %v578 = vmax.f32 %v519, 0.0
        %v579 = vmax.f32 %v532, 0.0
        %v580 = vmax.f32 %v545, 0.0
        %v581 = vmax.f32 %v558, 0.0
        %v582 = vmax.f32 %v571, 0.0
        %592 = vrot.lane.b32.xlu0 %v574, 127
        %v593 = vpop.permute.xlu0 %592
        %594 = vrot.lane.b32.xlu0 %v575, 127
        %v595 = vpop.permute.xlu0 %594
        %596 = vrot.lane.b32.xlu0 %v576, 127
        %v597 = vpop.permute.xlu0 %596
        %598 = vrot.lane.b32.xlu0 %v577, 127
        %v599 = vpop.permute.xlu0 %598
        %600 = vrot.lane.b32.xlu0 %v578, 127
        %v601 = vpop.permute.xlu0 %600
        %602 = vrot.lane.b32.xlu0 %v579, 127
        %v603 = vpop.permute.xlu0 %602
        %604 = vrot.lane.b32.xlu0 %v580, 127
        %v605 = vpop.permute.xlu0 %604
        %606 = vrot.lane.b32.xlu0 %v581, 127
        %v607 = vpop.permute.xlu0 %606
        %608 = vrot.lane.b32.xlu0 %v582, 127
        %v609 = vpop.permute.xlu0 %608
        %vm610 = vcmask 1039360
        %v611 = vsel %vm610, %v593, %v595
        %v612 = vsel %vm610, %v595, %v597
        %v613 = vsel %vm610, %v597, %v599
        %v614 = vsel %vm610, %v599, %v601
        %v615 = vsel %vm610, %v601, %v603
        %v616 = vsel %vm610, %v603, %v605
        %v617 = vsel %vm610, %v605, %v607
        %v618 = vsel %vm610, %v607, %v609
        %v628 = vmax.f32 %v574, %v611
        %v629 = vmax.f32 %v575, %v612
        %v630 = vmax.f32 %v576, %v613
        %v631 = vmax.f32 %v577, %v614
        %v632 = vmax.f32 %v578, %v615
        %v633 = vmax.f32 %v579, %v616
        %v634 = vmax.f32 %v580, %v617
        %v635 = vmax.f32 %v581, %v618
        %v636 = vmax.f32 %v582, %v609
        %646 = vrot.lane.b32.xlu0 %v628, 94
        %v647 = vpop.permute.xlu0 %646
        %648 = vrot.lane.b32.xlu0 %v629, 94
        %v649 = vpop.permute.xlu0 %648
        %650 = vrot.lane.b32.xlu0 %v630, 94
        %v651 = vpop.permute.xlu0 %650
        %652 = vrot.lane.b32.xlu0 %v631, 94
        %v653 = vpop.permute.xlu0 %652
        %654 = vrot.lane.b32.xlu0 %v632, 94
        %v655 = vpop.permute.xlu0 %654
        %656 = vrot.lane.b32.xlu0 %v633, 94
        %v657 = vpop.permute.xlu0 %656
        %658 = vrot.lane.b32.xlu0 %v634, 94
        %v659 = vpop.permute.xlu0 %658
        %660 = vrot.lane.b32.xlu0 %v635, 94
        %v661 = vpop.permute.xlu0 %660
        %662 = vrot.lane.b32.xlu0 %v636, 94
        %v663 = vpop.permute.xlu0 %662
        %vm664 = vcmask 769024
        %v665 = vsel %vm664, %v647, %v649
        %v666 = vsel %vm664, %v649, %v651
        %v667 = vsel %vm664, %v651, %v653
        %v668 = vsel %vm664, %v653, %v655
        %v669 = vsel %vm664, %v655, %v657
        %v670 = vsel %vm664, %v657, %v659
        %v671 = vsel %vm664, %v659, %v661
        %v672 = vsel %vm664, %v661, %v663
        %v682 = vmax.f32 %v628, %v665
        %v683 = vmax.f32 %v629, %v666
        %v684 = vmax.f32 %v630, %v667
        %v685 = vmax.f32 %v631, %v668
        %v686 = vmax.f32 %v632, %v669
        %v687 = vmax.f32 %v633, %v670
        %v688 = vmax.f32 %v634, %v671
        %v689 = vmax.f32 %v635, %v672
        %v690 = vmax.f32 %v636, %v663
        %v691 = vpack.c.bf16 %v682, %v682
        %v692 = vpack.c.bf16 %v683, %v683
        %v693 = vpack.c.bf16 %v684, %v684
        %v694 = vpack.c.bf16 %v685, %v685
        %v695 = vpack.c.bf16 %v686, %v686
        %v696 = vpack.c.bf16 %v687, %v687
        %v697 = vpack.c.bf16 %v688, %v688
        %v698 = vpack.c.bf16 %v689, %v689
        %v699 = vpack.c.bf16 %v690, %v690
        %v700 = vld [vmem:[#allocation4] sm:$0xff]
        %v701 = vld [vmem:[#allocation4 + $0x8] sm:$0xf]
        %v702 = vld [vmem:[#allocation4 + $0xc] sm:$0xff]
        %v703 = vld [vmem:[#allocation4 + $0x14] sm:$0xf]
        %v704 = vld [vmem:[#allocation4 + $0x18] sm:$0xff]
        %v705 = vld [vmem:[#allocation4 + $0x20] sm:$0xf]
        %v706 = vld [vmem:[#allocation4 + $0x24] sm:$0xff]
        %v707 = vld [vmem:[#allocation4 + $0x2c] sm:$0xf]
        %v708 = vld [vmem:[#allocation4 + $0x30] sm:$0xff]
        %v709 = vld [vmem:[#allocation4 + $0x38] sm:$0xf]
        %v710 = vld [vmem:[#allocation4 + $0x3c] sm:$0xff]
        %v711 = vld [vmem:[#allocation4 + $0x44] sm:$0xf]
        %v712 = vld [vmem:[#allocation4 + $0x48] sm:$0xff]
        %v713 = vld [vmem:[#allocation4 + $0x50] sm:$0xf]
        %v714 = vld [vmem:[#allocation4 + $0x54] sm:$0xff]
        %v715 = vld [vmem:[#allocation4 + $0x5c] sm:$0xf]
        %v716 = vld [vmem:[#allocation4 + $0x60] sm:$0xff]
        %v717 = vld [vmem:[#allocation4 + $0x68] sm:$0xf]
        %v718 = vld [vmem:[#allocation4 + $0x6c] sm:$0xff]
        %v719 = vld [vmem:[#allocation4 + $0x74] sm:$0xf]
        %v720 = vld [vmem:[#allocation4 + $0x78] sm:$0xff]
        %v721 = vld [vmem:[#allocation4 + $0x80] sm:$0xf]
        %v722 = vld [vmem:[#allocation4 + $0x84] sm:$0xff]
        %v723 = vld [vmem:[#allocation4 + $0x8c] sm:$0xf]
        %v724 = vld [vmem:[#allocation4 + $0x90] sm:$0xff]
        %v725 = vld [vmem:[#allocation4 + $0x98] sm:$0xf]
        %v726 = vld [vmem:[#allocation4 + $0x9c] sm:$0xff]
        %v727 = vld [vmem:[#allocation4 + $0xa4] sm:$0xf]
        %v728 = vld [vmem:[#allocation4 + $0xa8] sm:$0xff]
        %v729 = vld [vmem:[#allocation4 + $0xb0] sm:$0xf]
        %v730 = vld [vmem:[#allocation4 + $0xb4] sm:$0xff]
        %v731 = vld [vmem:[#allocation4 + $0xbc] sm:$0xf]
        %v732 = vld [vmem:[#allocation4 + $0xc0] sm:$0xff]
        %v733 = vld [vmem:[#allocation4 + $0xc8] sm:$0xf]
        %v734 = vld [vmem:[#allocation4 + $0xcc] sm:$0xff]
        %v735 = vld [vmem:[#allocation4 + $0xd4] sm:$0xf]
        %v736 = vld [vmem:[#allocation4 + $0xd8] sm:$0xff]
        %v737 = vld [vmem:[#allocation4 + $0xe0] sm:$0xf]
        %v738 = vld [vmem:[#allocation4 + $0xe4] sm:$0xff]
        %v739 = vld [vmem:[#allocation4 + $0xec] sm:$0xf]
        %v740 = vld [vmem:[#allocation4 + $0xf0] sm:$0xff]
        %v741 = vld [vmem:[#allocation4 + $0xf8] sm:$0xf]
        %v742 = vld [vmem:[#allocation4 + $0xfc] sm:$0xff]
        %v743 = vld [vmem:[#allocation4 + $0x104] sm:$0xf]
        %v744 = vld [vmem:[#allocation4 + $0x108] sm:$0xff]
        %v745 = vld [vmem:[#allocation4 + $0x110] sm:$0xf]
        %v746 = vld [vmem:[#allocation4 + $0x114] sm:$0xff]
        %v747 = vld [vmem:[#allocation4 + $0x11c] sm:$0xf]
        %v748 = vld [vmem:[#allocation4 + $0x120] sm:$0xff]
        %v749 = vld [vmem:[#allocation4 + $0x128] sm:$0xf]
        %v750 = vld [vmem:[#allocation4 + $0x12c] sm:$0xff]
        %v751 = vld [vmem:[#allocation4 + $0x134] sm:$0xf]
        %v752 = vld [vmem:[#allocation4 + $0x138] sm:$0xff]
        %v753 = vld [vmem:[#allocation4 + $0x140] sm:$0xf]
        %v754 = vld [vmem:[#allocation4 + $0x144] sm:$0xff]
        %v755 = vld [vmem:[#allocation4 + $0x14c] sm:$0xf]
        %v756 = vld [vmem:[#allocation4 + $0x150] sm:$0xff]
        %v757 = vld [vmem:[#allocation4 + $0x158] sm:$0xf]
        %v758 = vld [vmem:[#allocation4 + $0x15c] sm:$0xff]
        %v759 = vld [vmem:[#allocation4 + $0x164] sm:$0xf]
        %v760 = vld [vmem:[#allocation4 + $0x168] sm:$0xff]
        %v761 = vld [vmem:[#allocation4 + $0x170] sm:$0xf]
        %v762 = vld [vmem:[#allocation4 + $0x174] sm:$0xff]
        %v763 = vld [vmem:[#allocation4 + $0x17c] sm:$0xf]
        %v764 = vld [vmem:[#allocation4 + $0x180] sm:$0xff]
        %v765 = vld [vmem:[#allocation4 + $0x188] sm:$0xf]
        %v766 = vld [vmem:[#allocation4 + $0x18c] sm:$0xff]
        %v767 = vld [vmem:[#allocation4 + $0x194] sm:$0xf]
        %v768 = vld [vmem:[#allocation4 + $0x198] sm:$0xff]
        %v769 = vld [vmem:[#allocation4 + $0x1a0] sm:$0xf]
        %v770 = vld [vmem:[#allocation4 + $0x1a4] sm:$0xff]
        %v771 = vld [vmem:[#allocation4 + $0x1ac] sm:$0xf]
        %v772 = vld [vmem:[#allocation4 + $0x1b0] sm:$0xff]
        %v773 = vld [vmem:[#allocation4 + $0x1b8] sm:$0xf]
        %v774 = vld [vmem:[#allocation4 + $0x1bc] sm:$0xff]
        %v775 = vld [vmem:[#allocation4 + $0x1c4] sm:$0xf]
        %v776 = vld [vmem:[#allocation4 + $0x1c8] sm:$0xff]
        %v777 = vld [vmem:[#allocation4 + $0x1d0] sm:$0xf]
        %v778 = vld [vmem:[#allocation4 + $0x1d4] sm:$0xff]
        %v779 = vld [vmem:[#allocation4 + $0x1dc] sm:$0xf]
        %v780 = vld [vmem:[#allocation4 + $0x1e0] sm:$0xff]
        %v781 = vld [vmem:[#allocation4 + $0x1e8] sm:$0xf]
        %v782 = vld [vmem:[#allocation4 + $0x1ec] sm:$0xff]
        %v783 = vld [vmem:[#allocation4 + $0x1f4] sm:$0xf]
        %v784 = vld [vmem:[#allocation4 + $0x1f8] sm:$0xff]
        %v785 = vld [vmem:[#allocation4 + $0x200] sm:$0xf]
        %v786 = vld [vmem:[#allocation4 + $0x204] sm:$0xff]
        %v787 = vld [vmem:[#allocation4 + $0x20c] sm:$0xf]
        %v788 = vld [vmem:[#allocation4 + $0x210] sm:$0xff]
        %v789 = vld [vmem:[#allocation4 + $0x218] sm:$0xf]
        %v790 = vld [vmem:[#allocation4 + $0x21c] sm:$0xff]
        %v791 = vld [vmem:[#allocation4 + $0x224] sm:$0xf]
        %v792 = vld [vmem:[#allocation4 + $0x228] sm:$0xff]
        %v793 = vld [vmem:[#allocation4 + $0x230] sm:$0xf]
        %v794 = vld [vmem:[#allocation4 + $0x234] sm:$0xff]
        %v795 = vld [vmem:[#allocation4 + $0x23c] sm:$0xf]
        %v796 = vld [vmem:[#allocation4 + $0x240] sm:$0xff]
        %v797 = vld [vmem:[#allocation4 + $0x248] sm:$0xf]
        %v798 = vld [vmem:[#allocation4 + $0x24c] sm:$0xff]
        %v799 = vld [vmem:[#allocation4 + $0x254] sm:$0xf]
        %v800 = vld [vmem:[#allocation4 + $0x258] sm:$0xff]
        %v801 = vld [vmem:[#allocation4 + $0x260] sm:$0xf]
        %v802 = vld [vmem:[#allocation4 + $0x264] sm:$0xff]
        %v803 = vld [vmem:[#allocation4 + $0x26c] sm:$0xf]
        %v804 = vld [vmem:[#allocation4 + $0x270] sm:$0xff]
        %v805 = vld [vmem:[#allocation4 + $0x278] sm:$0xf]
        %v806 = vld [vmem:[#allocation4 + $0x27c] sm:$0xff]
        %v807 = vld [vmem:[#allocation4 + $0x284] sm:$0xf]
        %v808 = vld [vmem:[#allocation4 + $0x288] sm:$0xff]
        %v809 = vld [vmem:[#allocation4 + $0x290] sm:$0xf]
        %v810 = vld [vmem:[#allocation4 + $0x294] sm:$0xff]
        %v811 = vld [vmem:[#allocation4 + $0x29c] sm:$0xf]
        %v812 = vld [vmem:[#allocation4 + $0x2a0] sm:$0xff]
        %v813 = vld [vmem:[#allocation4 + $0x2a8] sm:$0xf]
        %v814 = vld [vmem:[#allocation4 + $0x2ac] sm:$0xff]
        %v815 = vld [vmem:[#allocation4 + $0x2b4] sm:$0xf]
        %v816 = vld [vmem:[#allocation4 + $0x2b8] sm:$0xff]
        %v817 = vld [vmem:[#allocation4 + $0x2c0] sm:$0xf]
        %v818 = vld [vmem:[#allocation4 + $0x2c4] sm:$0xff]
        %v819 = vld [vmem:[#allocation4 + $0x2cc] sm:$0xf]
        %v820 = vld [vmem:[#allocation4 + $0x2d0] sm:$0xff]
        %v821 = vld [vmem:[#allocation4 + $0x2d8] sm:$0xf]
        %v822 = vld [vmem:[#allocation4 + $0x2dc] sm:$0xff]
        %v823 = vld [vmem:[#allocation4 + $0x2e4] sm:$0xf]
        %v824 = vld [vmem:[#allocation4 + $0x2e8] sm:$0xff]
        %v825 = vld [vmem:[#allocation4 + $0x2f0] sm:$0xf]
        %v826 = vld [vmem:[#allocation4 + $0x2f4] sm:$0xff]
        %v827 = vld [vmem:[#allocation4 + $0x2fc] sm:$0xf]
        %v828 = vld [vmem:[#allocation4 + $0x300] sm:$0xff]
        %v829 = vld [vmem:[#allocation4 + $0x308] sm:$0xf]
        %v830 = vld [vmem:[#allocation4 + $0x30c] sm:$0xff]
        %v831 = vld [vmem:[#allocation4 + $0x314] sm:$0xf]
        %v832 = vld [vmem:[#allocation4 + $0x318] sm:$0xff]
        %v833 = vld [vmem:[#allocation4 + $0x320] sm:$0xf]
        %v834 = vld [vmem:[#allocation4 + $0x324] sm:$0xff]
        %v835 = vld [vmem:[#allocation4 + $0x32c] sm:$0xf]
        %v836 = vld [vmem:[#allocation4 + $0x330] sm:$0xff]
        %v837 = vld [vmem:[#allocation4 + $0x338] sm:$0xf]
        %v838 = vld [vmem:[#allocation4 + $0x33c] sm:$0xff]
        %v839 = vld [vmem:[#allocation4 + $0x344] sm:$0xf]
        %v840 = vld [vmem:[#allocation4 + $0x348] sm:$0xff]
        %v841 = vld [vmem:[#allocation4 + $0x350] sm:$0xf]
        %v842 = vld [vmem:[#allocation4 + $0x354] sm:$0xff]
        %v843 = vld [vmem:[#allocation4 + $0x35c] sm:$0xf]
        %v844 = vld [vmem:[#allocation4 + $0x360] sm:$0xff]
        %v845 = vld [vmem:[#allocation4 + $0x368] sm:$0xf]
        %v846 = vld [vmem:[#allocation4 + $0x36c] sm:$0xff]
        %v847 = vld [vmem:[#allocation4 + $0x374] sm:$0xf]
        %v848 = vld [vmem:[#allocation4 + $0x378] sm:$0xff]
        %v849 = vld [vmem:[#allocation4 + $0x380] sm:$0xf]
        %v850 = vld [vmem:[#allocation4 + $0x384] sm:$0xff]
        %v851 = vld [vmem:[#allocation4 + $0x38c] sm:$0xf]
        %v852 = vld [vmem:[#allocation4 + $0x390] sm:$0xff]
        %v853 = vld [vmem:[#allocation4 + $0x398] sm:$0xf]
        %v854 = vld [vmem:[#allocation4 + $0x39c] sm:$0xff]
        %v855 = vld [vmem:[#allocation4 + $0x3a4] sm:$0xf]
        %v856 = vld [vmem:[#allocation4 + $0x3a8] sm:$0xff]
        %v857 = vld [vmem:[#allocation4 + $0x3b0] sm:$0xf]
        %v858 = vld [vmem:[#allocation4 + $0x3b4] sm:$0xff]
        %v859 = vld [vmem:[#allocation4 + $0x3bc] sm:$0xf]
        %v860 = vld [vmem:[#allocation4 + $0x3c0] sm:$0xff]
        %v861 = vld [vmem:[#allocation4 + $0x3c8] sm:$0xf]
        %v862 = vld [vmem:[#allocation4 + $0x3cc] sm:$0xff]
        %v863 = vld [vmem:[#allocation4 + $0x3d4] sm:$0xf]
        %v864 = vld [vmem:[#allocation4 + $0x3d8] sm:$0xff]
        %v865 = vld [vmem:[#allocation4 + $0x3e0] sm:$0xf]
        %v866 = vld [vmem:[#allocation4 + $0x3e4] sm:$0xff]
        %v867 = vld [vmem:[#allocation4 + $0x3ec] sm:$0xf]
        %v868 = vld [vmem:[#allocation4 + $0x3f0] sm:$0xff]
        %v869 = vld [vmem:[#allocation4 + $0x3f8] sm:$0xf]
        %v870 = vld [vmem:[#allocation4 + $0x3fc] sm:$0xff]
        %v871 = vld [vmem:[#allocation4 + $0x404] sm:$0xf]
        %v872 = vld [vmem:[#allocation4 + $0x408] sm:$0xff]
        %v873 = vld [vmem:[#allocation4 + $0x410] sm:$0xf]
        %v874 = vld [vmem:[#allocation4 + $0x414] sm:$0xff]
        %v875 = vld [vmem:[#allocation4 + $0x41c] sm:$0xf]
        %v876 = vld [vmem:[#allocation4 + $0x420] sm:$0xff]
        %v877 = vld [vmem:[#allocation4 + $0x428] sm:$0xf]
        %v878 = vld [vmem:[#allocation4 + $0x42c] sm:$0xff]
        %v879 = vld [vmem:[#allocation4 + $0x434] sm:$0xf]
        %v880 = vld [vmem:[#allocation4 + $0x438] sm:$0xff]
        %v881 = vld [vmem:[#allocation4 + $0x440] sm:$0xf]
        %v882 = vld [vmem:[#allocation4 + $0x444] sm:$0xff]
        %v883 = vld [vmem:[#allocation4 + $0x44c] sm:$0xf]
        %v884 = vld [vmem:[#allocation4 + $0x450] sm:$0xff]
        %v885 = vld [vmem:[#allocation4 + $0x458] sm:$0xf]
        %v886 = vld [vmem:[#allocation4 + $0x45c] sm:$0xff]
        %v887 = vld [vmem:[#allocation4 + $0x464] sm:$0xf]
        %v888 = vld [vmem:[#allocation4 + $0x468] sm:$0xff]
        %v889 = vld [vmem:[#allocation4 + $0x470] sm:$0xf]
        %v890 = vld [vmem:[#allocation4 + $0x474] sm:$0xff]
        %v891 = vld [vmem:[#allocation4 + $0x47c] sm:$0xf]
        %v892 = vld [vmem:[#allocation4 + $0x480] sm:$0xff]
        %v893 = vld [vmem:[#allocation4 + $0x488] sm:$0xf]
        %v894 = vld [vmem:[#allocation4 + $0x48c] sm:$0xff]
        %v895 = vld [vmem:[#allocation4 + $0x494] sm:$0xf]
        %v896 = vld [vmem:[#allocation4 + $0x498] sm:$0xff]
        %v897 = vld [vmem:[#allocation4 + $0x4a0] sm:$0xf]
        %v898 = vld [vmem:[#allocation4 + $0x4a4] sm:$0xff]
        %v899 = vld [vmem:[#allocation4 + $0x4ac] sm:$0xf]
        %v900 = vld [vmem:[#allocation4 + $0x4b0] sm:$0xff]
        %v901 = vld [vmem:[#allocation4 + $0x4b8] sm:$0xf]
        %v902 = vld [vmem:[#allocation4 + $0x4bc] sm:$0xff]
        %v903 = vld [vmem:[#allocation4 + $0x4c4] sm:$0xf]
        %v904 = vld [vmem:[#allocation4 + $0x4c8] sm:$0xff]
        %v905 = vld [vmem:[#allocation4 + $0x4d0] sm:$0xf]
        %v906 = vld [vmem:[#allocation4 + $0x4d4] sm:$0xff]
        %v907 = vld [vmem:[#allocation4 + $0x4dc] sm:$0xf]
        %v908 = vld [vmem:[#allocation4 + $0x4e0] sm:$0xff]
        %v909 = vld [vmem:[#allocation4 + $0x4e8] sm:$0xf]
        %v910 = vld [vmem:[#allocation4 + $0x4ec] sm:$0xff]
        %v911 = vld [vmem:[#allocation4 + $0x4f4] sm:$0xf]
        %v912 = vld [vmem:[#allocation4 + $0x4f8] sm:$0xff]
        %v913 = vld [vmem:[#allocation4 + $0x500] sm:$0xf]
        %v914 = vld [vmem:[#allocation4 + $0x504] sm:$0xff]
        %v915 = vld [vmem:[#allocation4 + $0x50c] sm:$0xf]
        %v916 = vld [vmem:[#allocation4 + $0x510] sm:$0xff]
        %v917 = vld [vmem:[#allocation4 + $0x518] sm:$0xf]
        %v918 = vld [vmem:[#allocation4 + $0x51c] sm:$0xff]
        %v919 = vld [vmem:[#allocation4 + $0x524] sm:$0xf]
        %v920 = vld [vmem:[#allocation4 + $0x528] sm:$0xff]
        %v921 = vld [vmem:[#allocation4 + $0x530] sm:$0xf]
        %v922 = vld [vmem:[#allocation4 + $0x534] sm:$0xff]
        %v923 = vld [vmem:[#allocation4 + $0x53c] sm:$0xf]
        %v924 = vld [vmem:[#allocation4 + $0x540] sm:$0xff]
        %v925 = vld [vmem:[#allocation4 + $0x548] sm:$0xf]
        %v926 = vld [vmem:[#allocation4 + $0x54c] sm:$0xff]
        %v927 = vld [vmem:[#allocation4 + $0x554] sm:$0xf]
        %v928 = vld [vmem:[#allocation4 + $0x558] sm:$0xff]
        %v929 = vld [vmem:[#allocation4 + $0x560] sm:$0xf]
        %v930 = vld [vmem:[#allocation4 + $0x564] sm:$0xff]
        %v931 = vld [vmem:[#allocation4 + $0x56c] sm:$0xf]
        %v932 = vld [vmem:[#allocation4 + $0x570] sm:$0xff]
        %v933 = vld [vmem:[#allocation4 + $0x578] sm:$0xf]
        %v934 = vld [vmem:[#allocation4 + $0x57c] sm:$0xff]
        %v935 = vld [vmem:[#allocation4 + $0x584] sm:$0xf]
        %v936 = vld [vmem:[#allocation4 + $0x588] sm:$0xff]
        %v937 = vld [vmem:[#allocation4 + $0x590] sm:$0xf]
        %v938 = vld [vmem:[#allocation4 + $0x594] sm:$0xff]
        %v939 = vld [vmem:[#allocation4 + $0x59c] sm:$0xf]
        %v940 = vld [vmem:[#allocation4 + $0x5a0] sm:$0xff]
        %v941 = vld [vmem:[#allocation4 + $0x5a8] sm:$0xf]
        %v942 = vld [vmem:[#allocation4 + $0x5ac] sm:$0xff]
        %v943 = vld [vmem:[#allocation4 + $0x5b4] sm:$0xf]
        %v944 = vld [vmem:[#allocation4 + $0x5b8] sm:$0xff]
        %v945 = vld [vmem:[#allocation4 + $0x5c0] sm:$0xf]
        %v946 = vld [vmem:[#allocation4 + $0x5c4] sm:$0xff]
        %v947 = vld [vmem:[#allocation4 + $0x5cc] sm:$0xf]
        %v948 = vld [vmem:[#allocation4 + $0x5d0] sm:$0xff]
        %v949 = vld [vmem:[#allocation4 + $0x5d8] sm:$0xf]
        %v950 = vld [vmem:[#allocation4 + $0x5dc] sm:$0xff]
        %v951 = vld [vmem:[#allocation4 + $0x5e4] sm:$0xf]
        %v952 = vld [vmem:[#allocation4 + $0x5e8] sm:$0xff]
        %v953 = vld [vmem:[#allocation4 + $0x5f0] sm:$0xf]
        %v954 = vld [vmem:[#allocation4 + $0x5f4] sm:$0xff]
        %v955 = vld [vmem:[#allocation4 + $0x5fc] sm:$0xf]
        %v956 = vld [vmem:[#allocation4 + $0x600] sm:$0xff]
        %v957 = vld [vmem:[#allocation4 + $0x608] sm:$0xf]
        %v958 = vld [vmem:[#allocation4 + $0x60c] sm:$0xff]
        %v959 = vld [vmem:[#allocation4 + $0x614] sm:$0xf]
        %v960 = vld [vmem:[#allocation4 + $0x618] sm:$0xff]
        %v961 = vld [vmem:[#allocation4 + $0x620] sm:$0xf]
        %v962 = vld [vmem:[#allocation4 + $0x624] sm:$0x77]
        %v963 = vld [vmem:[#allocation4 + $0x62c] sm:$0x7]
        %v1228 = vunpack.c.l.b16 %v700
        %v1229 = vunpack.c.h.b16 %v700
        %v1230 = vunpack.c.l.b16 %v701
        %v1231 = vunpack.c.l.b16 %v702
        %v1232 = vunpack.c.h.b16 %v702
        %v1233 = vunpack.c.l.b16 %v703
        %v1234 = vunpack.c.l.b16 %v704
        %v1235 = vunpack.c.h.b16 %v704
        %v1236 = vunpack.c.l.b16 %v705
        %v1237 = vunpack.c.l.b16 %v706
        %v1238 = vunpack.c.h.b16 %v706
        %v1239 = vunpack.c.l.b16 %v707
        %v1240 = vunpack.c.l.b16 %v708
        %v1241 = vunpack.c.h.b16 %v708
        %v1242 = vunpack.c.l.b16 %v709
        %v1243 = vunpack.c.l.b16 %v710
        %v1244 = vunpack.c.h.b16 %v710
        %v1245 = vunpack.c.l.b16 %v711
        %v1246 = vunpack.c.l.b16 %v712
        %v1247 = vunpack.c.h.b16 %v712
        %v1248 = vunpack.c.l.b16 %v713
        %v1249 = vunpack.c.l.b16 %v714
        %v1250 = vunpack.c.h.b16 %v714
        %v1251 = vunpack.c.l.b16 %v715
        %v1252 = vunpack.c.l.b16 %v716
        %v1253 = vunpack.c.h.b16 %v716
        %v1254 = vunpack.c.l.b16 %v717
        %v1255 = vunpack.c.l.b16 %v718
        %v1256 = vunpack.c.h.b16 %v718
        %v1257 = vunpack.c.l.b16 %v719
        %v1258 = vunpack.c.l.b16 %v720
        %v1259 = vunpack.c.h.b16 %v720
        %v1260 = vunpack.c.l.b16 %v721
        %v1261 = vunpack.c.l.b16 %v722
        %v1262 = vunpack.c.h.b16 %v722
        %v1263 = vunpack.c.l.b16 %v723
        %v1264 = vunpack.c.l.b16 %v724
        %v1265 = vunpack.c.h.b16 %v724
        %v1266 = vunpack.c.l.b16 %v725
        %v1267 = vunpack.c.l.b16 %v726
        %v1268 = vunpack.c.h.b16 %v726
        %v1269 = vunpack.c.l.b16 %v727
        %v1270 = vunpack.c.l.b16 %v728
        %v1271 = vunpack.c.h.b16 %v728
        %v1272 = vunpack.c.l.b16 %v729
        %v1273 = vunpack.c.l.b16 %v730
        %v1274 = vunpack.c.h.b16 %v730
        %v1275 = vunpack.c.l.b16 %v731
        %v1276 = vunpack.c.l.b16 %v732
        %v1277 = vunpack.c.h.b16 %v732
        %v1278 = vunpack.c.l.b16 %v733
        %v1279 = vunpack.c.l.b16 %v734
        %v1280 = vunpack.c.h.b16 %v734
        %v1281 = vunpack.c.l.b16 %v735
        %v1282 = vunpack.c.l.b16 %v736
        %v1283 = vunpack.c.h.b16 %v736
        %v1284 = vunpack.c.l.b16 %v737
        %v1285 = vunpack.c.l.b16 %v738
        %v1286 = vunpack.c.h.b16 %v738
        %v1287 = vunpack.c.l.b16 %v739
        %v1288 = vunpack.c.l.b16 %v740
        %v1289 = vunpack.c.h.b16 %v740
        %v1290 = vunpack.c.l.b16 %v741
        %v1291 = vunpack.c.l.b16 %v742
        %v1292 = vunpack.c.h.b16 %v742
        %v1293 = vunpack.c.l.b16 %v743
        %v1294 = vunpack.c.l.b16 %v744
        %v1295 = vunpack.c.h.b16 %v744
        %v1296 = vunpack.c.l.b16 %v745
        %v1297 = vunpack.c.l.b16 %v746
        %v1298 = vunpack.c.h.b16 %v746
        %v1299 = vunpack.c.l.b16 %v747
        %v1300 = vunpack.c.l.b16 %v748
        %v1301 = vunpack.c.h.b16 %v748
        %v1302 = vunpack.c.l.b16 %v749
        %v1303 = vunpack.c.l.b16 %v750
        %v1304 = vunpack.c.h.b16 %v750
        %v1305 = vunpack.c.l.b16 %v751
        %v1306 = vunpack.c.l.b16 %v752
        %v1307 = vunpack.c.h.b16 %v752
        %v1308 = vunpack.c.l.b16 %v753
        %v1309 = vunpack.c.l.b16 %v754
        %v1310 = vunpack.c.h.b16 %v754
        %v1311 = vunpack.c.l.b16 %v755
        %v1312 = vunpack.c.l.b16 %v756
        %v1313 = vunpack.c.h.b16 %v756
        %v1314 = vunpack.c.l.b16 %v757
        %v1315 = vunpack.c.l.b16 %v758
        %v1316 = vunpack.c.h.b16 %v758
        %v1317 = vunpack.c.l.b16 %v759
        %v1318 = vunpack.c.l.b16 %v760
        %v1319 = vunpack.c.h.b16 %v760
        %v1320 = vunpack.c.l.b16 %v761
        %v1321 = vunpack.c.l.b16 %v762
        %v1322 = vunpack.c.h.b16 %v762
        %v1323 = vunpack.c.l.b16 %v763
        %v1324 = vunpack.c.l.b16 %v764
        %v1325 = vunpack.c.h.b16 %v764
        %v1326 = vunpack.c.l.b16 %v765
        %v1327 = vunpack.c.l.b16 %v766
        %v1328 = vunpack.c.h.b16 %v766
        %v1329 = vunpack.c.l.b16 %v767
        %v1330 = vunpack.c.l.b16 %v768
        %v1331 = vunpack.c.h.b16 %v768
        %v1332 = vunpack.c.l.b16 %v769
        %v1333 = vunpack.c.l.b16 %v770
        %v1334 = vunpack.c.h.b16 %v770
        %v1335 = vunpack.c.l.b16 %v771
        %v1336 = vunpack.c.l.b16 %v772
        %v1337 = vunpack.c.h.b16 %v772
        %v1338 = vunpack.c.l.b16 %v773
        %v1339 = vunpack.c.l.b16 %v774
        %v1340 = vunpack.c.h.b16 %v774
        %v1341 = vunpack.c.l.b16 %v775
        %v1342 = vunpack.c.l.b16 %v776
        %v1343 = vunpack.c.h.b16 %v776
        %v1344 = vunpack.c.l.b16 %v777
        %v1345 = vunpack.c.l.b16 %v778
        %v1346 = vunpack.c.h.b16 %v778
        %v1347 = vunpack.c.l.b16 %v779
        %v1348 = vunpack.c.l.b16 %v780
        %v1349 = vunpack.c.h.b16 %v780
        %v1350 = vunpack.c.l.b16 %v781
        %v1351 = vunpack.c.l.b16 %v782
        %v1352 = vunpack.c.h.b16 %v782
        %v1353 = vunpack.c.l.b16 %v783
        %v1354 = vunpack.c.l.b16 %v784
        %v1355 = vunpack.c.h.b16 %v784
        %v1356 = vunpack.c.l.b16 %v785
        %v1357 = vunpack.c.l.b16 %v786
        %v1358 = vunpack.c.h.b16 %v786
        %v1359 = vunpack.c.l.b16 %v787
        %v1360 = vunpack.c.l.b16 %v788
        %v1361 = vunpack.c.h.b16 %v788
        %v1362 = vunpack.c.l.b16 %v789
        %v1363 = vunpack.c.l.b16 %v790
        %v1364 = vunpack.c.h.b16 %v790
        %v1365 = vunpack.c.l.b16 %v791
        %v1366 = vunpack.c.l.b16 %v792
        %v1367 = vunpack.c.h.b16 %v792
        %v1368 = vunpack.c.l.b16 %v793
        %v1369 = vunpack.c.l.b16 %v794
        %v1370 = vunpack.c.h.b16 %v794
        %v1371 = vunpack.c.l.b16 %v795
        %v1372 = vunpack.c.l.b16 %v796
        %v1373 = vunpack.c.h.b16 %v796
        %v1374 = vunpack.c.l.b16 %v797
        %v1375 = vunpack.c.l.b16 %v798
        %v1376 = vunpack.c.h.b16 %v798
        %v1377 = vunpack.c.l.b16 %v799
        %v1378 = vunpack.c.l.b16 %v800
        %v1379 = vunpack.c.h.b16 %v800
        %v1380 = vunpack.c.l.b16 %v801
        %v1381 = vunpack.c.l.b16 %v802
        %v1382 = vunpack.c.h.b16 %v802
        %v1383 = vunpack.c.l.b16 %v803
        %v1384 = vunpack.c.l.b16 %v804
        %v1385 = vunpack.c.h.b16 %v804
        %v1386 = vunpack.c.l.b16 %v805
        %v1387 = vunpack.c.l.b16 %v806
        %v1388 = vunpack.c.h.b16 %v806
        %v1389 = vunpack.c.l.b16 %v807
        %v1390 = vunpack.c.l.b16 %v808
        %v1391 = vunpack.c.h.b16 %v808
        %v1392 = vunpack.c.l.b16 %v809
        %v1393 = vunpack.c.l.b16 %v810
        %v1394 = vunpack.c.h.b16 %v810
        %v1395 = vunpack.c.l.b16 %v811
        %v1396 = vunpack.c.l.b16 %v812
        %v1397 = vunpack.c.h.b16 %v812
        %v1398 = vunpack.c.l.b16 %v813
        %v1399 = vunpack.c.l.b16 %v814
        %v1400 = vunpack.c.h.b16 %v814
        %v1401 = vunpack.c.l.b16 %v815
        %v1402 = vunpack.c.l.b16 %v816
        %v1403 = vunpack.c.h.b16 %v816
        %v1404 = vunpack.c.l.b16 %v817
        %v1405 = vunpack.c.l.b16 %v818
        %v1406 = vunpack.c.h.b16 %v818
        %v1407 = vunpack.c.l.b16 %v819
        %v1408 = vunpack.c.l.b16 %v820
        %v1409 = vunpack.c.h.b16 %v820
        %v1410 = vunpack.c.l.b16 %v821
        %v1411 = vunpack.c.l.b16 %v822
        %v1412 = vunpack.c.h.b16 %v822
        %v1413 = vunpack.c.l.b16 %v823
        %v1414 = vunpack.c.l.b16 %v824
        %v1415 = vunpack.c.h.b16 %v824
        %v1416 = vunpack.c.l.b16 %v825
        %v1417 = vunpack.c.l.b16 %v826
        %v1418 = vunpack.c.h.b16 %v826
        %v1419 = vunpack.c.l.b16 %v827
        %v1420 = vunpack.c.l.b16 %v828
        %v1421 = vunpack.c.h.b16 %v828
        %v1422 = vunpack.c.l.b16 %v829
        %v1423 = vunpack.c.l.b16 %v830
        %v1424 = vunpack.c.h.b16 %v830
        %v1425 = vunpack.c.l.b16 %v831
        %v1426 = vunpack.c.l.b16 %v832
        %v1427 = vunpack.c.h.b16 %v832
        %v1428 = vunpack.c.l.b16 %v833
        %v1429 = vunpack.c.l.b16 %v834
        %v1430 = vunpack.c.h.b16 %v834
        %v1431 = vunpack.c.l.b16 %v835
        %v1432 = vunpack.c.l.b16 %v836
        %v1433 = vunpack.c.h.b16 %v836
        %v1434 = vunpack.c.l.b16 %v837
        %v1435 = vunpack.c.l.b16 %v838
        %v1436 = vunpack.c.h.b16 %v838
        %v1437 = vunpack.c.l.b16 %v839
        %v1438 = vunpack.c.l.b16 %v840
        %v1439 = vunpack.c.h.b16 %v840
        %v1440 = vunpack.c.l.b16 %v841
        %v1441 = vunpack.c.l.b16 %v842
        %v1442 = vunpack.c.h.b16 %v842
        %v1443 = vunpack.c.l.b16 %v843
        %v1444 = vunpack.c.l.b16 %v844
        %v1445 = vunpack.c.h.b16 %v844
        %v1446 = vunpack.c.l.b16 %v845
        %v1447 = vunpack.c.l.b16 %v846
        %v1448 = vunpack.c.h.b16 %v846
        %v1449 = vunpack.c.l.b16 %v847
        %v1450 = vunpack.c.l.b16 %v848
        %v1451 = vunpack.c.h.b16 %v848
        %v1452 = vunpack.c.l.b16 %v849
        %v1453 = vunpack.c.l.b16 %v850
        %v1454 = vunpack.c.h.b16 %v850
        %v1455 = vunpack.c.l.b16 %v851
        %v1456 = vunpack.c.l.b16 %v852
        %v1457 = vunpack.c.h.b16 %v852
        %v1458 = vunpack.c.l.b16 %v853
        %v1459 = vunpack.c.l.b16 %v854
        %v1460 = vunpack.c.h.b16 %v854
        %v1461 = vunpack.c.l.b16 %v855
        %v1462 = vunpack.c.l.b16 %v856
        %v1463 = vunpack.c.h.b16 %v856
        %v1464 = vunpack.c.l.b16 %v857
        %v1465 = vunpack.c.l.b16 %v858
        %v1466 = vunpack.c.h.b16 %v858
        %v1467 = vunpack.c.l.b16 %v859
        %v1468 = vunpack.c.l.b16 %v860
        %v1469 = vunpack.c.h.b16 %v860
        %v1470 = vunpack.c.l.b16 %v861
        %v1471 = vunpack.c.l.b16 %v862
        %v1472 = vunpack.c.h.b16 %v862
        %v1473 = vunpack.c.l.b16 %v863
        %v1474 = vunpack.c.l.b16 %v864
        %v1475 = vunpack.c.h.b16 %v864
        %v1476 = vunpack.c.l.b16 %v865
        %v1477 = vunpack.c.l.b16 %v866
        %v1478 = vunpack.c.h.b16 %v866
        %v1479 = vunpack.c.l.b16 %v867
        %v1480 = vunpack.c.l.b16 %v868
        %v1481 = vunpack.c.h.b16 %v868
        %v1482 = vunpack.c.l.b16 %v869
        %v1483 = vunpack.c.l.b16 %v870
        %v1484 = vunpack.c.h.b16 %v870
        %v1485 = vunpack.c.l.b16 %v871
        %v1486 = vunpack.c.l.b16 %v872
        %v1487 = vunpack.c.h.b16 %v872
        %v1488 = vunpack.c.l.b16 %v873
        %v1489 = vunpack.c.l.b16 %v874
        %v1490 = vunpack.c.h.b16 %v874
        %v1491 = vunpack.c.l.b16 %v875
        %v1492 = vunpack.c.l.b16 %v876
        %v1493 = vunpack.c.h.b16 %v876
        %v1494 = vunpack.c.l.b16 %v877
        %v1495 = vunpack.c.l.b16 %v878
        %v1496 = vunpack.c.h.b16 %v878
        %v1497 = vunpack.c.l.b16 %v879
        %v1498 = vunpack.c.l.b16 %v880
        %v1499 = vunpack.c.h.b16 %v880
        %v1500 = vunpack.c.l.b16 %v881
        %v1501 = vunpack.c.l.b16 %v882
        %v1502 = vunpack.c.h.b16 %v882
        %v1503 = vunpack.c.l.b16 %v883
        %v1504 = vunpack.c.l.b16 %v884
        %v1505 = vunpack.c.h.b16 %v884
        %v1506 = vunpack.c.l.b16 %v885
        %v1507 = vunpack.c.l.b16 %v886
        %v1508 = vunpack.c.h.b16 %v886
        %v1509 = vunpack.c.l.b16 %v887
        %v1510 = vunpack.c.l.b16 %v888
        %v1511 = vunpack.c.h.b16 %v888
        %v1512 = vunpack.c.l.b16 %v889
        %v1513 = vunpack.c.l.b16 %v890
        %v1514 = vunpack.c.h.b16 %v890
        %v1515 = vunpack.c.l.b16 %v891
        %v1516 = vunpack.c.l.b16 %v892
        %v1517 = vunpack.c.h.b16 %v892
        %v1518 = vunpack.c.l.b16 %v893
        %v1519 = vunpack.c.l.b16 %v894
        %v1520 = vunpack.c.h.b16 %v894
        %v1521 = vunpack.c.l.b16 %v895
        %v1522 = vunpack.c.l.b16 %v896
        %v1523 = vunpack.c.h.b16 %v896
        %v1524 = vunpack.c.l.b16 %v897
        %v1525 = vunpack.c.l.b16 %v898
        %v1526 = vunpack.c.h.b16 %v898
        %v1527 = vunpack.c.l.b16 %v899
        %v1528 = vunpack.c.l.b16 %v900
        %v1529 = vunpack.c.h.b16 %v900
        %v1530 = vunpack.c.l.b16 %v901
        %v1531 = vunpack.c.l.b16 %v902
        %v1532 = vunpack.c.h.b16 %v902
        %v1533 = vunpack.c.l.b16 %v903
        %v1534 = vunpack.c.l.b16 %v904
        %v1535 = vunpack.c.h.b16 %v904
        %v1536 = vunpack.c.l.b16 %v905
        %v1537 = vunpack.c.l.b16 %v906
        %v1538 = vunpack.c.h.b16 %v906
        %v1539 = vunpack.c.l.b16 %v907
        %v1540 = vunpack.c.l.b16 %v908
        %v1541 = vunpack.c.h.b16 %v908
        %v1542 = vunpack.c.l.b16 %v909
        %v1543 = vunpack.c.l.b16 %v910
        %v1544 = vunpack.c.h.b16 %v910
        %v1545 = vunpack.c.l.b16 %v911
        %v1546 = vunpack.c.l.b16 %v912
        %v1547 = vunpack.c.h.b16 %v912
        %v1548 = vunpack.c.l.b16 %v913
        %v1549 = vunpack.c.l.b16 %v914
        %v1550 = vunpack.c.h.b16 %v914
        %v1551 = vunpack.c.l.b16 %v915
        %v1552 = vunpack.c.l.b16 %v916
        %v1553 = vunpack.c.h.b16 %v916
        %v1554 = vunpack.c.l.b16 %v917
        %v1555 = vunpack.c.l.b16 %v918
        %v1556 = vunpack.c.h.b16 %v918
        %v1557 = vunpack.c.l.b16 %v919
        %v1558 = vunpack.c.l.b16 %v920
        %v1559 = vunpack.c.h.b16 %v920
        %v1560 = vunpack.c.l.b16 %v921
        %v1561 = vunpack.c.l.b16 %v922
        %v1562 = vunpack.c.h.b16 %v922
        %v1563 = vunpack.c.l.b16 %v923
        %v1564 = vunpack.c.l.b16 %v924
        %v1565 = vunpack.c.h.b16 %v924
        %v1566 = vunpack.c.l.b16 %v925
        %v1567 = vunpack.c.l.b16 %v926
        %v1568 = vunpack.c.h.b16 %v926
        %v1569 = vunpack.c.l.b16 %v927
        %v1570 = vunpack.c.l.b16 %v928
        %v1571 = vunpack.c.h.b16 %v928
        %v1572 = vunpack.c.l.b16 %v929
        %v1573 = vunpack.c.l.b16 %v930
        %v1574 = vunpack.c.h.b16 %v930
        %v1575 = vunpack.c.l.b16 %v931
        %v1576 = vunpack.c.l.b16 %v932
        %v1577 = vunpack.c.h.b16 %v932
        %v1578 = vunpack.c.l.b16 %v933
        %v1579 = vunpack.c.l.b16 %v934
        %v1580 = vunpack.c.h.b16 %v934
        %v1581 = vunpack.c.l.b16 %v935
        %v1582 = vunpack.c.l.b16 %v936
        %v1583 = vunpack.c.h.b16 %v936
        %v1584 = vunpack.c.l.b16 %v937
        %v1585 = vunpack.c.l.b16 %v938
        %v1586 = vunpack.c.h.b16 %v938
        %v1587 = vunpack.c.l.b16 %v939
        %v1588 = vunpack.c.l.b16 %v940
        %v1589 = vunpack.c.h.b16 %v940
        %v1590 = vunpack.c.l.b16 %v941
        %v1591 = vunpack.c.l.b16 %v942
        %v1592 = vunpack.c.h.b16 %v942
        %v1593 = vunpack.c.l.b16 %v943
        %v1594 = vunpack.c.l.b16 %v944
        %v1595 = vunpack.c.h.b16 %v944
        %v1596 = vunpack.c.l.b16 %v945
        %v1597 = vunpack.c.l.b16 %v946
        %v1598 = vunpack.c.h.b16 %v946
        %v1599 = vunpack.c.l.b16 %v947
        %v1600 = vunpack.c.l.b16 %v948
        %v1601 = vunpack.c.h.b16 %v948
        %v1602 = vunpack.c.l.b16 %v949
        %v1603 = vunpack.c.l.b16 %v950
        %v1604 = vunpack.c.h.b16 %v950
        %v1605 = vunpack.c.l.b16 %v951
        %v1606 = vunpack.c.l.b16 %v952
        %v1607 = vunpack.c.h.b16 %v952
        %v1608 = vunpack.c.l.b16 %v953
        %v1609 = vunpack.c.l.b16 %v954
        %v1610 = vunpack.c.h.b16 %v954
        %v1611 = vunpack.c.l.b16 %v955
        %v1612 = vunpack.c.l.b16 %v956
        %v1613 = vunpack.c.h.b16 %v956
        %v1614 = vunpack.c.l.b16 %v957
        %v1615 = vunpack.c.l.b16 %v958
        %v1616 = vunpack.c.h.b16 %v958
        %v1617 = vunpack.c.l.b16 %v959
        %v1618 = vunpack.c.l.b16 %v960
        %v1619 = vunpack.c.h.b16 %v960
        %v1620 = vunpack.c.l.b16 %v961
        %v1621 = vunpack.c.l.b16 %v962
        %v1622 = vunpack.c.h.b16 %v962
        %v1623 = vunpack.c.l.b16 %v963
        %v1624 = vpack.c.b16 %v1231, %v1228
        %v1625 = vpack.c.b16 %v1232, %v1229
        %v1626 = vpack.c.b16 %v1233, %v1230
        %v1627 = vpack.c.b16 %v1237, %v1234
        %v1628 = vpack.c.b16 %v1238, %v1235
        %v1629 = vpack.c.b16 %v1239, %v1236
        %v1630 = vpack.c.b16 %v1243, %v1240
        %v1631 = vpack.c.b16 %v1244, %v1241
        %v1632 = vpack.c.b16 %v1245, %v1242
        %v1633 = vpack.c.b16 %v1249, %v1246
        %v1634 = vpack.c.b16 %v1250, %v1247
        %v1635 = vpack.c.b16 %v1251, %v1248
        %v1636 = vpack.c.b16 %v1255, %v1252
        %v1637 = vpack.c.b16 %v1256, %v1253
        %v1638 = vpack.c.b16 %v1257, %v1254
        %v1639 = vpack.c.b16 %v1261, %v1258
        %v1640 = vpack.c.b16 %v1262, %v1259
        %v1641 = vpack.c.b16 %v1263, %v1260
        %v1642 = vpack.c.b16 %v1267, %v1264
        %v1643 = vpack.c.b16 %v1268, %v1265
        %v1644 = vpack.c.b16 %v1269, %v1266
        %v1645 = vpack.c.b16 %v1273, %v1270
        %v1646 = vpack.c.b16 %v1274, %v1271
        %v1647 = vpack.c.b16 %v1275, %v1272
        %v1648 = vpack.c.b16 %v1279, %v1276
        %v1649 = vpack.c.b16 %v1280, %v1277
        %v1650 = vpack.c.b16 %v1281, %v1278
        %v1651 = vpack.c.b16 %v1285, %v1282
        %v1652 = vpack.c.b16 %v1286, %v1283
        %v1653 = vpack.c.b16 %v1287, %v1284
        %v1654 = vpack.c.b16 %v1291, %v1288
        %v1655 = vpack.c.b16 %v1292, %v1289
        %v1656 = vpack.c.b16 %v1293, %v1290
        %v1657 = vpack.c.b16 %v1297, %v1294
        %v1658 = vpack.c.b16 %v1298, %v1295
        %v1659 = vpack.c.b16 %v1299, %v1296
        %v1660 = vpack.c.b16 %v1303, %v1300
        %v1661 = vpack.c.b16 %v1304, %v1301
        %v1662 = vpack.c.b16 %v1305, %v1302
        %v1663 = vpack.c.b16 %v1309, %v1306
        %v1664 = vpack.c.b16 %v1310, %v1307
        %v1665 = vpack.c.b16 %v1311, %v1308
        %v1666 = vpack.c.b16 %v1315, %v1312
        %v1667 = vpack.c.b16 %v1316, %v1313
        %v1668 = vpack.c.b16 %v1317, %v1314
        %v1669 = vpack.c.b16 %v1321, %v1318
        %v1670 = vpack.c.b16 %v1322, %v1319
        %v1671 = vpack.c.b16 %v1323, %v1320
        %v1672 = vpack.c.b16 %v1327, %v1324
        %v1673 = vpack.c.b16 %v1328, %v1325
        %v1674 = vpack.c.b16 %v1329, %v1326
        %v1675 = vpack.c.b16 %v1333, %v1330
        %v1676 = vpack.c.b16 %v1334, %v1331
        %v1677 = vpack.c.b16 %v1335, %v1332
        %v1678 = vpack.c.b16 %v1339, %v1336
        %v1679 = vpack.c.b16 %v1340, %v1337
        %v1680 = vpack.c.b16 %v1341, %v1338
        %v1681 = vpack.c.b16 %v1345, %v1342
        %v1682 = vpack.c.b16 %v1346, %v1343
        %v1683 = vpack.c.b16 %v1347, %v1344
        %v1684 = vpack.c.b16 %v1351, %v1348
        %v1685 = vpack.c.b16 %v1352, %v1349
        %v1686 = vpack.c.b16 %v1353, %v1350
        %v1687 = vpack.c.b16 %v1357, %v1354
        %v1688 = vpack.c.b16 %v1358, %v1355
        %v1689 = vpack.c.b16 %v1359, %v1356
        %v1690 = vpack.c.b16 %v1363, %v1360
        %v1691 = vpack.c.b16 %v1364, %v1361
        %v1692 = vpack.c.b16 %v1365, %v1362
        %v1693 = vpack.c.b16 %v1369, %v1366
        %v1694 = vpack.c.b16 %v1370, %v1367
        %v1695 = vpack.c.b16 %v1371, %v1368
        %v1696 = vpack.c.b16 %v1375, %v1372
        %v1697 = vpack.c.b16 %v1376, %v1373
        %v1698 = vpack.c.b16 %v1377, %v1374
        %v1699 = vpack.c.b16 %v1381, %v1378
        %v1700 = vpack.c.b16 %v1382, %v1379
        %v1701 = vpack.c.b16 %v1383, %v1380
        %v1702 = vpack.c.b16 %v1387, %v1384
        %v1703 = vpack.c.b16 %v1388, %v1385
        %v1704 = vpack.c.b16 %v1389, %v1386
        %v1705 = vpack.c.b16 %v1393, %v1390
        %v1706 = vpack.c.b16 %v1394, %v1391
        %v1707 = vpack.c.b16 %v1395, %v1392
        %v1708 = vpack.c.b16 %v1399, %v1396
        %v1709 = vpack.c.b16 %v1400, %v1397
        %v1710 = vpack.c.b16 %v1401, %v1398
        %v1711 = vpack.c.b16 %v1405, %v1402
        %v1712 = vpack.c.b16 %v1406, %v1403
        %v1713 = vpack.c.b16 %v1407, %v1404
        %v1714 = vpack.c.b16 %v1411, %v1408
        %v1715 = vpack.c.b16 %v1412, %v1409
        %v1716 = vpack.c.b16 %v1413, %v1410
        %v1717 = vpack.c.b16 %v1417, %v1414
        %v1718 = vpack.c.b16 %v1418, %v1415
        %v1719 = vpack.c.b16 %v1419, %v1416
        %v1720 = vpack.c.b16 %v1423, %v1420
        %v1721 = vpack.c.b16 %v1424, %v1421
        %v1722 = vpack.c.b16 %v1425, %v1422
        %v1723 = vpack.c.b16 %v1429, %v1426
        %v1724 = vpack.c.b16 %v1430, %v1427
        %v1725 = vpack.c.b16 %v1431, %v1428
        %v1726 = vpack.c.b16 %v1435, %v1432
        %v1727 = vpack.c.b16 %v1436, %v1433
        %v1728 = vpack.c.b16 %v1437, %v1434
        %v1729 = vpack.c.b16 %v1441, %v1438
        %v1730 = vpack.c.b16 %v1442, %v1439
        %v1731 = vpack.c.b16 %v1443, %v1440
        %v1732 = vpack.c.b16 %v1447, %v1444
        %v1733 = vpack.c.b16 %v1448, %v1445
        %v1734 = vpack.c.b16 %v1449, %v1446
        %v1735 = vpack.c.b16 %v1453, %v1450
        %v1736 = vpack.c.b16 %v1454, %v1451
        %v1737 = vpack.c.b16 %v1455, %v1452
        %v1738 = vpack.c.b16 %v1459, %v1456
        %v1739 = vpack.c.b16 %v1460, %v1457
        %v1740 = vpack.c.b16 %v1461, %v1458
        %v1741 = vpack.c.b16 %v1465, %v1462
        %v1742 = vpack.c.b16 %v1466, %v1463
        %v1743 = vpack.c.b16 %v1467, %v1464
        %v1744 = vpack.c.b16 %v1471, %v1468
        %v1745 = vpack.c.b16 %v1472, %v1469
        %v1746 = vpack.c.b16 %v1473, %v1470
        %v1747 = vpack.c.b16 %v1477, %v1474
        %v1748 = vpack.c.b16 %v1478, %v1475
        %v1749 = vpack.c.b16 %v1479, %v1476
        %v1750 = vpack.c.b16 %v1483, %v1480
        %v1751 = vpack.c.b16 %v1484, %v1481
        %v1752 = vpack.c.b16 %v1485, %v1482
        %v1753 = vpack.c.b16 %v1489, %v1486
        %v1754 = vpack.c.b16 %v1490, %v1487
        %v1755 = vpack.c.b16 %v1491, %v1488
        %v1756 = vpack.c.b16 %v1495, %v1492
        %v1757 = vpack.c.b16 %v1496, %v1493
        %v1758 = vpack.c.b16 %v1497, %v1494
        %v1759 = vpack.c.b16 %v1501, %v1498
        %v1760 = vpack.c.b16 %v1502, %v1499
        %v1761 = vpack.c.b16 %v1503, %v1500
        %v1762 = vpack.c.b16 %v1507, %v1504
        %v1763 = vpack.c.b16 %v1508, %v1505
        %v1764 = vpack.c.b16 %v1509, %v1506
        %v1765 = vpack.c.b16 %v1513, %v1510
        %v1766 = vpack.c.b16 %v1514, %v1511
        %v1767 = vpack.c.b16 %v1515, %v1512
        %v1768 = vpack.c.b16 %v1519, %v1516
        %v1769 = vpack.c.b16 %v1520, %v1517
        %v1770 = vpack.c.b16 %v1521, %v1518
        %v1771 = vpack.c.b16 %v1525, %v1522
        %v1772 = vpack.c.b16 %v1526, %v1523
        %v1773 = vpack.c.b16 %v1527, %v1524
        %v1774 = vpack.c.b16 %v1531, %v1528
        %v1775 = vpack.c.b16 %v1532, %v1529
        %v1776 = vpack.c.b16 %v1533, %v1530
        %v1777 = vpack.c.b16 %v1537, %v1534
        %v1778 = vpack.c.b16 %v1538, %v1535
        %v1779 = vpack.c.b16 %v1539, %v1536
        %v1780 = vpack.c.b16 %v1543, %v1540
        %v1781 = vpack.c.b16 %v1544, %v1541
        %v1782 = vpack.c.b16 %v1545, %v1542
        %v1783 = vpack.c.b16 %v1549, %v1546
        %v1784 = vpack.c.b16 %v1550, %v1547
        %v1785 = vpack.c.b16 %v1551, %v1548
        %v1786 = vpack.c.b16 %v1555, %v1552
        %v1787 = vpack.c.b16 %v1556, %v1553
        %v1788 = vpack.c.b16 %v1557, %v1554
        %v1789 = vpack.c.b16 %v1561, %v1558
        %v1790 = vpack.c.b16 %v1562, %v1559
        %v1791 = vpack.c.b16 %v1563, %v1560
        %v1792 = vpack.c.b16 %v1567, %v1564
        %v1793 = vpack.c.b16 %v1568, %v1565
        %v1794 = vpack.c.b16 %v1569, %v1566
        %v1795 = vpack.c.b16 %v1573, %v1570
        %v1796 = vpack.c.b16 %v1574, %v1571
        %v1797 = vpack.c.b16 %v1575, %v1572
        %v1798 = vpack.c.b16 %v1579, %v1576
        %v1799 = vpack.c.b16 %v1580, %v1577
        %v1800 = vpack.c.b16 %v1581, %v1578
        %v1801 = vpack.c.b16 %v1585, %v1582
        %v1802 = vpack.c.b16 %v1586, %v1583
        %v1803 = vpack.c.b16 %v1587, %v1584
        %v1804 = vpack.c.b16 %v1591, %v1588
        %v1805 = vpack.c.b16 %v1592, %v1589
        %v1806 = vpack.c.b16 %v1593, %v1590
        %v1807 = vpack.c.b16 %v1597, %v1594
        %v1808 = vpack.c.b16 %v1598, %v1595
        %v1809 = vpack.c.b16 %v1599, %v1596
        %v1810 = vpack.c.b16 %v1603, %v1600
        %v1811 = vpack.c.b16 %v1604, %v1601
        %v1812 = vpack.c.b16 %v1605, %v1602
        %v1813 = vpack.c.b16 %v1609, %v1606
        %v1814 = vpack.c.b16 %v1610, %v1607
        %v1815 = vpack.c.b16 %v1611, %v1608
        %v1816 = vpack.c.b16 %v1615, %v1612
        %v1817 = vpack.c.b16 %v1616, %v1613
        %v1818 = vpack.c.b16 %v1617, %v1614
        %v1819 = vpack.c.b16 %v1621, %v1618
        %v1820 = vpack.c.b16 %v1622, %v1619
        %v1821 = vpack.c.b16 %v1623, %v1620
        %vm2017 = vcmask 236544
        %v2019 = vsel %vm2017, %v699, 0
        %vm2021 = vcmask 1046528
        %v2022 = vsel %vm427, 4294967295, 65535
        %v2023 = vsel %vm2021, %v2022, 0
        %v2025 = vand.u32 %v1819, %v2023
        %v2028 = vand.u32 %v1820, %v2023
        %v2031 = vand.u32 %v1821, %v2023
        %2033 = vmatpush.bf16.msra.mxu0 %v1645
        %2034 = vmatpush.bf16.msra.mxu0 %v1642
        %2035 = vmatpush.bf16.msra.mxu0 %v1639
        %2036 = vmatpush.bf16.msra.mxu0 %v1636
        %2037 = vmatpush.bf16.msra.mxu0 %v1633
        %2038 = vmatpush.bf16.msra.mxu0 %v1630
        %2039 = vmatpush.bf16.msra.mxu0 %v1627
        %2040 = vmatpush.bf16.msra.mxu0 %v1624
        %2041 = vmatmul.bf16.gmra.mxu0 %v691
        %v2042 = vpop.f32.mrf.mxu0
        %v2043 = vadd.f32 0.0, %v2042
        %v2044 = vpop.f32.mrf.mxu0
        %2045 = vdwg.mxu0
        %2046 = vmatpush.bf16.msra.mxu0 %v1669
        %2047 = vmatpush.bf16.msra.mxu0 %v1666
        %2048 = vmatpush.bf16.msra.mxu0 %v1663
        %2049 = vmatpush.bf16.msra.mxu0 %v1660
        %2050 = vmatpush.bf16.msra.mxu0 %v1657
        %2051 = vmatpush.bf16.msra.mxu0 %v1654
        %2052 = vmatpush.bf16.msra.mxu0 %v1651
        %2053 = vmatpush.bf16.msra.mxu0 %v1648
        %2054 = vmatmul.bf16.gmra.mxu0 %v692
        %v2055 = vpop.f32.mrf.mxu0
        %v2056 = vadd.f32 %v2043, %v2055
        %v2057 = vpop.f32.mrf.mxu0
        %2058 = vdwg.mxu0
        %2059 = vmatpush.bf16.msra.mxu0 %v1693
        %2060 = vmatpush.bf16.msra.mxu0 %v1690
        %2061 = vmatpush.bf16.msra.mxu0 %v1687
        %2062 = vmatpush.bf16.msra.mxu0 %v1684
        %2063 = vmatpush.bf16.msra.mxu0 %v1681
        %2064 = vmatpush.bf16.msra.mxu0 %v1678
        %2065 = vmatpush.bf16.msra.mxu0 %v1675
        %2066 = vmatpush.bf16.msra.mxu0 %v1672
        %2067 = vmatmul.bf16.gmra.mxu0 %v693
        %v2068 = vpop.f32.mrf.mxu0
        %v2069 = vadd.f32 %v2056, %v2068
        %v2070 = vpop.f32.mrf.mxu0
        %2071 = vdwg.mxu0
        %2072 = vmatpush.bf16.msra.mxu0 %v1717
        %2073 = vmatpush.bf16.msra.mxu0 %v1714
        %2074 = vmatpush.bf16.msra.mxu0 %v1711
        %2075 = vmatpush.bf16.msra.mxu0 %v1708
        %2076 = vmatpush.bf16.msra.mxu0 %v1705
        %2077 = vmatpush.bf16.msra.mxu0 %v1702
        %2078 = vmatpush.bf16.msra.mxu0 %v1699
        %2079 = vmatpush.bf16.msra.mxu0 %v1696
        %2080 = vmatmul.bf16.gmra.mxu0 %v694
        %v2081 = vpop.f32.mrf.mxu0
        %v2082 = vadd.f32 %v2069, %v2081
        %v2083 = vpop.f32.mrf.mxu0
        %2084 = vdwg.mxu0
        %2085 = vmatpush.bf16.msra.mxu0 %v1741
        %2086 = vmatpush.bf16.msra.mxu0 %v1738
        %2087 = vmatpush.bf16.msra.mxu0 %v1735
        %2088 = vmatpush.bf16.msra.mxu0 %v1732
        %2089 = vmatpush.bf16.msra.mxu0 %v1729
        %2090 = vmatpush.bf16.msra.mxu0 %v1726
        %2091 = vmatpush.bf16.msra.mxu0 %v1723
        %2092 = vmatpush.bf16.msra.mxu0 %v1720
        %2093 = vmatmul.bf16.gmra.mxu0 %v695
        %v2094 = vpop.f32.mrf.mxu0
        %v2095 = vadd.f32 %v2082, %v2094
        %v2096 = vpop.f32.mrf.mxu0
        %2097 = vdwg.mxu0
        %2098 = vmatpush.bf16.msra.mxu0 %v1765
        %2099 = vmatpush.bf16.msra.mxu0 %v1762
        %2100 = vmatpush.bf16.msra.mxu0 %v1759
        %2101 = vmatpush.bf16.msra.mxu0 %v1756
        %2102 = vmatpush.bf16.msra.mxu0 %v1753
        %2103 = vmatpush.bf16.msra.mxu0 %v1750
        %2104 = vmatpush.bf16.msra.mxu0 %v1747
        %2105 = vmatpush.bf16.msra.mxu0 %v1744
        %2106 = vmatmul.bf16.gmra.mxu0 %v696
        %v2107 = vpop.f32.mrf.mxu0
        %v2108 = vadd.f32 %v2095, %v2107
        %v2109 = vpop.f32.mrf.mxu0
        %2110 = vdwg.mxu0
        %2111 = vmatpush.bf16.msra.mxu0 %v1789
        %2112 = vmatpush.bf16.msra.mxu0 %v1786
        %2113 = vmatpush.bf16.msra.mxu0 %v1783
        %2114 = vmatpush.bf16.msra.mxu0 %v1780
        %2115 = vmatpush.bf16.msra.mxu0 %v1777
        %2116 = vmatpush.bf16.msra.mxu0 %v1774
        %2117 = vmatpush.bf16.msra.mxu0 %v1771
        %2118 = vmatpush.bf16.msra.mxu0 %v1768
        %2119 = vmatmul.bf16.gmra.mxu0 %v697
        %v2120 = vpop.f32.mrf.mxu0
        %v2121 = vadd.f32 %v2108, %v2120
        %v2122 = vpop.f32.mrf.mxu0
        %2123 = vdwg.mxu0
        %2124 = vmatpush.bf16.msra.mxu0 %v1813
        %2125 = vmatpush.bf16.msra.mxu0 %v1810
        %2126 = vmatpush.bf16.msra.mxu0 %v1807
        %2127 = vmatpush.bf16.msra.mxu0 %v1804
        %2128 = vmatpush.bf16.msra.mxu0 %v1801
        %2129 = vmatpush.bf16.msra.mxu0 %v1798
        %2130 = vmatpush.bf16.msra.mxu0 %v1795
        %2131 = vmatpush.bf16.msra.mxu0 %v1792
        %2132 = vmatmul.bf16.gmra.mxu0 %v698
        %v2133 = vpop.f32.mrf.mxu0
        %v2134 = vadd.f32 %v2121, %v2133
        %v2135 = vpop.f32.mrf.mxu0
        %2136 = vdwg.mxu0
        %2137 = vmatpush.bf16.msra.mxu0 0
        %2138 = vmatpush.bf16.msra.mxu0 0
        %2139 = vmatpush.bf16.msra.mxu0 0
        %2140 = vmatpush.bf16.msra.mxu0 0
        %2141 = vmatpush.bf16.msra.mxu0 0
        %2142 = vmatpush.bf16.msra.mxu0 0
        %2143 = vmatpush.bf16.msra.mxu0 %v2025
        %2144 = vmatpush.bf16.msra.mxu0 %v1816
        %2145 = vmatmul.bf16.gmra.mxu0 %v2019
        %v2146 = vpop.f32.mrf.mxu0
        %v2147 = vadd.f32 %v2134, %v2146
        %v2148 = vpop.f32.mrf.mxu0
        %2149 = vdwg.mxu0
        %2150 = vmatpush.bf16.msra.mxu0 %v1646
        %2151 = vmatpush.bf16.msra.mxu0 %v1643
        %2152 = vmatpush.bf16.msra.mxu0 %v1640
        %2153 = vmatpush.bf16.msra.mxu0 %v1637
        %2154 = vmatpush.bf16.msra.mxu0 %v1634
        %2155 = vmatpush.bf16.msra.mxu0 %v1631
        %2156 = vmatpush.bf16.msra.mxu0 %v1628
        %2157 = vmatpush.bf16.msra.mxu0 %v1625
        %2158 = vmatmul.bf16.gmra.mxu0 %v691
        %v2159 = vpop.f32.mrf.mxu0
        %v2160 = vadd.f32 0.0, %v2159
        %v2161 = vpop.f32.mrf.mxu0
        %2162 = vdwg.mxu0
        %2163 = vmatpush.bf16.msra.mxu0 %v1670
        %2164 = vmatpush.bf16.msra.mxu0 %v1667
        %2165 = vmatpush.bf16.msra.mxu0 %v1664
        %2166 = vmatpush.bf16.msra.mxu0 %v1661
        %2167 = vmatpush.bf16.msra.mxu0 %v1658
        %2168 = vmatpush.bf16.msra.mxu0 %v1655
        %2169 = vmatpush.bf16.msra.mxu0 %v1652
        %2170 = vmatpush.bf16.msra.mxu0 %v1649
        %2171 = vmatmul.bf16.gmra.mxu0 %v692
        %v2172 = vpop.f32.mrf.mxu0
        %v2173 = vadd.f32 %v2160, %v2172
        %v2174 = vpop.f32.mrf.mxu0
        %2175 = vdwg.mxu0
        %2176 = vmatpush.bf16.msra.mxu0 %v1694
        %2177 = vmatpush.bf16.msra.mxu0 %v1691
        %2178 = vmatpush.bf16.msra.mxu0 %v1688
        %2179 = vmatpush.bf16.msra.mxu0 %v1685
        %2180 = vmatpush.bf16.msra.mxu0 %v1682
        %2181 = vmatpush.bf16.msra.mxu0 %v1679
        %2182 = vmatpush.bf16.msra.mxu0 %v1676
        %2183 = vmatpush.bf16.msra.mxu0 %v1673
        %2184 = vmatmul.bf16.gmra.mxu0 %v693
        %v2185 = vpop.f32.mrf.mxu0
        %v2186 = vadd.f32 %v2173, %v2185
        %v2187 = vpop.f32.mrf.mxu0
        %2188 = vdwg.mxu0
        %2189 = vmatpush.bf16.msra.mxu0 %v1718
        %2190 = vmatpush.bf16.msra.mxu0 %v1715
        %2191 = vmatpush.bf16.msra.mxu0 %v1712
        %2192 = vmatpush.bf16.msra.mxu0 %v1709
        %2193 = vmatpush.bf16.msra.mxu0 %v1706
        %2194 = vmatpush.bf16.msra.mxu0 %v1703
        %2195 = vmatpush.bf16.msra.mxu0 %v1700
        %2196 = vmatpush.bf16.msra.mxu0 %v1697
        %2197 = vmatmul.bf16.gmra.mxu0 %v694
        %v2198 = vpop.f32.mrf.mxu0
        %v2199 = vadd.f32 %v2186, %v2198
        %v2200 = vpop.f32.mrf.mxu0
        %2201 = vdwg.mxu0
        %2202 = vmatpush.bf16.msra.mxu0 %v1742
        %2203 = vmatpush.bf16.msra.mxu0 %v1739
        %2204 = vmatpush.bf16.msra.mxu0 %v1736
        %2205 = vmatpush.bf16.msra.mxu0 %v1733
        %2206 = vmatpush.bf16.msra.mxu0 %v1730
        %2207 = vmatpush.bf16.msra.mxu0 %v1727
        %2208 = vmatpush.bf16.msra.mxu0 %v1724
        %2209 = vmatpush.bf16.msra.mxu0 %v1721
        %2210 = vmatmul.bf16.gmra.mxu0 %v695
        %v2211 = vpop.f32.mrf.mxu0
        %v2212 = vadd.f32 %v2199, %v2211
        %v2213 = vpop.f32.mrf.mxu0
        %2214 = vdwg.mxu0
        %2215 = vmatpush.bf16.msra.mxu0 %v1766
        %2216 = vmatpush.bf16.msra.mxu0 %v1763
        %2217 = vmatpush.bf16.msra.mxu0 %v1760
        %2218 = vmatpush.bf16.msra.mxu0 %v1757
        %2219 = vmatpush.bf16.msra.mxu0 %v1754
        %2220 = vmatpush.bf16.msra.mxu0 %v1751
        %2221 = vmatpush.bf16.msra.mxu0 %v1748
        %2222 = vmatpush.bf16.msra.mxu0 %v1745
        %2223 = vmatmul.bf16.gmra.mxu0 %v696
        %v2224 = vpop.f32.mrf.mxu0
        %v2225 = vadd.f32 %v2212, %v2224
        %v2226 = vpop.f32.mrf.mxu0
        %2227 = vdwg.mxu0
        %2228 = vmatpush.bf16.msra.mxu0 %v1790
        %2229 = vmatpush.bf16.msra.mxu0 %v1787
        %2230 = vmatpush.bf16.msra.mxu0 %v1784
        %2231 = vmatpush.bf16.msra.mxu0 %v1781
        %2232 = vmatpush.bf16.msra.mxu0 %v1778
        %2233 = vmatpush.bf16.msra.mxu0 %v1775
        %2234 = vmatpush.bf16.msra.mxu0 %v1772
        %2235 = vmatpush.bf16.msra.mxu0 %v1769
        %2236 = vmatmul.bf16.gmra.mxu0 %v697
        %v2237 = vpop.f32.mrf.mxu0
        %v2238 = vadd.f32 %v2225, %v2237
        %v2239 = vpop.f32.mrf.mxu0
        %2240 = vdwg.mxu0
        %2241 = vmatpush.bf16.msra.mxu0 %v1814
        %2242 = vmatpush.bf16.msra.mxu0 %v1811
        %2243 = vmatpush.bf16.msra.mxu0 %v1808
        %2244 = vmatpush.bf16.msra.mxu0 %v1805
        %2245 = vmatpush.bf16.msra.mxu0 %v1802
        %2246 = vmatpush.bf16.msra.mxu0 %v1799
        %2247 = vmatpush.bf16.msra.mxu0 %v1796
        %2248 = vmatpush.bf16.msra.mxu0 %v1793
        %2249 = vmatmul.bf16.gmra.mxu0 %v698
        %v2250 = vpop.f32.mrf.mxu0
        %v2251 = vadd.f32 %v2238, %v2250
        %v2252 = vpop.f32.mrf.mxu0
        %2253 = vdwg.mxu0
        %2254 = vmatpush.bf16.msra.mxu0 0
        %2255 = vmatpush.bf16.msra.mxu0 0
        %2256 = vmatpush.bf16.msra.mxu0 0
        %2257 = vmatpush.bf16.msra.mxu0 0
        %2258 = vmatpush.bf16.msra.mxu0 0
        %2259 = vmatpush.bf16.msra.mxu0 0
        %2260 = vmatpush.bf16.msra.mxu0 %v2028
        %2261 = vmatpush.bf16.msra.mxu0 %v1817
        %2262 = vmatmul.bf16.gmra.mxu0 %v2019
        %v2263 = vpop.f32.mrf.mxu0
        %v2264 = vadd.f32 %v2251, %v2263
        %v2265 = vpop.f32.mrf.mxu0
        %2266 = vdwg.mxu0
        %2267 = vmatpush.bf16.msra.mxu0 %v1647
        %2268 = vmatpush.bf16.msra.mxu0 %v1644
        %2269 = vmatpush.bf16.msra.mxu0 %v1641
        %2270 = vmatpush.bf16.msra.mxu0 %v1638
        %2271 = vmatpush.bf16.msra.mxu0 %v1635
        %2272 = vmatpush.bf16.msra.mxu0 %v1632
        %2273 = vmatpush.bf16.msra.mxu0 %v1629
        %2274 = vmatpush.bf16.msra.mxu0 %v1626
        %2275 = vmatmul.bf16.gmra.mxu0 %v691
        %v2276 = vpop.f32.mrf.mxu0
        %v2277 = vadd.f32 0.0, %v2276
        %v2278 = vpop.f32.mrf.mxu0
        %2279 = vdwg.mxu0
        %2280 = vmatpush.bf16.msra.mxu0 %v1671
        %2281 = vmatpush.bf16.msra.mxu0 %v1668
        %2282 = vmatpush.bf16.msra.mxu0 %v1665
        %2283 = vmatpush.bf16.msra.mxu0 %v1662
        %2284 = vmatpush.bf16.msra.mxu0 %v1659
        %2285 = vmatpush.bf16.msra.mxu0 %v1656
        %2286 = vmatpush.bf16.msra.mxu0 %v1653
        %2287 = vmatpush.bf16.msra.mxu0 %v1650
        %2288 = vmatmul.bf16.gmra.mxu0 %v692
        %v2289 = vpop.f32.mrf.mxu0
        %v2290 = vadd.f32 %v2277, %v2289
        %v2291 = vpop.f32.mrf.mxu0
        %2292 = vdwg.mxu0
        %2293 = vmatpush.bf16.msra.mxu0 %v1695
        %2294 = vmatpush.bf16.msra.mxu0 %v1692
        %2295 = vmatpush.bf16.msra.mxu0 %v1689
        %2296 = vmatpush.bf16.msra.mxu0 %v1686
        %2297 = vmatpush.bf16.msra.mxu0 %v1683
        %2298 = vmatpush.bf16.msra.mxu0 %v1680
        %2299 = vmatpush.bf16.msra.mxu0 %v1677
        %2300 = vmatpush.bf16.msra.mxu0 %v1674
        %2301 = vmatmul.bf16.gmra.mxu0 %v693
        %v2302 = vpop.f32.mrf.mxu0
        %v2303 = vadd.f32 %v2290, %v2302
        %v2304 = vpop.f32.mrf.mxu0
        %2305 = vdwg.mxu0
        %2306 = vmatpush.bf16.msra.mxu0 %v1719
        %2307 = vmatpush.bf16.msra.mxu0 %v1716
        %2308 = vmatpush.bf16.msra.mxu0 %v1713
        %2309 = vmatpush.bf16.msra.mxu0 %v1710
        %2310 = vmatpush.bf16.msra.mxu0 %v1707
        %2311 = vmatpush.bf16.msra.mxu0 %v1704
        %2312 = vmatpush.bf16.msra.mxu0 %v1701
        %2313 = vmatpush.bf16.msra.mxu0 %v1698
        %2314 = vmatmul.bf16.gmra.mxu0 %v694
        %v2315 = vpop.f32.mrf.mxu0
        %v2316 = vadd.f32 %v2303, %v2315
        %v2317 = vpop.f32.mrf.mxu0
        %2318 = vdwg.mxu0
        %2319 = vmatpush.bf16.msra.mxu0 %v1743
        %2320 = vmatpush.bf16.msra.mxu0 %v1740
        %2321 = vmatpush.bf16.msra.mxu0 %v1737
        %2322 = vmatpush.bf16.msra.mxu0 %v1734
        %2323 = vmatpush.bf16.msra.mxu0 %v1731
        %2324 = vmatpush.bf16.msra.mxu0 %v1728
        %2325 = vmatpush.bf16.msra.mxu0 %v1725
        %2326 = vmatpush.bf16.msra.mxu0 %v1722
        %2327 = vmatmul.bf16.gmra.mxu0 %v695
        %v2328 = vpop.f32.mrf.mxu0
        %v2329 = vadd.f32 %v2316, %v2328
        %v2330 = vpop.f32.mrf.mxu0
        %2331 = vdwg.mxu0
        %2332 = vmatpush.bf16.msra.mxu0 %v1767
        %2333 = vmatpush.bf16.msra.mxu0 %v1764
        %2334 = vmatpush.bf16.msra.mxu0 %v1761
        %2335 = vmatpush.bf16.msra.mxu0 %v1758
        %2336 = vmatpush.bf16.msra.mxu0 %v1755
        %2337 = vmatpush.bf16.msra.mxu0 %v1752
        %2338 = vmatpush.bf16.msra.mxu0 %v1749
        %2339 = vmatpush.bf16.msra.mxu0 %v1746
        %2340 = vmatmul.bf16.gmra.mxu0 %v696
        %v2341 = vpop.f32.mrf.mxu0
        %v2342 = vadd.f32 %v2329, %v2341
        %v2343 = vpop.f32.mrf.mxu0
        %2344 = vdwg.mxu0
        %2345 = vmatpush.bf16.msra.mxu0 %v1791
        %2346 = vmatpush.bf16.msra.mxu0 %v1788
        %2347 = vmatpush.bf16.msra.mxu0 %v1785
        %2348 = vmatpush.bf16.msra.mxu0 %v1782
        %2349 = vmatpush.bf16.msra.mxu0 %v1779
        %2350 = vmatpush.bf16.msra.mxu0 %v1776
        %2351 = vmatpush.bf16.msra.mxu0 %v1773
        %2352 = vmatpush.bf16.msra.mxu0 %v1770
        %2353 = vmatmul.bf16.gmra.mxu0 %v697
        %v2354 = vpop.f32.mrf.mxu0
        %v2355 = vadd.f32 %v2342, %v2354
        %v2356 = vpop.f32.mrf.mxu0
        %2357 = vdwg.mxu0
        %2358 = vmatpush.bf16.msra.mxu0 %v1815
        %2359 = vmatpush.bf16.msra.mxu0 %v1812
        %2360 = vmatpush.bf16.msra.mxu0 %v1809
        %2361 = vmatpush.bf16.msra.mxu0 %v1806
        %2362 = vmatpush.bf16.msra.mxu0 %v1803
        %2363 = vmatpush.bf16.msra.mxu0 %v1800
        %2364 = vmatpush.bf16.msra.mxu0 %v1797
        %2365 = vmatpush.bf16.msra.mxu0 %v1794
        %2366 = vmatmul.bf16.gmra.mxu0 %v698
        %v2367 = vpop.f32.mrf.mxu0
        %v2368 = vadd.f32 %v2355, %v2367
        %v2369 = vpop.f32.mrf.mxu0
        %2370 = vdwg.mxu0
        %2371 = vmatpush.bf16.msra.mxu0 0
        %2372 = vmatpush.bf16.msra.mxu0 0
        %2373 = vmatpush.bf16.msra.mxu0 0
        %2374 = vmatpush.bf16.msra.mxu0 0
        %2375 = vmatpush.bf16.msra.mxu0 0
        %2376 = vmatpush.bf16.msra.mxu0 0
        %2377 = vmatpush.bf16.msra.mxu0 %v2031
        %2378 = vmatpush.bf16.msra.mxu0 %v1818
        %2379 = vmatmul.bf16.gmra.mxu0 %v2019
        %v2380 = vpop.f32.mrf.mxu0
        %v2381 = vadd.f32 %v2368, %v2380
        %v2382 = vpop.f32.mrf.mxu0
        %2383 = vdwg.mxu0
        %2387 = vrot.lane.b32.xlu0 %v2147, 127
        %v2388 = vpop.permute.xlu0 %2387
        %2389 = vrot.lane.b32.xlu0 %v2264, 127
        %v2390 = vpop.permute.xlu0 %2389
        %2391 = vrot.lane.b32.xlu0 %v2381, 127
        %v2392 = vpop.permute.xlu0 %2391
        %v2393 = vsel %vm610, %v2388, %v2390
        %v2394 = vsel %vm610, %v2390, %v2392
        %2398 = vrot.lane.b32.xlu0 %v2147, 126
        %v2399 = vpop.permute.xlu0 %2398
        %2400 = vrot.lane.b32.xlu0 %v2264, 126
        %v2401 = vpop.permute.xlu0 %2400
        %2402 = vrot.lane.b32.xlu0 %v2381, 126
        %v2403 = vpop.permute.xlu0 %2402
        %vm2404 = vcmask 1031168
        %v2405 = vsel %vm2404, %v2399, %v2401
        %v2406 = vsel %vm2404, %v2401, %v2403
        %2410 = vrot.lane.b32.xlu0 %v2147, 110
        %v2411 = vpop.permute.xlu0 %2410
        %2412 = vrot.lane.b32.xlu0 %v2264, 110
        %v2413 = vpop.permute.xlu0 %2412
        %2414 = vrot.lane.b32.xlu0 %v2381, 110
        %v2415 = vpop.permute.xlu0 %2414
        %vm2416 = vcmask 900096
        %v2417 = vsel %vm2416, %v2411, %v2413
        %v2418 = vsel %vm2416, %v2413, %v2415
        %2422 = vrot.lane.b32.xlu0 %v2147, 109
        %v2423 = vpop.permute.xlu0 %2422
        %2424 = vrot.lane.b32.xlu0 %v2264, 109
        %v2425 = vpop.permute.xlu0 %2424
        %2426 = vrot.lane.b32.xlu0 %v2381, 109
        %v2427 = vpop.permute.xlu0 %2426
        %vm2428 = vcmask 891904
        %v2429 = vsel %vm2428, %v2423, %v2425
        %v2430 = vsel %vm2428, %v2425, %v2427
        %2434 = vrot.lane.b32.xlu0 %v2147, 108
        %v2435 = vpop.permute.xlu0 %2434
        %2436 = vrot.lane.b32.xlu0 %v2264, 108
        %v2437 = vpop.permute.xlu0 %2436
        %2438 = vrot.lane.b32.xlu0 %v2381, 108
        %v2439 = vpop.permute.xlu0 %2438
        %vm2440 = vcmask 883712
        %v2441 = vsel %vm2440, %v2435, %v2437
        %v2442 = vsel %vm2440, %v2437, %v2439
        %2446 = vrot.lane.b32.xlu0 %v2147, 92
        %v2447 = vpop.permute.xlu0 %2446
        %2448 = vrot.lane.b32.xlu0 %v2264, 92
        %v2449 = vpop.permute.xlu0 %2448
        %2450 = vrot.lane.b32.xlu0 %v2381, 92
        %v2451 = vpop.permute.xlu0 %2450
        %vm2452 = vcmask 752640
        %v2453 = vsel %vm2452, %v2447, %v2449
        %v2454 = vsel %vm2452, %v2449, %v2451
        %2458 = vrot.lane.b32.xlu0 %v2147, 91
        %v2459 = vpop.permute.xlu0 %2458
        %2460 = vrot.lane.b32.xlu0 %v2264, 91
        %v2461 = vpop.permute.xlu0 %2460
        %2462 = vrot.lane.b32.xlu0 %v2381, 91
        %v2463 = vpop.permute.xlu0 %2462
        %vm2464 = vcmask 744448
        %v2465 = vsel %vm2464, %v2459, %v2461
        %v2466 = vsel %vm2464, %v2461, %v2463
        %2470 = vrot.lane.b32.xlu0 %v2147, 90
        %v2471 = vpop.permute.xlu0 %2470
        %2472 = vrot.lane.b32.xlu0 %v2264, 90
        %v2473 = vpop.permute.xlu0 %2472
        %2474 = vrot.lane.b32.xlu0 %v2381, 90
        %v2475 = vpop.permute.xlu0 %2474
        %vm2476 = vcmask 736256
        %v2477 = vsel %vm2476, %v2471, %v2473
        %v2478 = vsel %vm2476, %v2473, %v2475
        %v2482 = vpack.c.bf16 %v2393, %v2147
        %v2483 = vpack.c.bf16 %v2394, %v2264
        %v2484 = vpack.c.bf16 %v2392, %v2381
        %v2485 = vpack.c.bf16 %v2417, %v2405
        %v2486 = vpack.c.bf16 %v2418, %v2406
        %v2487 = vpack.c.bf16 %v2415, %v2403
        %v2488 = vpack.c.bf16 %v2441, %v2429
        %v2489 = vpack.c.bf16 %v2442, %v2430
        %v2490 = vpack.c.bf16 %v2439, %v2427
        %v2491 = vpack.c.bf16 %v2465, %v2453
        %v2492 = vpack.c.bf16 %v2466, %v2454
        %v2493 = vpack.c.bf16 %v2463, %v2451
        %v2494 = vpack.c.bf16 %v2477, %v2477
        %v2495 = vpack.c.bf16 %v2478, %v2478
        %v2496 = vpack.c.bf16 %v2475, %v2475
        %v2497 = vld [vmem:[%s4] sm:$0xf]
        %v2498 = vld [vmem:[%s4 + $0x4] sm:$0xf]
        %v2499 = vld [vmem:[%s4 + $0x8] sm:$0xf]
        %v2500 = vld [vmem:[%s4 + $0xc] sm:$0xf]
        %v2501 = vld [vmem:[%s4 + $0x10] sm:$0xf]
        %v2502 = vld [vmem:[%s4 + $0x14] sm:$0xf]
        %v2503 = vld [vmem:[%s4 + $0x18] sm:$0xf]
        %v2504 = vld [vmem:[%s4 + $0x1c] sm:$0xf]
        %v2505 = vld [vmem:[%s4 + $0x20] sm:$0xf]
        %v2506 = vld [vmem:[%s4 + $0x24] sm:$0xf]
        %v2507 = vld [vmem:[%s4 + $0x28] sm:$0xf]
        %v2508 = vld [vmem:[%s4 + $0x2c] sm:$0xf]
        %v2509 = vld [vmem:[%s4 + $0x30] sm:$0x3]
        %v2510 = vld [vmem:[%s5] sm:$0xff]
        %v2511 = vld [vmem:[%s5 + $0x8] sm:$0xff]
        %v2512 = vld [vmem:[%s5 + $0x10] sm:$0xff]
        %v2513 = vld [vmem:[%s5 + $0x18] sm:$0xff]
        %v2514 = vld [vmem:[%s5 + $0x20] sm:$0xff]
        %v2515 = vld [vmem:[%s5 + $0x28] sm:$0xff]
        %v2516 = vld [vmem:[%s5 + $0x30] sm:$0xff]
        %v2517 = vld [vmem:[%s5 + $0x38] sm:$0xff]
        %v2518 = vld [vmem:[%s5 + $0x40] sm:$0xff]
        %v2519 = vld [vmem:[%s5 + $0x48] sm:$0xff]
        %v2520 = vld [vmem:[%s5 + $0x50] sm:$0xff]
        %v2521 = vld [vmem:[%s5 + $0x58] sm:$0xff]
        %v2522 = vld [vmem:[%s5 + $0x60] sm:$0xf]
        %2524 = vset.pattern.permute.xlu0 0
        %2525 = vperm.xlu0 %2524, %v2510
        %v2526 = vpop.permute.xlu0 %2525
        %2529 = vset.pattern.permute.xlu0 0
        %2530 = vperm.xlu0 %2529, %v2511
        %v2531 = vpop.permute.xlu0 %2530
        %2534 = vset.pattern.permute.xlu0 0
        %2535 = vperm.xlu0 %2534, %v2512
        %v2536 = vpop.permute.xlu0 %2535
        %2539 = vset.pattern.permute.xlu0 0
        %2540 = vperm.xlu0 %2539, %v2513
        %v2541 = vpop.permute.xlu0 %2540
        %2544 = vset.pattern.permute.xlu0 0
        %2545 = vperm.xlu0 %2544, %v2514
        %v2546 = vpop.permute.xlu0 %2545
        %2549 = vset.pattern.permute.xlu0 0
        %2550 = vperm.xlu0 %2549, %v2515
        %v2551 = vpop.permute.xlu0 %2550
        %2554 = vset.pattern.permute.xlu0 0
        %2555 = vperm.xlu0 %2554, %v2516
        %v2556 = vpop.permute.xlu0 %2555
        %2559 = vset.pattern.permute.xlu0 0
        %2560 = vperm.xlu0 %2559, %v2517
        %v2561 = vpop.permute.xlu0 %2560
        %2564 = vset.pattern.permute.xlu0 0
        %2565 = vperm.xlu0 %2564, %v2518
        %v2566 = vpop.permute.xlu0 %2565
        %2569 = vset.pattern.permute.xlu0 0
        %2570 = vperm.xlu0 %2569, %v2519
        %v2571 = vpop.permute.xlu0 %2570
        %2574 = vset.pattern.permute.xlu0 0
        %2575 = vperm.xlu0 %2574, %v2520
        %v2576 = vpop.permute.xlu0 %2575
        %2579 = vset.pattern.permute.xlu0 0
        %2580 = vperm.xlu0 %2579, %v2521
        %v2581 = vpop.permute.xlu0 %2580
        %2584 = vset.pattern.permute.xlu0 0
        %2585 = vperm.xlu0 %2584, %v2522
        %v2586 = vpop.permute.xlu0 %2585
        %v2601 = vunpack.c.l.b16 %v2497
        %v2602 = vunpack.c.l.b16 %v2498
        %v2603 = vunpack.c.l.b16 %v2499
        %v2604 = vunpack.c.l.b16 %v2500
        %v2605 = vunpack.c.l.b16 %v2501
        %v2606 = vunpack.c.l.b16 %v2502
        %v2607 = vunpack.c.l.b16 %v2503
        %v2608 = vunpack.c.l.b16 %v2504
        %v2609 = vunpack.c.l.b16 %v2505
        %v2610 = vunpack.c.l.b16 %v2506
        %v2611 = vunpack.c.l.b16 %v2507
        %v2612 = vunpack.c.l.b16 %v2508
        %v2613 = vunpack.c.l.b16 %v2509
        %v2614 = vpack.c.b16 %v2602, %v2601
        %v2615 = vpack.c.b16 %v2604, %v2603
        %v2616 = vpack.c.b16 %v2606, %v2605
        %v2617 = vpack.c.b16 %v2608, %v2607
        %v2618 = vpack.c.b16 %v2610, %v2609
        %v2619 = vpack.c.b16 %v2612, %v2611
        %v2620 = vpack.c.b16 %v2613, %v2613
        %vm2621 = vcmask 588800
        %v2623 = vsel %vm2621, %v2614, 0
        %v2626 = vsel %vm2621, %v2615, 0
        %v2629 = vsel %vm2621, %v2616, 0
        %v2632 = vsel %vm2621, %v2617, 0
        %v2635 = vsel %vm2621, %v2618, 0
        %v2638 = vsel %vm2621, %v2619, 0
        %v2641 = vsel %vm2621, %v2620, 0
        %vm2643 = vcmask 1043456
        %v2645 = vsel %vm2643, %v2494, 0
        %v2648 = vsel %vm2643, %v2495, 0
        %v2651 = vsel %vm2643, %v2496, 0
        %2653 = vmatpush.bf16.msra.mxu0 0
        %2654 = vmatpush.bf16.msra.mxu0 0
        %2655 = vmatpush.bf16.msra.mxu0 0
        %2656 = vmatpush.bf16.msra.mxu0 %v2645
        %2657 = vmatpush.bf16.msra.mxu0 %v2491
        %2658 = vmatpush.bf16.msra.mxu0 %v2488
        %2659 = vmatpush.bf16.msra.mxu0 %v2485
        %2660 = vmatpush.bf16.msra.mxu0 %v2482
        %2661 = vmatmul.bf16.gmra.mxu0 %v2623
        %v2662 = vpop.f32.mrf.mxu0
        %v2663 = vadd.f32 %v2526, %v2662
        %v2664 = vpop.f32.mrf.mxu0
        %v2665 = vadd.f32 %v2531, %v2664
        %2666 = vmatmul.bf16.gmra.mxu0 %v2626
        %v2667 = vpop.f32.mrf.mxu0
        %v2668 = vadd.f32 %v2536, %v2667
        %v2669 = vpop.f32.mrf.mxu0
        %v2670 = vadd.f32 %v2541, %v2669
        %2671 = vmatmul.bf16.gmra.mxu0 %v2629
        %v2672 = vpop.f32.mrf.mxu0
        %v2673 = vadd.f32 %v2546, %v2672
        %v2674 = vpop.f32.mrf.mxu0
        %v2675 = vadd.f32 %v2551, %v2674
        %2676 = vmatmul.bf16.gmra.mxu0 %v2632
        %v2677 = vpop.f32.mrf.mxu0
        %v2678 = vadd.f32 %v2556, %v2677
        %v2679 = vpop.f32.mrf.mxu0
        %v2680 = vadd.f32 %v2561, %v2679
        %2681 = vmatmul.bf16.gmra.mxu0 %v2635
        %v2682 = vpop.f32.mrf.mxu0
        %v2683 = vadd.f32 %v2566, %v2682
        %v2684 = vpop.f32.mrf.mxu0
        %v2685 = vadd.f32 %v2571, %v2684
        %2686 = vmatmul.bf16.gmra.mxu0 %v2638
        %v2687 = vpop.f32.mrf.mxu0
        %v2688 = vadd.f32 %v2576, %v2687
        %v2689 = vpop.f32.mrf.mxu0
        %v2690 = vadd.f32 %v2581, %v2689
        %2691 = vmatmul.bf16.gmra.mxu0 %v2641
        %v2692 = vpop.f32.mrf.mxu0
        %v2693 = vadd.f32 %v2586, %v2692
        %v2694 = vpop.f32.mrf.mxu0
        %2695 = vdwg.mxu0
        %2696 = vmatpush.bf16.msra.mxu0 0
        %2697 = vmatpush.bf16.msra.mxu0 0
        %2698 = vmatpush.bf16.msra.mxu0 0
        %2699 = vmatpush.bf16.msra.mxu0 %v2648
        %2700 = vmatpush.bf16.msra.mxu0 %v2492
        %2701 = vmatpush.bf16.msra.mxu0 %v2489
        %2702 = vmatpush.bf16.msra.mxu0 %v2486
        %2703 = vmatpush.bf16.msra.mxu0 %v2483
        %2704 = vmatmul.bf16.gmra.mxu0 %v2623
        %v2705 = vpop.f32.mrf.mxu0
        %v2706 = vadd.f32 %v2526, %v2705
        %v2707 = vpop.f32.mrf.mxu0
        %v2708 = vadd.f32 %v2531, %v2707
        %2709 = vmatmul.bf16.gmra.mxu0 %v2626
        %v2710 = vpop.f32.mrf.mxu0
        %v2711 = vadd.f32 %v2536, %v2710
        %v2712 = vpop.f32.mrf.mxu0
        %v2713 = vadd.f32 %v2541, %v2712
        %2714 = vmatmul.bf16.gmra.mxu0 %v2629
        %v2715 = vpop.f32.mrf.mxu0
        %v2716 = vadd.f32 %v2546, %v2715
        %v2717 = vpop.f32.mrf.mxu0
        %v2718 = vadd.f32 %v2551, %v2717
        %2719 = vmatmul.bf16.gmra.mxu0 %v2632
        %v2720 = vpop.f32.mrf.mxu0
        %v2721 = vadd.f32 %v2556, %v2720
        %v2722 = vpop.f32.mrf.mxu0
        %v2723 = vadd.f32 %v2561, %v2722
        %2724 = vmatmul.bf16.gmra.mxu0 %v2635
        %v2725 = vpop.f32.mrf.mxu0
        %v2726 = vadd.f32 %v2566, %v2725
        %v2727 = vpop.f32.mrf.mxu0
        %v2728 = vadd.f32 %v2571, %v2727
        %2729 = vmatmul.bf16.gmra.mxu0 %v2638
        %v2730 = vpop.f32.mrf.mxu0
        %v2731 = vadd.f32 %v2576, %v2730
        %v2732 = vpop.f32.mrf.mxu0
        %v2733 = vadd.f32 %v2581, %v2732
        %2734 = vmatmul.bf16.gmra.mxu0 %v2641
        %v2735 = vpop.f32.mrf.mxu0
        %v2736 = vadd.f32 %v2586, %v2735
        %v2737 = vpop.f32.mrf.mxu0
        %2738 = vdwg.mxu0
        %2739 = vmatpush.bf16.msra.mxu0 0
        %2740 = vmatpush.bf16.msra.mxu0 0
        %2741 = vmatpush.bf16.msra.mxu0 0
        %2742 = vmatpush.bf16.msra.mxu0 %v2651
        %2743 = vmatpush.bf16.msra.mxu0 %v2493
        %2744 = vmatpush.bf16.msra.mxu0 %v2490
        %2745 = vmatpush.bf16.msra.mxu0 %v2487
        %2746 = vmatpush.bf16.msra.mxu0 %v2484
        %2747 = vmatmul.bf16.gmra.mxu0 %v2623
        %v2748 = vpop.f32.mrf.mxu0
        %v2749 = vadd.f32 %v2526, %v2748
        %v2750 = vpop.f32.mrf.mxu0
        %v2751 = vadd.f32 %v2531, %v2750
        %2752 = vmatmul.bf16.gmra.mxu0 %v2626
        %v2753 = vpop.f32.mrf.mxu0
        %v2754 = vadd.f32 %v2536, %v2753
        %v2755 = vpop.f32.mrf.mxu0
        %v2756 = vadd.f32 %v2541, %v2755
        %2757 = vmatmul.bf16.gmra.mxu0 %v2629
        %v2758 = vpop.f32.mrf.mxu0
        %v2759 = vadd.f32 %v2546, %v2758
        %v2760 = vpop.f32.mrf.mxu0
        %v2761 = vadd.f32 %v2551, %v2760
        %2762 = vmatmul.bf16.gmra.mxu0 %v2632
        %v2763 = vpop.f32.mrf.mxu0
        %v2764 = vadd.f32 %v2556, %v2763
        %v2765 = vpop.f32.mrf.mxu0
        %v2766 = vadd.f32 %v2561, %v2765
        %2767 = vmatmul.bf16.gmra.mxu0 %v2635
        %v2768 = vpop.f32.mrf.mxu0
        %v2769 = vadd.f32 %v2566, %v2768
        %v2770 = vpop.f32.mrf.mxu0
        %v2771 = vadd.f32 %v2571, %v2770
        %2772 = vmatmul.bf16.gmra.mxu0 %v2638
        %v2773 = vpop.f32.mrf.mxu0
        %v2774 = vadd.f32 %v2576, %v2773
        %v2775 = vpop.f32.mrf.mxu0
        %v2776 = vadd.f32 %v2581, %v2775
        %2777 = vmatmul.bf16.gmra.mxu0 %v2641
        %v2778 = vpop.f32.mrf.mxu0
        %v2779 = vadd.f32 %v2586, %v2778
        %v2780 = vpop.f32.mrf.mxu0
        %2781 = vdwg.mxu0
        %v2782 = vmax.f32 %v2663, 0.0
        %v2783 = vmax.f32 %v2706, 0.0
        %v2784 = vmax.f32 %v2749, 0.0
        %v2785 = vmax.f32 %v2665, 0.0
        %v2786 = vmax.f32 %v2708, 0.0
        %v2787 = vmax.f32 %v2751, 0.0
        %v2788 = vmax.f32 %v2668, 0.0
        %v2789 = vmax.f32 %v2711, 0.0
        %v2790 = vmax.f32 %v2754, 0.0
        %v2791 = vmax.f32 %v2670, 0.0
        %v2792 = vmax.f32 %v2713, 0.0
        %v2793 = vmax.f32 %v2756, 0.0
        %v2794 = vmax.f32 %v2673, 0.0
        %v2795 = vmax.f32 %v2716, 0.0
        %v2796 = vmax.f32 %v2759, 0.0
        %v2797 = vmax.f32 %v2675, 0.0
        %v2798 = vmax.f32 %v2718, 0.0
        %v2799 = vmax.f32 %v2761, 0.0
        %v2800 = vmax.f32 %v2678, 0.0
        %v2801 = vmax.f32 %v2721, 0.0
        %v2802 = vmax.f32 %v2764, 0.0
        %v2803 = vmax.f32 %v2680, 0.0
        %v2804 = vmax.f32 %v2723, 0.0
        %v2805 = vmax.f32 %v2766, 0.0
        %v2806 = vmax.f32 %v2683, 0.0
        %v2807 = vmax.f32 %v2726, 0.0
        %v2808 = vmax.f32 %v2769, 0.0
        %v2809 = vmax.f32 %v2685, 0.0
        %v2810 = vmax.f32 %v2728, 0.0
        %v2811 = vmax.f32 %v2771, 0.0
        %v2812 = vmax.f32 %v2688, 0.0
        %v2813 = vmax.f32 %v2731, 0.0
        %v2814 = vmax.f32 %v2774, 0.0
        %v2815 = vmax.f32 %v2690, 0.0
        %v2816 = vmax.f32 %v2733, 0.0
        %v2817 = vmax.f32 %v2776, 0.0
        %v2818 = vmax.f32 %v2693, 0.0
        %v2819 = vmax.f32 %v2736, 0.0
        %v2820 = vmax.f32 %v2779, 0.0
        %2860 = vrot.lane.b32.xlu0 %v2782, 127
        %v2861 = vpop.permute.xlu0 %2860
        %2862 = vrot.lane.b32.xlu0 %v2783, 127
        %v2863 = vpop.permute.xlu0 %2862
        %2864 = vrot.lane.b32.xlu0 %v2784, 127
        %v2865 = vpop.permute.xlu0 %2864
        %2866 = vrot.lane.b32.xlu0 %v2785, 127
        %v2867 = vpop.permute.xlu0 %2866
        %2868 = vrot.lane.b32.xlu0 %v2786, 127
        %v2869 = vpop.permute.xlu0 %2868
        %2870 = vrot.lane.b32.xlu0 %v2787, 127
        %v2871 = vpop.permute.xlu0 %2870
        %2872 = vrot.lane.b32.xlu0 %v2788, 127
        %v2873 = vpop.permute.xlu0 %2872
        %2874 = vrot.lane.b32.xlu0 %v2789, 127
        %v2875 = vpop.permute.xlu0 %2874
        %2876 = vrot.lane.b32.xlu0 %v2790, 127
        %v2877 = vpop.permute.xlu0 %2876
        %2878 = vrot.lane.b32.xlu0 %v2791, 127
        %v2879 = vpop.permute.xlu0 %2878
        %2880 = vrot.lane.b32.xlu0 %v2792, 127
        %v2881 = vpop.permute.xlu0 %2880
        %2882 = vrot.lane.b32.xlu0 %v2793, 127
        %v2883 = vpop.permute.xlu0 %2882
        %2884 = vrot.lane.b32.xlu0 %v2794, 127
        %v2885 = vpop.permute.xlu0 %2884
        %2886 = vrot.lane.b32.xlu0 %v2795, 127
        %v2887 = vpop.permute.xlu0 %2886
        %2888 = vrot.lane.b32.xlu0 %v2796, 127
        %v2889 = vpop.permute.xlu0 %2888
        %2890 = vrot.lane.b32.xlu0 %v2797, 127
        %v2891 = vpop.permute.xlu0 %2890
        %2892 = vrot.lane.b32.xlu0 %v2798, 127
        %v2893 = vpop.permute.xlu0 %2892
        %2894 = vrot.lane.b32.xlu0 %v2799, 127
        %v2895 = vpop.permute.xlu0 %2894
        %2896 = vrot.lane.b32.xlu0 %v2800, 127
        %v2897 = vpop.permute.xlu0 %2896
        %2898 = vrot.lane.b32.xlu0 %v2801, 127
        %v2899 = vpop.permute.xlu0 %2898
        %2900 = vrot.lane.b32.xlu0 %v2802, 127
        %v2901 = vpop.permute.xlu0 %2900
        %2902 = vrot.lane.b32.xlu0 %v2803, 127
        %v2903 = vpop.permute.xlu0 %2902
        %2904 = vrot.lane.b32.xlu0 %v2804, 127
        %v2905 = vpop.permute.xlu0 %2904
        %2906 = vrot.lane.b32.xlu0 %v2805, 127
        %v2907 = vpop.permute.xlu0 %2906
        %2908 = vrot.lane.b32.xlu0 %v2806, 127
        %v2909 = vpop.permute.xlu0 %2908
        %2910 = vrot.lane.b32.xlu0 %v2807, 127
        %v2911 = vpop.permute.xlu0 %2910
        %2912 = vrot.lane.b32.xlu0 %v2808, 127
        %v2913 = vpop.permute.xlu0 %2912
        %2914 = vrot.lane.b32.xlu0 %v2809, 127
        %v2915 = vpop.permute.xlu0 %2914
        %2916 = vrot.lane.b32.xlu0 %v2810, 127
        %v2917 = vpop.permute.xlu0 %2916
        %2918 = vrot.lane.b32.xlu0 %v2811, 127
        %v2919 = vpop.permute.xlu0 %2918
        %2920 = vrot.lane.b32.xlu0 %v2812, 127
        %v2921 = vpop.permute.xlu0 %2920
        %2922 = vrot.lane.b32.xlu0 %v2813, 127
        %v2923 = vpop.permute.xlu0 %2922
        %2924 = vrot.lane.b32.xlu0 %v2814, 127
        %v2925 = vpop.permute.xlu0 %2924
        %2926 = vrot.lane.b32.xlu0 %v2815, 127
        %v2927 = vpop.permute.xlu0 %2926
        %2928 = vrot.lane.b32.xlu0 %v2816, 127
        %v2929 = vpop.permute.xlu0 %2928
        %2930 = vrot.lane.b32.xlu0 %v2817, 127
        %v2931 = vpop.permute.xlu0 %2930
        %2932 = vrot.lane.b32.xlu0 %v2818, 127
        %v2933 = vpop.permute.xlu0 %2932
        %2934 = vrot.lane.b32.xlu0 %v2819, 127
        %v2935 = vpop.permute.xlu0 %2934
        %2936 = vrot.lane.b32.xlu0 %v2820, 127
        %v2937 = vpop.permute.xlu0 %2936
        %v2938 = vsel %vm610, %v2861, %v2863
        %v2939 = vsel %vm610, %v2863, %v2865
        %v2940 = vsel %vm610, %v2867, %v2869
        %v2941 = vsel %vm610, %v2869, %v2871
        %v2942 = vsel %vm610, %v2873, %v2875
        %v2943 = vsel %vm610, %v2875, %v2877
        %v2944 = vsel %vm610, %v2879, %v2881
        %v2945 = vsel %vm610, %v2881, %v2883
        %v2946 = vsel %vm610, %v2885, %v2887
        %v2947 = vsel %vm610, %v2887, %v2889
        %v2948 = vsel %vm610, %v2891, %v2893
        %v2949 = vsel %vm610, %v2893, %v2895
        %v2950 = vsel %vm610, %v2897, %v2899
        %v2951 = vsel %vm610, %v2899, %v2901
        %v2952 = vsel %vm610, %v2903, %v2905
        %v2953 = vsel %vm610, %v2905, %v2907
        %v2954 = vsel %vm610, %v2909, %v2911
        %v2955 = vsel %vm610, %v2911, %v2913
        %v2956 = vsel %vm610, %v2915, %v2917
        %v2957 = vsel %vm610, %v2917, %v2919
        %v2958 = vsel %vm610, %v2921, %v2923
        %v2959 = vsel %vm610, %v2923, %v2925
        %v2960 = vsel %vm610, %v2927, %v2929
        %v2961 = vsel %vm610, %v2929, %v2931
        %v2962 = vsel %vm610, %v2933, %v2935
        %v2963 = vsel %vm610, %v2935, %v2937
        %v3003 = vmax.f32 %v2782, %v2938
        %v3004 = vmax.f32 %v2783, %v2939
        %v3005 = vmax.f32 %v2784, %v2865
        %v3006 = vmax.f32 %v2785, %v2940
        %v3007 = vmax.f32 %v2786, %v2941
        %v3008 = vmax.f32 %v2787, %v2871
        %v3009 = vmax.f32 %v2788, %v2942
        %v3010 = vmax.f32 %v2789, %v2943
        %v3011 = vmax.f32 %v2790, %v2877
        %v3012 = vmax.f32 %v2791, %v2944
        %v3013 = vmax.f32 %v2792, %v2945
        %v3014 = vmax.f32 %v2793, %v2883
        %v3015 = vmax.f32 %v2794, %v2946
        %v3016 = vmax.f32 %v2795, %v2947
        %v3017 = vmax.f32 %v2796, %v2889
        %v3018 = vmax.f32 %v2797, %v2948
        %v3019 = vmax.f32 %v2798, %v2949
        %v3020 = vmax.f32 %v2799, %v2895
        %v3021 = vmax.f32 %v2800, %v2950
        %v3022 = vmax.f32 %v2801, %v2951
        %v3023 = vmax.f32 %v2802, %v2901
        %v3024 = vmax.f32 %v2803, %v2952
        %v3025 = vmax.f32 %v2804, %v2953
        %v3026 = vmax.f32 %v2805, %v2907
        %v3027 = vmax.f32 %v2806, %v2954
        %v3028 = vmax.f32 %v2807, %v2955
        %v3029 = vmax.f32 %v2808, %v2913
        %v3030 = vmax.f32 %v2809, %v2956
        %v3031 = vmax.f32 %v2810, %v2957
        %v3032 = vmax.f32 %v2811, %v2919
        %v3033 = vmax.f32 %v2812, %v2958
        %v3034 = vmax.f32 %v2813, %v2959
        %v3035 = vmax.f32 %v2814, %v2925
        %v3036 = vmax.f32 %v2815, %v2960
        %v3037 = vmax.f32 %v2816, %v2961
        %v3038 = vmax.f32 %v2817, %v2931
        %v3039 = vmax.f32 %v2818, %v2962
        %v3040 = vmax.f32 %v2819, %v2963
        %v3041 = vmax.f32 %v2820, %v2937
        %3081 = vrot.lane.b32.xlu0 %v3003, 110
        %v3082 = vpop.permute.xlu0 %3081
        %3083 = vrot.lane.b32.xlu0 %v3004, 110
        %v3084 = vpop.permute.xlu0 %3083
        %3085 = vrot.lane.b32.xlu0 %v3005, 110
        %v3086 = vpop.permute.xlu0 %3085
        %3087 = vrot.lane.b32.xlu0 %v3006, 110
        %v3088 = vpop.permute.xlu0 %3087
        %3089 = vrot.lane.b32.xlu0 %v3007, 110
        %v3090 = vpop.permute.xlu0 %3089
        %3091 = vrot.lane.b32.xlu0 %v3008, 110
        %v3092 = vpop.permute.xlu0 %3091
        %3093 = vrot.lane.b32.xlu0 %v3009, 110
        %v3094 = vpop.permute.xlu0 %3093
        %3095 = vrot.lane.b32.xlu0 %v3010, 110
        %v3096 = vpop.permute.xlu0 %3095
        %3097 = vrot.lane.b32.xlu0 %v3011, 110
        %v3098 = vpop.permute.xlu0 %3097
        %3099 = vrot.lane.b32.xlu0 %v3012, 110
        %v3100 = vpop.permute.xlu0 %3099
        %3101 = vrot.lane.b32.xlu0 %v3013, 110
        %v3102 = vpop.permute.xlu0 %3101
        %3103 = vrot.lane.b32.xlu0 %v3014, 110
        %v3104 = vpop.permute.xlu0 %3103
        %3105 = vrot.lane.b32.xlu0 %v3015, 110
        %v3106 = vpop.permute.xlu0 %3105
        %3107 = vrot.lane.b32.xlu0 %v3016, 110
        %v3108 = vpop.permute.xlu0 %3107
        %3109 = vrot.lane.b32.xlu0 %v3017, 110
        %v3110 = vpop.permute.xlu0 %3109
        %3111 = vrot.lane.b32.xlu0 %v3018, 110
        %v3112 = vpop.permute.xlu0 %3111
        %3113 = vrot.lane.b32.xlu0 %v3019, 110
        %v3114 = vpop.permute.xlu0 %3113
        %3115 = vrot.lane.b32.xlu0 %v3020, 110
        %v3116 = vpop.permute.xlu0 %3115
        %3117 = vrot.lane.b32.xlu0 %v3021, 110
        %v3118 = vpop.permute.xlu0 %3117
        %3119 = vrot.lane.b32.xlu0 %v3022, 110
        %v3120 = vpop.permute.xlu0 %3119
        %3121 = vrot.lane.b32.xlu0 %v3023, 110
        %v3122 = vpop.permute.xlu0 %3121
        %3123 = vrot.lane.b32.xlu0 %v3024, 110
        %v3124 = vpop.permute.xlu0 %3123
        %3125 = vrot.lane.b32.xlu0 %v3025, 110
        %v3126 = vpop.permute.xlu0 %3125
        %3127 = vrot.lane.b32.xlu0 %v3026, 110
        %v3128 = vpop.permute.xlu0 %3127
        %3129 = vrot.lane.b32.xlu0 %v3027, 110
        %v3130 = vpop.permute.xlu0 %3129
        %3131 = vrot.lane.b32.xlu0 %v3028, 110
        %v3132 = vpop.permute.xlu0 %3131
        %3133 = vrot.lane.b32.xlu0 %v3029, 110
        %v3134 = vpop.permute.xlu0 %3133
        %3135 = vrot.lane.b32.xlu0 %v3030, 110
        %v3136 = vpop.permute.xlu0 %3135
        %3137 = vrot.lane.b32.xlu0 %v3031, 110
        %v3138 = vpop.permute.xlu0 %3137
        %3139 = vrot.lane.b32.xlu0 %v3032, 110
        %v3140 = vpop.permute.xlu0 %3139
        %3141 = vrot.lane.b32.xlu0 %v3033, 110
        %v3142 = vpop.permute.xlu0 %3141
        %3143 = vrot.lane.b32.xlu0 %v3034, 110
        %v3144 = vpop.permute.xlu0 %3143
        %3145 = vrot.lane.b32.xlu0 %v3035, 110
        %v3146 = vpop.permute.xlu0 %3145
        %3147 = vrot.lane.b32.xlu0 %v3036, 110
        %v3148 = vpop.permute.xlu0 %3147
        %3149 = vrot.lane.b32.xlu0 %v3037, 110
        %v3150 = vpop.permute.xlu0 %3149
        %3151 = vrot.lane.b32.xlu0 %v3038, 110
        %v3152 = vpop.permute.xlu0 %3151
        %3153 = vrot.lane.b32.xlu0 %v3039, 110
        %v3154 = vpop.permute.xlu0 %3153
        %3155 = vrot.lane.b32.xlu0 %v3040, 110
        %v3156 = vpop.permute.xlu0 %3155
        %3157 = vrot.lane.b32.xlu0 %v3041, 110
        %v3158 = vpop.permute.xlu0 %3157
        %v3159 = vsel %vm2416, %v3082, %v3084
        %v3160 = vsel %vm2416, %v3084, %v3086
        %v3161 = vsel %vm2416, %v3088, %v3090
        %v3162 = vsel %vm2416, %v3090, %v3092
        %v3163 = vsel %vm2416, %v3094, %v3096
        %v3164 = vsel %vm2416, %v3096, %v3098
        %v3165 = vsel %vm2416, %v3100, %v3102
        %v3166 = vsel %vm2416, %v3102, %v3104
        %v3167 = vsel %vm2416, %v3106, %v3108
        %v3168 = vsel %vm2416, %v3108, %v3110
        %v3169 = vsel %vm2416, %v3112, %v3114
        %v3170 = vsel %vm2416, %v3114, %v3116
        %v3171 = vsel %vm2416, %v3118, %v3120
        %v3172 = vsel %vm2416, %v3120, %v3122
        %v3173 = vsel %vm2416, %v3124, %v3126
        %v3174 = vsel %vm2416, %v3126, %v3128
        %v3175 = vsel %vm2416, %v3130, %v3132
        %v3176 = vsel %vm2416, %v3132, %v3134
        %v3177 = vsel %vm2416, %v3136, %v3138
        %v3178 = vsel %vm2416, %v3138, %v3140
        %v3179 = vsel %vm2416, %v3142, %v3144
        %v3180 = vsel %vm2416, %v3144, %v3146
        %v3181 = vsel %vm2416, %v3148, %v3150
        %v3182 = vsel %vm2416, %v3150, %v3152
        %v3183 = vsel %vm2416, %v3154, %v3156
        %v3184 = vsel %vm2416, %v3156, %v3158
        %v3224 = vmax.f32 %v3003, %v3159
        %v3225 = vmax.f32 %v3004, %v3160
        %v3226 = vmax.f32 %v3005, %v3086
        %v3227 = vmax.f32 %v3006, %v3161
        %v3228 = vmax.f32 %v3007, %v3162
        %v3229 = vmax.f32 %v3008, %v3092
        %v3230 = vmax.f32 %v3009, %v3163
        %v3231 = vmax.f32 %v3010, %v3164
        %v3232 = vmax.f32 %v3011, %v3098
        %v3233 = vmax.f32 %v3012, %v3165
        %v3234 = vmax.f32 %v3013, %v3166
        %v3235 = vmax.f32 %v3014, %v3104
        %v3236 = vmax.f32 %v3015, %v3167
        %v3237 = vmax.f32 %v3016, %v3168
        %v3238 = vmax.f32 %v3017, %v3110
        %v3239 = vmax.f32 %v3018, %v3169
        %v3240 = vmax.f32 %v3019, %v3170
        %v3241 = vmax.f32 %v3020, %v3116
        %v3242 = vmax.f32 %v3021, %v3171
        %v3243 = vmax.f32 %v3022, %v3172
        %v3244 = vmax.f32 %v3023, %v3122
        %v3245 = vmax.f32 %v3024, %v3173
        %v3246 = vmax.f32 %v3025, %v3174
        %v3247 = vmax.f32 %v3026, %v3128
        %v3248 = vmax.f32 %v3027, %v3175
        %v3249 = vmax.f32 %v3028, %v3176
        %v3250 = vmax.f32 %v3029, %v3134
        %v3251 = vmax.f32 %v3030, %v3177
        %v3252 = vmax.f32 %v3031, %v3178
        %v3253 = vmax.f32 %v3032, %v3140
        %v3254 = vmax.f32 %v3033, %v3179
        %v3255 = vmax.f32 %v3034, %v3180
        %v3256 = vmax.f32 %v3035, %v3146
        %v3257 = vmax.f32 %v3036, %v3181
        %v3258 = vmax.f32 %v3037, %v3182
        %v3259 = vmax.f32 %v3038, %v3152
        %v3260 = vmax.f32 %v3039, %v3183
        %v3261 = vmax.f32 %v3040, %v3184
        %v3262 = vmax.f32 %v3041, %v3158
        %v3263 = vpack.c.bf16 %v3227, %v3224
        %v3264 = vpack.c.bf16 %v3228, %v3225
        %v3265 = vpack.c.bf16 %v3229, %v3226
        %v3266 = vpack.c.bf16 %v3233, %v3230
        %v3267 = vpack.c.bf16 %v3234, %v3231
        %v3268 = vpack.c.bf16 %v3235, %v3232
        %v3269 = vpack.c.bf16 %v3239, %v3236
        %v3270 = vpack.c.bf16 %v3240, %v3237
        %v3271 = vpack.c.bf16 %v3241, %v3238
        %v3272 = vpack.c.bf16 %v3245, %v3242
        %v3273 = vpack.c.bf16 %v3246, %v3243
        %v3274 = vpack.c.bf16 %v3247, %v3244
        %v3275 = vpack.c.bf16 %v3251, %v3248
        %v3276 = vpack.c.bf16 %v3252, %v3249
        %v3277 = vpack.c.bf16 %v3253, %v3250
        %v3278 = vpack.c.bf16 %v3257, %v3254
        %v3279 = vpack.c.bf16 %v3258, %v3255
        %v3280 = vpack.c.bf16 %v3259, %v3256
        %v3281 = vpack.c.bf16 %v3260, %v3260
        %v3282 = vpack.c.bf16 %v3261, %v3261
        %v3283 = vpack.c.bf16 %v3262, %v3262
        %v3284 = vld [vmem:[%s6] sm:$0xf]
        %v3285 = vld [vmem:[%s6 + $0x4] sm:$0xf]
        %v3286 = vld [vmem:[%s6 + $0x8] sm:$0xf]
        %v3287 = vld [vmem:[%s6 + $0xc] sm:$0xf]
        %v3288 = vld [vmem:[%s6 + $0x10] sm:$0xf]
        %v3289 = vld [vmem:[%s6 + $0x14] sm:$0xf]
        %v3290 = vld [vmem:[%s6 + $0x18] sm:$0xf]
        %v3291 = vld [vmem:[%s6 + $0x1c] sm:$0xf]
        %v3292 = vld [vmem:[%s6 + $0x20] sm:$0xf]
        %v3293 = vld [vmem:[%s6 + $0x24] sm:$0xf]
        %v3294 = vld [vmem:[%s6 + $0x28] sm:$0xf]
        %v3295 = vld [vmem:[%s6 + $0x2c] sm:$0xf]
        %v3296 = vld [vmem:[%s6 + $0x30] sm:$0xf]
        %v3297 = vld [vmem:[%s6 + $0x34] sm:$0xf]
        %v3298 = vld [vmem:[%s6 + $0x38] sm:$0xf]
        %v3299 = vld [vmem:[%s6 + $0x3c] sm:$0xf]
        %v3300 = vld [vmem:[%s6 + $0x40] sm:$0xf]
        %v3301 = vld [vmem:[%s6 + $0x44] sm:$0xf]
        %v3302 = vld [vmem:[%s6 + $0x48] sm:$0xf]
        %v3303 = vld [vmem:[%s6 + $0x4c] sm:$0xf]
        %v3304 = vld [vmem:[%s6 + $0x50] sm:$0xf]
        %v3305 = vld [vmem:[%s6 + $0x54] sm:$0xf]
        %v3306 = vld [vmem:[%s6 + $0x58] sm:$0xf]
        %v3307 = vld [vmem:[%s6 + $0x5c] sm:$0xf]
        %v3308 = vld [vmem:[%s6 + $0x60] sm:$0xf]
        %v3309 = vld [vmem:[%s6 + $0x64] sm:$0xf]
        %v3310 = vld [vmem:[%s6 + $0x68] sm:$0xf]
        %v3311 = vld [vmem:[%s6 + $0x6c] sm:$0xf]
        %v3312 = vld [vmem:[%s6 + $0x70] sm:$0xf]
        %v3313 = vld [vmem:[%s6 + $0x74] sm:$0xf]
        %v3314 = vld [vmem:[%s6 + $0x78] sm:$0xf]
        %v3315 = vld [vmem:[%s6 + $0x7c] sm:$0xf]
        %v3316 = vld [vmem:[%s6 + $0x80] sm:$0xf]
        %v3317 = vld [vmem:[%s6 + $0x84] sm:$0x7]
        %v3352 = vunpack.c.l.b16 %v3284
        %v3353 = vunpack.c.l.b16 %v3285
        %v3354 = vunpack.c.l.b16 %v3286
        %v3355 = vunpack.c.l.b16 %v3287
        %v3356 = vunpack.c.l.b16 %v3288
        %v3357 = vunpack.c.l.b16 %v3289
        %v3358 = vunpack.c.l.b16 %v3290
        %v3359 = vunpack.c.l.b16 %v3291
        %v3360 = vunpack.c.l.b16 %v3292
        %v3361 = vunpack.c.l.b16 %v3293
        %v3362 = vunpack.c.l.b16 %v3294
        %v3363 = vunpack.c.l.b16 %v3295
        %v3364 = vunpack.c.l.b16 %v3296
        %v3365 = vunpack.c.l.b16 %v3297
        %v3366 = vunpack.c.l.b16 %v3298
        %v3367 = vunpack.c.l.b16 %v3299
        %v3368 = vunpack.c.l.b16 %v3300
        %v3369 = vunpack.c.l.b16 %v3301
        %v3370 = vunpack.c.l.b16 %v3302
        %v3371 = vunpack.c.l.b16 %v3303
        %v3372 = vunpack.c.l.b16 %v3304
        %v3373 = vunpack.c.l.b16 %v3305
        %v3374 = vunpack.c.l.b16 %v3306
        %v3375 = vunpack.c.l.b16 %v3307
        %v3376 = vunpack.c.l.b16 %v3308
        %v3377 = vunpack.c.l.b16 %v3309
        %v3378 = vunpack.c.l.b16 %v3310
        %v3379 = vunpack.c.l.b16 %v3311
        %v3380 = vunpack.c.l.b16 %v3312
        %v3381 = vunpack.c.l.b16 %v3313
        %v3382 = vunpack.c.l.b16 %v3314
        %v3383 = vunpack.c.l.b16 %v3315
        %v3384 = vunpack.c.l.b16 %v3316
        %v3385 = vunpack.c.l.b16 %v3317
        %v3386 = vpack.c.b16 %v3353, %v3352
        %v3387 = vpack.c.b16 %v3355, %v3354
        %v3388 = vpack.c.b16 %v3357, %v3356
        %v3389 = vpack.c.b16 %v3359, %v3358
        %v3390 = vpack.c.b16 %v3361, %v3360
        %v3391 = vpack.c.b16 %v3363, %v3362
        %v3392 = vpack.c.b16 %v3365, %v3364
        %v3393 = vpack.c.b16 %v3367, %v3366
        %v3394 = vpack.c.b16 %v3369, %v3368
        %v3395 = vpack.c.b16 %v3371, %v3370
        %v3396 = vpack.c.b16 %v3373, %v3372
        %v3397 = vpack.c.b16 %v3375, %v3374
        %v3398 = vpack.c.b16 %v3377, %v3376
        %v3399 = vpack.c.b16 %v3379, %v3378
        %v3400 = vpack.c.b16 %v3381, %v3380
        %v3401 = vpack.c.b16 %v3383, %v3382
        %v3402 = vpack.c.b16 %v3385, %v3384
        %vm3419 = vcmask 105472
        %v3421 = vsel %vm3419, %v3265, 0
        %v3424 = vsel %vm3419, %v3268, 0
        %v3427 = vsel %vm3419, %v3271, 0
        %v3430 = vsel %vm3419, %v3274, 0
        %v3433 = vsel %vm3419, %v3277, 0
        %v3436 = vsel %vm3419, %v3280, 0
        %v3439 = vsel %vm3419, %v3283, 0
        %v3442 = vand.u32 %v3402, %v2023
        %3444 = vmatpush.bf16.msra.mxu0 %v3393
        %3445 = vmatpush.bf16.msra.mxu0 %v3392
        %3446 = vmatpush.bf16.msra.mxu0 %v3391
        %3447 = vmatpush.bf16.msra.mxu0 %v3390
        %3448 = vmatpush.bf16.msra.mxu0 %v3389
        %3449 = vmatpush.bf16.msra.mxu0 %v3388
        %3450 = vmatpush.bf16.msra.mxu0 %v3387
        %3451 = vmatpush.bf16.msra.mxu0 %v3386
        %3452 = vmatmul.bf16.gmra.mxu0 %v3263
        %v3453 = vpop.f32.mrf.mxu0
        %v3454 = vadd.f32 0.0, %v3453
        %v3455 = vpop.f32.mrf.mxu0
        %v3456 = vadd.f32 0.0, %v3455
        %3457 = vmatmul.bf16.gmra.mxu0 %v3266
        %v3458 = vpop.f32.mrf.mxu0
        %v3459 = vadd.f32 0.0, %v3458
        %v3460 = vpop.f32.mrf.mxu0
        %v3461 = vadd.f32 0.0, %v3460
        %3462 = vmatmul.bf16.gmra.mxu0 %v3269
        %v3463 = vpop.f32.mrf.mxu0
        %v3464 = vadd.f32 0.0, %v3463
        %v3465 = vpop.f32.mrf.mxu0
        %v3466 = vadd.f32 0.0, %v3465
        %3467 = vmatmul.bf16.gmra.mxu0 %v3272
        %v3468 = vpop.f32.mrf.mxu0
        %v3469 = vadd.f32 0.0, %v3468
        %v3470 = vpop.f32.mrf.mxu0
        %v3471 = vadd.f32 0.0, %v3470
        %3472 = vmatmul.bf16.gmra.mxu0 %v3275
        %v3473 = vpop.f32.mrf.mxu0
        %v3474 = vadd.f32 0.0, %v3473
        %v3475 = vpop.f32.mrf.mxu0
        %v3476 = vadd.f32 0.0, %v3475
        %3477 = vmatmul.bf16.gmra.mxu0 %v3278
        %v3478 = vpop.f32.mrf.mxu0
        %v3479 = vadd.f32 0.0, %v3478
        %v3480 = vpop.f32.mrf.mxu0
        %v3481 = vadd.f32 0.0, %v3480
        %3482 = vmatmul.bf16.gmra.mxu0 %v3281
        %v3483 = vpop.f32.mrf.mxu0
        %v3484 = vadd.f32 0.0, %v3483
        %v3485 = vpop.f32.mrf.mxu0
        %3486 = vdwg.mxu0
        %3487 = vmatpush.bf16.msra.mxu0 %v3401
        %3488 = vmatpush.bf16.msra.mxu0 %v3400
        %3489 = vmatpush.bf16.msra.mxu0 %v3399
        %3490 = vmatpush.bf16.msra.mxu0 %v3398
        %3491 = vmatpush.bf16.msra.mxu0 %v3397
        %3492 = vmatpush.bf16.msra.mxu0 %v3396
        %3493 = vmatpush.bf16.msra.mxu0 %v3395
        %3494 = vmatpush.bf16.msra.mxu0 %v3394
        %3495 = vmatmul.bf16.gmra.mxu0 %v3264
        %v3496 = vpop.f32.mrf.mxu0
        %v3497 = vadd.f32 %v3454, %v3496
        %v3498 = vpop.f32.mrf.mxu0
        %v3499 = vadd.f32 %v3456, %v3498
        %3500 = vmatmul.bf16.gmra.mxu0 %v3267
        %v3501 = vpop.f32.mrf.mxu0
        %v3502 = vadd.f32 %v3459, %v3501
        %v3503 = vpop.f32.mrf.mxu0
        %v3504 = vadd.f32 %v3461, %v3503
        %3505 = vmatmul.bf16.gmra.mxu0 %v3270
        %v3506 = vpop.f32.mrf.mxu0
        %v3507 = vadd.f32 %v3464, %v3506
        %v3508 = vpop.f32.mrf.mxu0
        %v3509 = vadd.f32 %v3466, %v3508
        %3510 = vmatmul.bf16.gmra.mxu0 %v3273
        %v3511 = vpop.f32.mrf.mxu0
        %v3512 = vadd.f32 %v3469, %v3511
        %v3513 = vpop.f32.mrf.mxu0
        %v3514 = vadd.f32 %v3471, %v3513
        %3515 = vmatmul.bf16.gmra.mxu0 %v3276
        %v3516 = vpop.f32.mrf.mxu0
        %v3517 = vadd.f32 %v3474, %v3516
        %v3518 = vpop.f32.mrf.mxu0
        %v3519 = vadd.f32 %v3476, %v3518
        %3520 = vmatmul.bf16.gmra.mxu0 %v3279
        %v3521 = vpop.f32.mrf.mxu0
        %v3522 = vadd.f32 %v3479, %v3521
        %v3523 = vpop.f32.mrf.mxu0
        %v3524 = vadd.f32 %v3481, %v3523
        %3525 = vmatmul.bf16.gmra.mxu0 %v3282
        %v3526 = vpop.f32.mrf.mxu0
        %v3527 = vadd.f32 %v3484, %v3526
        %v3528 = vpop.f32.mrf.mxu0
        %3529 = vdwg.mxu0
        %3530 = vmatpush.bf16.msra.mxu0 0
        %3531 = vmatpush.bf16.msra.mxu0 0
        %3532 = vmatpush.bf16.msra.mxu0 0
        %3533 = vmatpush.bf16.msra.mxu0 0
        %3534 = vmatpush.bf16.msra.mxu0 0
        %3535 = vmatpush.bf16.msra.mxu0 0
        %3536 = vmatpush.bf16.msra.mxu0 0
        %3537 = vmatpush.bf16.msra.mxu0 %v3442
        %3538 = vmatmul.bf16.gmra.mxu0 %v3421
        %v3539 = vpop.f32.mrf.mxu0
        %v3540 = vadd.f32 %v3497, %v3539
        %v3541 = vpop.f32.mrf.mxu0
        %v3542 = vadd.f32 %v3499, %v3541
        %3543 = vmatmul.bf16.gmra.mxu0 %v3424
        %v3544 = vpop.f32.mrf.mxu0
        %v3545 = vadd.f32 %v3502, %v3544
        %v3546 = vpop.f32.mrf.mxu0
        %v3547 = vadd.f32 %v3504, %v3546
        %3548 = vmatmul.bf16.gmra.mxu0 %v3427
        %v3549 = vpop.f32.mrf.mxu0
        %v3550 = vadd.f32 %v3507, %v3549
        %v3551 = vpop.f32.mrf.mxu0
        %v3552 = vadd.f32 %v3509, %v3551
        %3553 = vmatmul.bf16.gmra.mxu0 %v3430
        %v3554 = vpop.f32.mrf.mxu0
        %v3555 = vadd.f32 %v3512, %v3554
        %v3556 = vpop.f32.mrf.mxu0
        %v3557 = vadd.f32 %v3514, %v3556
        %3558 = vmatmul.bf16.gmra.mxu0 %v3433
        %v3559 = vpop.f32.mrf.mxu0
        %v3560 = vadd.f32 %v3517, %v3559
        %v3561 = vpop.f32.mrf.mxu0
        %v3562 = vadd.f32 %v3519, %v3561
        %3563 = vmatmul.bf16.gmra.mxu0 %v3436
        %v3564 = vpop.f32.mrf.mxu0
        %v3565 = vadd.f32 %v3522, %v3564
        %v3566 = vpop.f32.mrf.mxu0
        %v3567 = vadd.f32 %v3524, %v3566
        %3568 = vmatmul.bf16.gmra.mxu0 %v3439
        %v3569 = vpop.f32.mrf.mxu0
        %v3570 = vadd.f32 %v3527, %v3569
        %v3571 = vpop.f32.mrf.mxu0
        %3572 = vdwg.mxu0
        %v3573 = vpack.c.bf16 %v3540, %v3540
        %v3574 = vpack.c.bf16 %v3542, %v3542
        %v3575 = vpack.c.bf16 %v3545, %v3545
        %v3576 = vpack.c.bf16 %v3547, %v3547
        %v3577 = vpack.c.bf16 %v3550, %v3550
        %v3578 = vpack.c.bf16 %v3552, %v3552
        %v3579 = vpack.c.bf16 %v3555, %v3555
        %v3580 = vpack.c.bf16 %v3557, %v3557
        %v3581 = vpack.c.bf16 %v3560, %v3560
        %v3582 = vpack.c.bf16 %v3562, %v3562
        %v3583 = vpack.c.bf16 %v3565, %v3565
        %v3584 = vpack.c.bf16 %v3567, %v3567
        %v3585 = vpack.c.bf16 %v3570, %v3570
        %vm3586 = vcmask 519168
        %3587 = vst.msk [vmem:[%s310] sm:$0xf] %vm3586, %v3573
        %3588 = vst.msk [vmem:[%s310 + $0x4] sm:$0xf] %vm3586, %v3574
        %3589 = vst.msk [vmem:[%s310 + $0x8] sm:$0xf] %vm3586, %v3575
        %3590 = vst.msk [vmem:[%s310 + $0xc] sm:$0xf] %vm3586, %v3576
        %3591 = vst.msk [vmem:[%s310 + $0x10] sm:$0xf] %vm3586, %v3577
        %3592 = vst.msk [vmem:[%s310 + $0x14] sm:$0xf] %vm3586, %v3578
        %3593 = vst.msk [vmem:[%s310 + $0x18] sm:$0xf] %vm3586, %v3579
        %3594 = vst.msk [vmem:[%s310 + $0x1c] sm:$0xf] %vm3586, %v3580
        %3595 = vst.msk [vmem:[%s310 + $0x20] sm:$0xf] %vm3586, %v3581
        %3596 = vst.msk [vmem:[%s310 + $0x24] sm:$0xf] %vm3586, %v3582
        %3597 = vst.msk [vmem:[%s310 + $0x28] sm:$0xf] %vm3586, %v3583
        %3598 = vst.msk [vmem:[%s310 + $0x2c] sm:$0xf] %vm3586, %v3584
        %vm3599 = vcmask 517120
        %3600 = vst.msk [vmem:[%s310 + $0x30] sm:$0x3] %vm3599, %v3585
        %p3601 = scmp.lt.s32.totalorder %s20, 1
        %s3602 = scalar_select %p3601, %s20, 1
        %s3603 = smul.addr %s3602, 13
        %s3604 = smul.addr %s3603, 4
        %s3605 = scalar_lea.vmem %s7, %s3604
        // Predicated region
        $region57: #{lipschitz_conv_model_forward.2} parent=47 // pred_check
          %p3606 = pneg %p190
        $region58: #{lipschitz_conv_model_forward.2} parent=47 // pred_check_branch
          %3608 = sbr.rel (%p3606) target = $region60
        $region59: #{lipschitz_conv_model_forward.2} parent=47 // pred_region
          _
        $region60: #{lipschitz_conv_model_forward.2} parent=47 // pred_fallthru
          _
      $region48: #{lipschitz_conv_model_forward.2} parent=5 // pred_fallthru
        _
      %p3609 = scmp.le.s32.totalorder 2, %s15
      // Predicated region
      $region61: #{lipschitz_conv_model_forward.2} parent=5 // pred_check
        %p3610 = pneg %p3609
      $region62: #{lipschitz_conv_model_forward.2} parent=5 // pred_check_branch
        %3612 = sbr.rel (%p3610) target = $region64
      $region63: #{lipschitz_conv_model_forward.2} parent=5 // pred_region
        %s3613 = ssub.s32 %s15, 2
        // Predicated region
        $region65: #{lipschitz_conv_model_forward.2} parent=63 // pred_check
          %p3614 = pneg %p196
        $region66: #{lipschitz_conv_model_forward.2} parent=63 // pred_check_branch
          %3616 = sbr.rel (%p3614) target = $region68
        $region67: #{lipschitz_conv_model_forward.2} parent=63 // pred_region
          %p3617 = scmp.lt.s32.totalorder %s21, 1
          %s3618 = scalar_select %p3617, %s21, 1
          %s3619 = smul.addr %s3618, 13
          %s3620 = smul.addr %s3619, 4
          %s3621 = scalar_lea.vmem %s7, %s3620
        $region68: #{lipschitz_conv_model_forward.2} parent=63 // pred_fallthru
          _
      $region64: #{lipschitz_conv_model_forward.2} parent=5 // pred_fallthru
        _
    $region6: #{lipschitz_conv_model_forward.2} parent=1 // loop_footer
      %s19 = sadd.s32 1, %s15
    $region7: #{lipschitz_conv_model_forward.2} parent=1 // loop_footer_branch
      %14 = sbr.rel target = $region3
    $region8: #{lipschitz_conv_model_forward.2} parent=1 // loop_exit
      _
    %3622 = vsyncpa [#allocation3], 1
    %s3623 = scalar_lea.sflag [#allocation3], 1
    %3624 = vsyncpa %s3623, 1
    %3625 = vsyncpa [#allocation5], 1

// kernel: lipschitz_conv_model_forward.3
$region0: #{lipschitz_conv_model_forward.3}
  #allocation0 [shape = 'u32[]', space=smem, size = 0x4, offset = 0x4, fixed_abs, tag = 'smem constant byte address 0x4 - core index']
  #allocation1 [shape = 'u32[72,128]{1,0:T(1,128)}', space=vmem, size = 0x9000, scoped, tag = 'internal scratch']
  %s0 = inlined_call_operand.vmem [shape: bf16[2,6400], index: 0, kind: input, shape index: {}]
  %s1 = inlined_call_operand.vmem [shape: bf16[6400,120], index: 1, kind: input, shape index: {}]
  %s2 = inlined_call_operand.vmem [shape: f32[1,120], index: 2, kind: input, shape index: {}]
  %s3 = inlined_call_operand.vmem [shape: bf16[120,84], index: 3, kind: input, shape index: {}]
  %s4 = inlined_call_operand.vmem [shape: f32[1,84], index: 4, kind: input, shape index: {}]
  %s5 = inlined_call_operand.vmem [shape: bf16[84,10], index: 5, kind: input, shape index: {}]
  %s6 = inlined_call_operand.vmem [shape: f32[1,10], index: 6, kind: input, shape index: {}]
  %s7 = inlined_call_operand.hbm [shape: f32[2,10], index: 7, kind: output, shape index: {}]
  %s8 = sld [smem:[#allocation0]]
  $region38: #{lipschitz_conv_model_forward.3} parent=0
    _
  %s10 = ssub.s32 1, %s8
  %s11 = scalar_select 0, %s10, %s8
  $region1: #{lipschitz_conv_model_forward.3} parent=0
    #allocation2 [shape = 'u8[1024]{0}', space=vmem, size = 0x400, scoped, tag = 'output window, operand 0, single buffered']
    #allocation3 [shape = 's32[1]{0}', space=sflag, size = 0x4, scoped, tag = 'scoped memory for lipschitz_conv_model_forward.3']
    %12 = vsyncpa [#allocation3], 0
    // Predicated region
    $region2: #{lipschitz_conv_model_forward.3} parent=1 // pred_check
      _
    $region3: #{lipschitz_conv_model_forward.3} parent=1 // pred_check_branch
      %14 = sbr.rel (0) target = $region5
    $region4: #{lipschitz_conv_model_forward.3} parent=1 // pred_region
      _
    $region5: #{lipschitz_conv_model_forward.3} parent=1 // pred_fallthru
      _
    // Predicated region
    $region6: #{lipschitz_conv_model_forward.3} parent=1 // pred_check
      _
    $region7: #{lipschitz_conv_model_forward.3} parent=1 // pred_check_branch
      %16 = sbr.rel (0) target = $region9
    $region8: #{lipschitz_conv_model_forward.3} parent=1 // pred_region
      _
    $region9: #{lipschitz_conv_model_forward.3} parent=1 // pred_fallthru
      _
    // Predicated region
    $region10: #{lipschitz_conv_model_forward.3} parent=1 // pred_check
      _
    $region11: #{lipschitz_conv_model_forward.3} parent=1 // pred_check_branch
      %18 = sbr.rel (0) target = $region13
    $region12: #{lipschitz_conv_model_forward.3} parent=1 // pred_region
      _
    $region13: #{lipschitz_conv_model_forward.3} parent=1 // pred_fallthru
      _
    // Predicated region
    $region14: #{lipschitz_conv_model_forward.3} parent=1 // pred_check
      _
    $region15: #{lipschitz_conv_model_forward.3} parent=1 // pred_check_branch
      %20 = sbr.rel (0) target = $region17
    $region16: #{lipschitz_conv_model_forward.3} parent=1 // pred_region
      _
    $region17: #{lipschitz_conv_model_forward.3} parent=1 // pred_fallthru
      _
    // Predicated region
    $region18: #{lipschitz_conv_model_forward.3} parent=1 // pred_check
      _
    $region19: #{lipschitz_conv_model_forward.3} parent=1 // pred_check_branch
      %22 = sbr.rel (0) target = $region21
    $region20: #{lipschitz_conv_model_forward.3} parent=1 // pred_region
      _
    $region21: #{lipschitz_conv_model_forward.3} parent=1 // pred_fallthru
      _
    // Predicated region
    $region22: #{lipschitz_conv_model_forward.3} parent=1 // pred_check
      _
    $region23: #{lipschitz_conv_model_forward.3} parent=1 // pred_check_branch
      %24 = sbr.rel (0) target = $region25
    $region24: #{lipschitz_conv_model_forward.3} parent=1 // pred_region
      _
    $region25: #{lipschitz_conv_model_forward.3} parent=1 // pred_fallthru
      _
    // Predicated region
    $region26: #{lipschitz_conv_model_forward.3} parent=1 // pred_check
      _
    $region27: #{lipschitz_conv_model_forward.3} parent=1 // pred_check_branch
      %26 = sbr.rel (0) target = $region29
    $region28: #{lipschitz_conv_model_forward.3} parent=1 // pred_region
      _
    $region29: #{lipschitz_conv_model_forward.3} parent=1 // pred_fallthru
      _
    %v28 = vld [vmem:[%s0] sm:$0xff]
    %v29 = vld [vmem:[%s0 + $0x8] sm:$0xff]
    %v30 = vld [vmem:[%s0 + $0x10] sm:$0xff]
    %v31 = vld [vmem:[%s0 + $0x18] sm:$0xff]
    %v32 = vld [vmem:[%s0 + $0x20] sm:$0xff]
    %v33 = vld [vmem:[%s0 + $0x28] sm:$0xff]
    %v34 = vld [vmem:[%s0 + $0x30] sm:$0x3]
    %v35 = vld [vmem:[%s1] sm:$0xf]
    %v36 = vld [vmem:[%s1 + $0x4] sm:$0xf]
    %v37 = vld [vmem:[%s1 + $0x8] sm:$0xf]
    %v38 = vld [vmem:[%s1 + $0xc] sm:$0xf]
    %v39 = vld [vmem:[%s1 + $0x10] sm:$0xf]
    %v40 = vld [vmem:[%s1 + $0x14] sm:$0xf]
    %v41 = vld [vmem:[%s1 + $0x18] sm:$0xf]
    %v42 = vld [vmem:[%s1 + $0x1c] sm:$0xf]
    %v43 = vld [vmem:[%s1 + $0x20] sm:$0xf]
    %v44 = vld [vmem:[%s1 + $0x24] sm:$0xf]
    %v45 = vld [vmem:[%s1 + $0x28] sm:$0xf]
    %v46 = vld [vmem:[%s1 + $0x2c] sm:$0xf]
    %v47 = vld [vmem:[%s1 + $0x30] sm:$0xf]
    %v48 = vld [vmem:[%s1 + $0x34] sm:$0xf]
    %v49 = vld [vmem:[%s1 + $0x38] sm:$0xf]
    %v50 = vld [vmem:[%s1 + $0x3c] sm:$0xf]
    %v51 = vld [vmem:[%s1 + $0x40] sm:$0xf]
    %v52 = vld [vmem:[%s1 + $0x44] sm:$0xf]
    %v53 = vld [vmem:[%s1 + $0x48] sm:$0xf]
    %v54 = vld [vmem:[%s1 + $0x4c] sm:$0xf]
    %v55 = vld [vmem:[%s1 + $0x50] sm:$0xf]
    %v56 = vld [vmem:[%s1 + $0x54] sm:$0xf]
    %v57 = vld [vmem:[%s1 + $0x58] sm:$0xf]
    %v58 = vld [vmem:[%s1 + $0x5c] sm:$0xf]
    %v59 = vld [vmem:[%s1 + $0x60] sm:$0xf]
    %v60 = vld [vmem:[%s1 + $0x64] sm:$0xf]
    %v61 = vld [vmem:[%s1 + $0x68] sm:$0xf]
    %v62 = vld [vmem:[%s1 + $0x6c] sm:$0xf]
    %v63 = vld [vmem:[%s1 + $0x70] sm:$0xf]
    %v64 = vld [vmem:[%s1 + $0x74] sm:$0xf]
    %v65 = vld [vmem:[%s1 + $0x78] sm:$0xf]
    %v66 = vld [vmem:[%s1 + $0x7c] sm:$0xf]
    %v67 = vld [vmem:[%s1 + $0x80] sm:$0xf]
    %v68 = vld [vmem:[%s1 + $0x84] sm:$0xf]
    %v69 = vld [vmem:[%s1 + $0x88] sm:$0xf]
    %v70 = vld [vmem:[%s1 + $0x8c] sm:$0xf]
    %v71 = vld [vmem:[%s1 + $0x90] sm:$0xf]
    %v72 = vld [vmem:[%s1 + $0x94] sm:$0xf]
    %v73 = vld [vmem:[%s1 + $0x98] sm:$0xf]
    %v74 = vld [vmem:[%s1 + $0x9c] sm:$0xf]
    %v75 = vld [vmem:[%s1 + $0xa0] sm:$0xf]
    %v76 = vld [vmem:[%s1 + $0xa4] sm:$0xf]
    %v77 = vld [vmem:[%s1 + $0xa8] sm:$0xf]
    %v78 = vld [vmem:[%s1 + $0xac] sm:$0xf]
    %v79 = vld [vmem:[%s1 + $0xb0] sm:$0xf]
    %v80 = vld [vmem:[%s1 + $0xb4] sm:$0xf]
    %v81 = vld [vmem:[%s1 + $0xb8] sm:$0xf]
    %v82 = vld [vmem:[%s1 + $0xbc] sm:$0xf]
    %v83 = vld [vmem:[%s1 + $0xc0] sm:$0xf]
    %v84 = vld [vmem:[%s1 + $0xc4] sm:$0xf]
    %v85 = vld [vmem:[%s1 + $0xc8] sm:$0xf]
    %v86 = vld [vmem:[%s1 + $0xcc] sm:$0xf]
    %v87 = vld [vmem:[%s1 + $0xd0] sm:$0xf]
    %v88 = vld [vmem:[%s1 + $0xd4] sm:$0xf]
    %v89 = vld [vmem:[%s1 + $0xd8] sm:$0xf]
    %v90 = vld [vmem:[%s1 + $0xdc] sm:$0xf]
    %v91 = vld [vmem:[%s1 + $0xe0] sm:$0xf]
    %v92 = vld [vmem:[%s1 + $0xe4] sm:$0xf]
    %v93 = vld [vmem:[%s1 + $0xe8] sm:$0xf]
    %v94 = vld [vmem:[%s1 + $0xec] sm:$0xf]
    %v95 = vld [vmem:[%s1 + $0xf0] sm:$0xf]
    %v96 = vld [vmem:[%s1 + $0xf4] sm:$0xf]
    %v97 = vld [vmem:[%s1 + $0xf8] sm:$0xf]
    %v98 = vld [vmem:[%s1 + $0xfc] sm:$0xf]
    %v99 = vld [vmem:[%s1 + $0x100] sm:$0xf]
    %v100 = vld [vmem:[%s1 + $0x104] sm:$0xf]
    %v101 = vld [vmem:[%s1 + $0x108] sm:$0xf]
    %v102 = vld [vmem:[%s1 + $0x10c] sm:$0xf]
    %v103 = vld [vmem:[%s1 + $0x110] sm:$0xf]
    %v104 = vld [vmem:[%s1 + $0x114] sm:$0xf]
    %v105 = vld [vmem:[%s1 + $0x118] sm:$0xf]
    %v106 = vld [vmem:[%s1 + $0x11c] sm:$0xf]
    %v107 = vld [vmem:[%s1 + $0x120] sm:$0xf]
    %v108 = vld [vmem:[%s1 + $0x124] sm:$0xf]
    %v109 = vld [vmem:[%s1 + $0x128] sm:$0xf]
    %v110 = vld [vmem:[%s1 + $0x12c] sm:$0xf]
    %v111 = vld [vmem:[%s1 + $0x130] sm:$0xf]
    %v112 = vld [vmem:[%s1 + $0x134] sm:$0xf]
    %v113 = vld [vmem:[%s1 + $0x138] sm:$0xf]
    %v114 = vld [vmem:[%s1 + $0x13c] sm:$0xf]
    %v115 = vld [vmem:[%s1 + $0x140] sm:$0xf]
    %v116 = vld [vmem:[%s1 + $0x144] sm:$0xf]
    %v117 = vld [vmem:[%s1 + $0x148] sm:$0xf]
    %v118 = vld [vmem:[%s1 + $0x14c] sm:$0xf]
    %v119 = vld [vmem:[%s1 + $0x150] sm:$0xf]
    %v120 = vld [vmem:[%s1 + $0x154] sm:$0xf]
    %v121 = vld [vmem:[%s1 + $0x158] sm:$0xf]
    %v122 = vld [vmem:[%s1 + $0x15c] sm:$0xf]
    %v123 = vld [vmem:[%s1 + $0x160] sm:$0xf]
    %v124 = vld [vmem:[%s1 + $0x164] sm:$0xf]
    %v125 = vld [vmem:[%s1 + $0x168] sm:$0xf]
    %v126 = vld [vmem:[%s1 + $0x16c] sm:$0xf]
    %v127 = vld [vmem:[%s1 + $0x170] sm:$0xf]
    %v128 = vld [vmem:[%s1 + $0x174] sm:$0xf]
    %v129 = vld [vmem:[%s1 + $0x178] sm:$0xf]
    %v130 = vld [vmem:[%s1 + $0x17c] sm:$0xf]
    %v131 = vld [vmem:[%s1 + $0x180] sm:$0xf]
    %v132 = vld [vmem:[%s1 + $0x184] sm:$0xf]
    %v133 = vld [vmem:[%s1 + $0x188] sm:$0xf]
    %v134 = vld [vmem:[%s1 + $0x18c] sm:$0xf]
    %v135 = vld [vmem:[%s1 + $0x190] sm:$0xf]
    %v136 = vld [vmem:[%s1 + $0x194] sm:$0xf]
    %v137 = vld [vmem:[%s1 + $0x198] sm:$0xf]
    %v138 = vld [vmem:[%s1 + $0x19c] sm:$0xf]
    %v139 = vld [vmem:[%s1 + $0x1a0] sm:$0xf]
    %v140 = vld [vmem:[%s1 + $0x1a4] sm:$0xf]
    %v141 = vld [vmem:[%s1 + $0x1a8] sm:$0xf]
    %v142 = vld [vmem:[%s1 + $0x1ac] sm:$0xf]
    %v143 = vld [vmem:[%s1 + $0x1b0] sm:$0xf]
    %v144 = vld [vmem:[%s1 + $0x1b4] sm:$0xf]
    %v145 = vld [vmem:[%s1 + $0x1b8] sm:$0xf]
    %v146 = vld [vmem:[%s1 + $0x1bc] sm:$0xf]
    %v147 = vld [vmem:[%s1 + $0x1c0] sm:$0xf]
    %v148 = vld [vmem:[%s1 + $0x1c4] sm:$0xf]
    %v149 = vld [vmem:[%s1 + $0x1c8] sm:$0xf]
    %v150 = vld [vmem:[%s1 + $0x1cc] sm:$0xf]
    %v151 = vld [vmem:[%s1 + $0x1d0] sm:$0xf]
    %v152 = vld [vmem:[%s1 + $0x1d4] sm:$0xf]
    %v153 = vld [vmem:[%s1 + $0x1d8] sm:$0xf]
    %v154 = vld [vmem:[%s1 + $0x1dc] sm:$0xf]
    %v155 = vld [vmem:[%s1 + $0x1e0] sm:$0xf]
    %v156 = vld [vmem:[%s1 + $0x1e4] sm:$0xf]
    %v157 = vld [vmem:[%s1 + $0x1e8] sm:$0xf]
    %v158 = vld [vmem:[%s1 + $0x1ec] sm:$0xf]
    %v159 = vld [vmem:[%s1 + $0x1f0] sm:$0xf]
    %v160 = vld [vmem:[%s1 + $0x1f4] sm:$0xf]
    %v161 = vld [vmem:[%s1 + $0x1f8] sm:$0xf]
    %v162 = vld [vmem:[%s1 + $0x1fc] sm:$0xf]
    %v163 = vld [vmem:[%s1 + $0x200] sm:$0xf]
    %v164 = vld [vmem:[%s1 + $0x204] sm:$0xf]
    %v165 = vld [vmem:[%s1 + $0x208] sm:$0xf]
    %v166 = vld [vmem:[%s1 + $0x20c] sm:$0xf]
    %v167 = vld [vmem:[%s1 + $0x210] sm:$0xf]
    %v168 = vld [vmem:[%s1 + $0x214] sm:$0xf]
    %v169 = vld [vmem:[%s1 + $0x218] sm:$0xf]
    %v170 = vld [vmem:[%s1 + $0x21c] sm:$0xf]
    %v171 = vld [vmem:[%s1 + $0x220] sm:$0xf]
    %v172 = vld [vmem:[%s1 + $0x224] sm:$0xf]
    %v173 = vld [vmem:[%s1 + $0x228] sm:$0xf]
    %v174 = vld [vmem:[%s1 + $0x22c] sm:$0xf]
    %v175 = vld [vmem:[%s1 + $0x230] sm:$0xf]
    %v176 = vld [vmem:[%s1 + $0x234] sm:$0xf]
    %v177 = vld [vmem:[%s1 + $0x238] sm:$0xf]
    %v178 = vld [vmem:[%s1 + $0x23c] sm:$0xf]
    %v179 = vld [vmem:[%s1 + $0x240] sm:$0xf]
    %v180 = vld [vmem:[%s1 + $0x244] sm:$0xf]
    %v181 = vld [vmem:[%s1 + $0x248] sm:$0xf]
    %v182 = vld [vmem:[%s1 + $0x24c] sm:$0xf]
    %v183 = vld [vmem:[%s1 + $0x250] sm:$0xf]
    %v184 = vld [vmem:[%s1 + $0x254] sm:$0xf]
    %v185 = vld [vmem:[%s1 + $0x258] sm:$0xf]
    %v186 = vld [vmem:[%s1 + $0x25c] sm:$0xf]
    %v187 = vld [vmem:[%s1 + $0x260] sm:$0xf]
    %v188 = vld [vmem:[%s1 + $0x264] sm:$0xf]
    %v189 = vld [vmem:[%s1 + $0x268] sm:$0xf]
    %v190 = vld [vmem:[%s1 + $0x26c] sm:$0xf]
    %v191 = vld [vmem:[%s1 + $0x270] sm:$0xf]
    %v192 = vld [vmem:[%s1 + $0x274] sm:$0xf]
    %v193 = vld [vmem:[%s1 + $0x278] sm:$0xf]
    %v194 = vld [vmem:[%s1 + $0x27c] sm:$0xf]
    %v195 = vld [vmem:[%s1 + $0x280] sm:$0xf]
    %v196 = vld [vmem:[%s1 + $0x284] sm:$0xf]
    %v197 = vld [vmem:[%s1 + $0x288] sm:$0xf]
    %v198 = vld [vmem:[%s1 + $0x28c] sm:$0xf]
    %v199 = vld [vmem:[%s1 + $0x290] sm:$0xf]
    %v200 = vld [vmem:[%s1 + $0x294] sm:$0xf]
    %v201 = vld [vmem:[%s1 + $0x298] sm:$0xf]
    %v202 = vld [vmem:[%s1 + $0x29c] sm:$0xf]
    %v203 = vld [vmem:[%s1 + $0x2a0] sm:$0xf]
    %v204 = vld [vmem:[%s1 + $0x2a4] sm:$0xf]
    %v205 = vld [vmem:[%s1 + $0x2a8] sm:$0xf]
    %v206 = vld [vmem:[%s1 + $0x2ac] sm:$0xf]
    %v207 = vld [vmem:[%s1 + $0x2b0] sm:$0xf]
    %v208 = vld [vmem:[%s1 + $0x2b4] sm:$0xf]
    %v209 = vld [vmem:[%s1 + $0x2b8] sm:$0xf]
    %v210 = vld [vmem:[%s1 + $0x2bc] sm:$0xf]
    %v211 = vld [vmem:[%s1 + $0x2c0] sm:$0xf]
    %v212 = vld [vmem:[%s1 + $0x2c4] sm:$0xf]
    %v213 = vld [vmem:[%s1 + $0x2c8] sm:$0xf]
    %v214 = vld [vmem:[%s1 + $0x2cc] sm:$0xf]
    %v215 = vld [vmem:[%s1 + $0x2d0] sm:$0xf]
    %v216 = vld [vmem:[%s1 + $0x2d4] sm:$0xf]
    %v217 = vld [vmem:[%s1 + $0x2d8] sm:$0xf]
    %v218 = vld [vmem:[%s1 + $0x2dc] sm:$0xf]
    %v219 = vld [vmem:[%s1 + $0x2e0] sm:$0xf]
    %v220 = vld [vmem:[%s1 + $0x2e4] sm:$0xf]
    %v221 = vld [vmem:[%s1 + $0x2e8] sm:$0xf]
    %v222 = vld [vmem:[%s1 + $0x2ec] sm:$0xf]
    %v223 = vld [vmem:[%s1 + $0x2f0] sm:$0xf]
    %v224 = vld [vmem:[%s1 + $0x2f4] sm:$0xf]
    %v225 = vld [vmem:[%s1 + $0x2f8] sm:$0xf]
    %v226 = vld [vmem:[%s1 + $0x2fc] sm:$0xf]
    %v227 = vld [vmem:[%s1 + $0x300] sm:$0xf]
    %v228 = vld [vmem:[%s1 + $0x304] sm:$0xf]
    %v229 = vld [vmem:[%s1 + $0x308] sm:$0xf]
    %v230 = vld [vmem:[%s1 + $0x30c] sm:$0xf]
    %v231 = vld [vmem:[%s1 + $0x310] sm:$0xf]
    %v232 = vld [vmem:[%s1 + $0x314] sm:$0xf]
    %v233 = vld [vmem:[%s1 + $0x318] sm:$0xf]
    %v234 = vld [vmem:[%s1 + $0x31c] sm:$0xf]
    %v235 = vld [vmem:[%s1 + $0x320] sm:$0xf]
    %v236 = vld [vmem:[%s1 + $0x324] sm:$0xf]
    %v237 = vld [vmem:[%s1 + $0x328] sm:$0xf]
    %v238 = vld [vmem:[%s1 + $0x32c] sm:$0xf]
    %v239 = vld [vmem:[%s1 + $0x330] sm:$0xf]
    %v240 = vld [vmem:[%s1 + $0x334] sm:$0xf]
    %v241 = vld [vmem:[%s1 + $0x338] sm:$0xf]
    %v242 = vld [vmem:[%s1 + $0x33c] sm:$0xf]
    %v243 = vld [vmem:[%s1 + $0x340] sm:$0xf]
    %v244 = vld [vmem:[%s1 + $0x344] sm:$0xf]
    %v245 = vld [vmem:[%s1 + $0x348] sm:$0xf]
    %v246 = vld [vmem:[%s1 + $0x34c] sm:$0xf]
    %v247 = vld [vmem:[%s1 + $0x350] sm:$0xf]
    %v248 = vld [vmem:[%s1 + $0x354] sm:$0xf]
    %v249 = vld [vmem:[%s1 + $0x358] sm:$0xf]
    %v250 = vld [vmem:[%s1 + $0x35c] sm:$0xf]
    %v251 = vld [vmem:[%s1 + $0x360] sm:$0xf]
    %v252 = vld [vmem:[%s1 + $0x364] sm:$0xf]
    %v253 = vld [vmem:[%s1 + $0x368] sm:$0xf]
    %v254 = vld [vmem:[%s1 + $0x36c] sm:$0xf]
    %v255 = vld [vmem:[%s1 + $0x370] sm:$0xf]
    %v256 = vld [vmem:[%s1 + $0x374] sm:$0xf]
    %v257 = vld [vmem:[%s1 + $0x378] sm:$0xf]
    %v258 = vld [vmem:[%s1 + $0x37c] sm:$0xf]
    %v259 = vld [vmem:[%s1 + $0x380] sm:$0xf]
    %v260 = vld [vmem:[%s1 + $0x384] sm:$0xf]
    %v261 = vld [vmem:[%s1 + $0x388] sm:$0xf]
    %v262 = vld [vmem:[%s1 + $0x38c] sm:$0xf]
    %v263 = vld [vmem:[%s1 + $0x390] sm:$0xf]
    %v264 = vld [vmem:[%s1 + $0x394] sm:$0xf]
    %v265 = vld [vmem:[%s1 + $0x398] sm:$0xf]
    %v266 = vld [vmem:[%s1 + $0x39c] sm:$0xf]
    %v267 = vld [vmem:[%s1 + $0x3a0] sm:$0xf]
    %v268 = vld [vmem:[%s1 + $0x3a4] sm:$0xf]
    %v269 = vld [vmem:[%s1 + $0x3a8] sm:$0xf]
    %v270 = vld [vmem:[%s1 + $0x3ac] sm:$0xf]
    %v271 = vld [vmem:[%s1 + $0x3b0] sm:$0xf]
    %v272 = vld [vmem:[%s1 + $0x3b4] sm:$0xf]
    %v273 = vld [vmem:[%s1 + $0x3b8] sm:$0xf]
    %v274 = vld [vmem:[%s1 + $0x3bc] sm:$0xf]
    %v275 = vld [vmem:[%s1 + $0x3c0] sm:$0xf]
    %v276 = vld [vmem:[%s1 + $0x3c4] sm:$0xf]
    %v277 = vld [vmem:[%s1 + $0x3c8] sm:$0xf]
    %v278 = vld [vmem:[%s1 + $0x3cc] sm:$0xf]
    %v279 = vld [vmem:[%s1 + $0x3d0] sm:$0xf]
    %v280 = vld [vmem:[%s1 + $0x3d4] sm:$0xf]
    %v281 = vld [vmem:[%s1 + $0x3d8] sm:$0xf]
    %v282 = vld [vmem:[%s1 + $0x3dc] sm:$0xf]
    %v283 = vld [vmem:[%s1 + $0x3e0] sm:$0xf]
    %v284 = vld [vmem:[%s1 + $0x3e4] sm:$0xf]
    %v285 = vld [vmem:[%s1 + $0x3e8] sm:$0xf]
    %v286 = vld [vmem:[%s1 + $0x3ec] sm:$0xf]
    %v287 = vld [vmem:[%s1 + $0x3f0] sm:$0xf]
    %v288 = vld [vmem:[%s1 + $0x3f4] sm:$0xf]
    %v289 = vld [vmem:[%s1 + $0x3f8] sm:$0xf]
    %v290 = vld [vmem:[%s1 + $0x3fc] sm:$0xf]
    %v291 = vld [vmem:[%s1 + $0x400] sm:$0xf]
    %v292 = vld [vmem:[%s1 + $0x404] sm:$0xf]
    %v293 = vld [vmem:[%s1 + $0x408] sm:$0xf]
    %v294 = vld [vmem:[%s1 + $0x40c] sm:$0xf]
    %v295 = vld [vmem:[%s1 + $0x410] sm:$0xf]
    %v296 = vld [vmem:[%s1 + $0x414] sm:$0xf]
    %v297 = vld [vmem:[%s1 + $0x418] sm:$0xf]
    %v298 = vld [vmem:[%s1 + $0x41c] sm:$0xf]
    %v299 = vld [vmem:[%s1 + $0x420] sm:$0xf]
    %v300 = vld [vmem:[%s1 + $0x424] sm:$0xf]
    %v301 = vld [vmem:[%s1 + $0x428] sm:$0xf]
    %v302 = vld [vmem:[%s1 + $0x42c] sm:$0xf]
    %v303 = vld [vmem:[%s1 + $0x430] sm:$0xf]
    %v304 = vld [vmem:[%s1 + $0x434] sm:$0xf]
    %v305 = vld [vmem:[%s1 + $0x438] sm:$0xf]
    %v306 = vld [vmem:[%s1 + $0x43c] sm:$0xf]
    %v307 = vld [vmem:[%s1 + $0x440] sm:$0xf]
    %v308 = vld [vmem:[%s1 + $0x444] sm:$0xf]
    %v309 = vld [vmem:[%s1 + $0x448] sm:$0xf]
    %v310 = vld [vmem:[%s1 + $0x44c] sm:$0xf]
    %v311 = vld [vmem:[%s1 + $0x450] sm:$0xf]
    %v312 = vld [vmem:[%s1 + $0x454] sm:$0xf]
    %v313 = vld [vmem:[%s1 + $0x458] sm:$0xf]
    %v314 = vld [vmem:[%s1 + $0x45c] sm:$0xf]
    %v315 = vld [vmem:[%s1 + $0x460] sm:$0xf]
    %v316 = vld [vmem:[%s1 + $0x464] sm:$0xf]
    %v317 = vld [vmem:[%s1 + $0x468] sm:$0xf]
    %v318 = vld [vmem:[%s1 + $0x46c] sm:$0xf]
    %v319 = vld [vmem:[%s1 + $0x470] sm:$0xf]
    %v320 = vld [vmem:[%s1 + $0x474] sm:$0xf]
    %v321 = vld [vmem:[%s1 + $0x478] sm:$0xf]
    %v322 = vld [vmem:[%s1 + $0x47c] sm:$0xf]
    %v323 = vld [vmem:[%s1 + $0x480] sm:$0xf]
    %v324 = vld [vmem:[%s1 + $0x484] sm:$0xf]
    %v325 = vld [vmem:[%s1 + $0x488] sm:$0xf]
    %v326 = vld [vmem:[%s1 + $0x48c] sm:$0xf]
    %v327 = vld [vmem:[%s1 + $0x490] sm:$0xf]
    %v328 = vld [vmem:[%s1 + $0x494] sm:$0xf]
    %v329 = vld [vmem:[%s1 + $0x498] sm:$0xf]
    %v330 = vld [vmem:[%s1 + $0x49c] sm:$0xf]
    %v331 = vld [vmem:[%s1 + $0x4a0] sm:$0xf]
    %v332 = vld [vmem:[%s1 + $0x4a4] sm:$0xf]
    %v333 = vld [vmem:[%s1 + $0x4a8] sm:$0xf]
    %v334 = vld [vmem:[%s1 + $0x4ac] sm:$0xf]
    %v335 = vld [vmem:[%s1 + $0x4b0] sm:$0xf]
    %v336 = vld [vmem:[%s1 + $0x4b4] sm:$0xf]
    %v337 = vld [vmem:[%s1 + $0x4b8] sm:$0xf]
    %v338 = vld [vmem:[%s1 + $0x4bc] sm:$0xf]
    %v339 = vld [vmem:[%s1 + $0x4c0] sm:$0xf]
    %v340 = vld [vmem:[%s1 + $0x4c4] sm:$0xf]
    %v341 = vld [vmem:[%s1 + $0x4c8] sm:$0xf]
    %v342 = vld [vmem:[%s1 + $0x4cc] sm:$0xf]
    %v343 = vld [vmem:[%s1 + $0x4d0] sm:$0xf]
    %v344 = vld [vmem:[%s1 + $0x4d4] sm:$0xf]
    %v345 = vld [vmem:[%s1 + $0x4d8] sm:$0xf]
    %v346 = vld [vmem:[%s1 + $0x4dc] sm:$0xf]
    %v347 = vld [vmem:[%s1 + $0x4e0] sm:$0xf]
    %v348 = vld [vmem:[%s1 + $0x4e4] sm:$0xf]
    %v349 = vld [vmem:[%s1 + $0x4e8] sm:$0xf]
    %v350 = vld [vmem:[%s1 + $0x4ec] sm:$0xf]
    %v351 = vld [vmem:[%s1 + $0x4f0] sm:$0xf]
    %v352 = vld [vmem:[%s1 + $0x4f4] sm:$0xf]
    %v353 = vld [vmem:[%s1 + $0x4f8] sm:$0xf]
    %v354 = vld [vmem:[%s1 + $0x4fc] sm:$0xf]
    %v355 = vld [vmem:[%s1 + $0x500] sm:$0xf]
    %v356 = vld [vmem:[%s1 + $0x504] sm:$0xf]
    %v357 = vld [vmem:[%s1 + $0x508] sm:$0xf]
    %v358 = vld [vmem:[%s1 + $0x50c] sm:$0xf]
    %v359 = vld [vmem:[%s1 + $0x510] sm:$0xf]
    %v360 = vld [vmem:[%s1 + $0x514] sm:$0xf]
    %v361 = vld [vmem:[%s1 + $0x518] sm:$0xf]
    %v362 = vld [vmem:[%s1 + $0x51c] sm:$0xf]
    %v363 = vld [vmem:[%s1 + $0x520] sm:$0xf]
    %v364 = vld [vmem:[%s1 + $0x524] sm:$0xf]
    %v365 = vld [vmem:[%s1 + $0x528] sm:$0xf]
    %v366 = vld [vmem:[%s1 + $0x52c] sm:$0xf]
    %v367 = vld [vmem:[%s1 + $0x530] sm:$0xf]
    %v368 = vld [vmem:[%s1 + $0x534] sm:$0xf]
    %v369 = vld [vmem:[%s1 + $0x538] sm:$0xf]
    %v370 = vld [vmem:[%s1 + $0x53c] sm:$0xf]
    %v371 = vld [vmem:[%s1 + $0x540] sm:$0xf]
    %v372 = vld [vmem:[%s1 + $0x544] sm:$0xf]
    %v373 = vld [vmem:[%s1 + $0x548] sm:$0xf]
    %v374 = vld [vmem:[%s1 + $0x54c] sm:$0xf]
    %v375 = vld [vmem:[%s1 + $0x550] sm:$0xf]
    %v376 = vld [vmem:[%s1 + $0x554] sm:$0xf]
    %v377 = vld [vmem:[%s1 + $0x558] sm:$0xf]
    %v378 = vld [vmem:[%s1 + $0x55c] sm:$0xf]
    %v379 = vld [vmem:[%s1 + $0x560] sm:$0xf]
    %v380 = vld [vmem:[%s1 + $0x564] sm:$0xf]
    %v381 = vld [vmem:[%s1 + $0x568] sm:$0xf]
    %v382 = vld [vmem:[%s1 + $0x56c] sm:$0xf]
    %v383 = vld [vmem:[%s1 + $0x570] sm:$0xf]
    %v384 = vld [vmem:[%s1 + $0x574] sm:$0xf]
    %v385 = vld [vmem:[%s1 + $0x578] sm:$0xf]
    %v386 = vld [vmem:[%s1 + $0x57c] sm:$0xf]
    %v387 = vld [vmem:[%s1 + $0x580] sm:$0xf]
    %v388 = vld [vmem:[%s1 + $0x584] sm:$0xf]
    %v389 = vld [vmem:[%s1 + $0x588] sm:$0xf]
    %v390 = vld [vmem:[%s1 + $0x58c] sm:$0xf]
    %v391 = vld [vmem:[%s1 + $0x590] sm:$0xf]
    %v392 = vld [vmem:[%s1 + $0x594] sm:$0xf]
    %v393 = vld [vmem:[%s1 + $0x598] sm:$0xf]
    %v394 = vld [vmem:[%s1 + $0x59c] sm:$0xf]
    %v395 = vld [vmem:[%s1 + $0x5a0] sm:$0xf]
    %v396 = vld [vmem:[%s1 + $0x5a4] sm:$0xf]
    %v397 = vld [vmem:[%s1 + $0x5a8] sm:$0xf]
    %v398 = vld [vmem:[%s1 + $0x5ac] sm:$0xf]
    %v399 = vld [vmem:[%s1 + $0x5b0] sm:$0xf]
    %v400 = vld [vmem:[%s1 + $0x5b4] sm:$0xf]
    %v401 = vld [vmem:[%s1 + $0x5b8] sm:$0xf]
    %v402 = vld [vmem:[%s1 + $0x5bc] sm:$0xf]
    %v403 = vld [vmem:[%s1 + $0x5c0] sm:$0xf]
    %v404 = vld [vmem:[%s1 + $0x5c4] sm:$0xf]
    %v405 = vld [vmem:[%s1 + $0x5c8] sm:$0xf]
    %v406 = vld [vmem:[%s1 + $0x5cc] sm:$0xf]
    %v407 = vld [vmem:[%s1 + $0x5d0] sm:$0xf]
    %v408 = vld [vmem:[%s1 + $0x5d4] sm:$0xf]
    %v409 = vld [vmem:[%s1 + $0x5d8] sm:$0xf]
    %v410 = vld [vmem:[%s1 + $0x5dc] sm:$0xf]
    %v411 = vld [vmem:[%s1 + $0x5e0] sm:$0xf]
    %v412 = vld [vmem:[%s1 + $0x5e4] sm:$0xf]
    %v413 = vld [vmem:[%s1 + $0x5e8] sm:$0xf]
    %v414 = vld [vmem:[%s1 + $0x5ec] sm:$0xf]
    %v415 = vld [vmem:[%s1 + $0x5f0] sm:$0xf]
    %v416 = vld [vmem:[%s1 + $0x5f4] sm:$0xf]
    %v417 = vld [vmem:[%s1 + $0x5f8] sm:$0xf]
    %v418 = vld [vmem:[%s1 + $0x5fc] sm:$0xf]
    %v419 = vld [vmem:[%s1 + $0x600] sm:$0xf]
    %v420 = vld [vmem:[%s1 + $0x604] sm:$0xf]
    %v421 = vld [vmem:[%s1 + $0x608] sm:$0xf]
    %v422 = vld [vmem:[%s1 + $0x60c] sm:$0xf]
    %v423 = vld [vmem:[%s1 + $0x610] sm:$0xf]
    %v424 = vld [vmem:[%s1 + $0x614] sm:$0xf]
    %v425 = vld [vmem:[%s1 + $0x618] sm:$0xf]
    %v426 = vld [vmem:[%s1 + $0x61c] sm:$0xf]
    %v427 = vld [vmem:[%s1 + $0x620] sm:$0xf]
    %v428 = vld [vmem:[%s1 + $0x624] sm:$0xf]
    %v429 = vld [vmem:[%s1 + $0x628] sm:$0xf]
    %v430 = vld [vmem:[%s1 + $0x62c] sm:$0xf]
    %v431 = vld [vmem:[%s1 + $0x630] sm:$0xf]
    %v432 = vld [vmem:[%s1 + $0x634] sm:$0xf]
    %v433 = vld [vmem:[%s1 + $0x638] sm:$0xf]
    %v434 = vld [vmem:[%s1 + $0x63c] sm:$0xf]
    %v435 = vld [vmem:[%s1 + $0x640] sm:$0xf]
    %v436 = vld [vmem:[%s1 + $0x644] sm:$0xf]
    %v437 = vld [vmem:[%s1 + $0x648] sm:$0xf]
    %v438 = vld [vmem:[%s1 + $0x64c] sm:$0xf]
    %v439 = vld [vmem:[%s1 + $0x650] sm:$0xf]
    %v440 = vld [vmem:[%s1 + $0x654] sm:$0xf]
    %v441 = vld [vmem:[%s1 + $0x658] sm:$0xf]
    %v442 = vld [vmem:[%s1 + $0x65c] sm:$0xf]
    %v443 = vld [vmem:[%s1 + $0x660] sm:$0xf]
    %v444 = vld [vmem:[%s1 + $0x664] sm:$0xf]
    %v445 = vld [vmem:[%s1 + $0x668] sm:$0xf]
    %v446 = vld [vmem:[%s1 + $0x66c] sm:$0xf]
    %v447 = vld [vmem:[%s1 + $0x670] sm:$0xf]
    %v448 = vld [vmem:[%s1 + $0x674] sm:$0xf]
    %v449 = vld [vmem:[%s1 + $0x678] sm:$0xf]
    %v450 = vld [vmem:[%s1 + $0x67c] sm:$0xf]
    %v451 = vld [vmem:[%s1 + $0x680] sm:$0xf]
    %v452 = vld [vmem:[%s1 + $0x684] sm:$0xf]
    %v453 = vld [vmem:[%s1 + $0x688] sm:$0xf]
    %v454 = vld [vmem:[%s1 + $0x68c] sm:$0xf]
    %v455 = vld [vmem:[%s1 + $0x690] sm:$0xf]
    %v456 = vld [vmem:[%s1 + $0x694] sm:$0xf]
    %v457 = vld [vmem:[%s1 + $0x698] sm:$0xf]
    %v458 = vld [vmem:[%s1 + $0x69c] sm:$0xf]
    %v459 = vld [vmem:[%s1 + $0x6a0] sm:$0xf]
    %v460 = vld [vmem:[%s1 + $0x6a4] sm:$0xf]
    %v461 = vld [vmem:[%s1 + $0x6a8] sm:$0xf]
    %v462 = vld [vmem:[%s1 + $0x6ac] sm:$0xf]
    %v463 = vld [vmem:[%s1 + $0x6b0] sm:$0xf]
    %v464 = vld [vmem:[%s1 + $0x6b4] sm:$0xf]
    %v465 = vld [vmem:[%s1 + $0x6b8] sm:$0xf]
    %v466 = vld [vmem:[%s1 + $0x6bc] sm:$0xf]
    %v467 = vld [vmem:[%s1 + $0x6c0] sm:$0xf]
    %v468 = vld [vmem:[%s1 + $0x6c4] sm:$0xf]
    %v469 = vld [vmem:[%s1 + $0x6c8] sm:$0xf]
    %v470 = vld [vmem:[%s1 + $0x6cc] sm:$0xf]
    %v471 = vld [vmem:[%s1 + $0x6d0] sm:$0xf]
    %v472 = vld [vmem:[%s1 + $0x6d4] sm:$0xf]
    %v473 = vld [vmem:[%s1 + $0x6d8] sm:$0xf]
    %v474 = vld [vmem:[%s1 + $0x6dc] sm:$0xf]
    %v475 = vld [vmem:[%s1 + $0x6e0] sm:$0xf]
    %v476 = vld [vmem:[%s1 + $0x6e4] sm:$0xf]
    %v477 = vld [vmem:[%s1 + $0x6e8] sm:$0xf]
    %v478 = vld [vmem:[%s1 + $0x6ec] sm:$0xf]
    %v479 = vld [vmem:[%s1 + $0x6f0] sm:$0xf]
    %v480 = vld [vmem:[%s1 + $0x6f4] sm:$0xf]
    %v481 = vld [vmem:[%s1 + $0x6f8] sm:$0xf]
    %v482 = vld [vmem:[%s1 + $0x6fc] sm:$0xf]
    %v483 = vld [vmem:[%s1 + $0x700] sm:$0xf]
    %v484 = vld [vmem:[%s1 + $0x704] sm:$0xf]
    %v485 = vld [vmem:[%s1 + $0x708] sm:$0xf]
    %v486 = vld [vmem:[%s1 + $0x70c] sm:$0xf]
    %v487 = vld [vmem:[%s1 + $0x710] sm:$0xf]
    %v488 = vld [vmem:[%s1 + $0x714] sm:$0xf]
    %v489 = vld [vmem:[%s1 + $0x718] sm:$0xf]
    %v490 = vld [vmem:[%s1 + $0x71c] sm:$0xf]
    %v491 = vld [vmem:[%s1 + $0x720] sm:$0xf]
    %v492 = vld [vmem:[%s1 + $0x724] sm:$0xf]
    %v493 = vld [vmem:[%s1 + $0x728] sm:$0xf]
    %v494 = vld [vmem:[%s1 + $0x72c] sm:$0xf]
    %v495 = vld [vmem:[%s1 + $0x730] sm:$0xf]
    %v496 = vld [vmem:[%s1 + $0x734] sm:$0xf]
    %v497 = vld [vmem:[%s1 + $0x738] sm:$0xf]
    %v498 = vld [vmem:[%s1 + $0x73c] sm:$0xf]
    %v499 = vld [vmem:[%s1 + $0x740] sm:$0xf]
    %v500 = vld [vmem:[%s1 + $0x744] sm:$0xf]
    %v501 = vld [vmem:[%s1 + $0x748] sm:$0xf]
    %v502 = vld [vmem:[%s1 + $0x74c] sm:$0xf]
    %v503 = vld [vmem:[%s1 + $0x750] sm:$0xf]
    %v504 = vld [vmem:[%s1 + $0x754] sm:$0xf]
    %v505 = vld [vmem:[%s1 + $0x758] sm:$0xf]
    %v506 = vld [vmem:[%s1 + $0x75c] sm:$0xf]
    %v507 = vld [vmem:[%s1 + $0x760] sm:$0xf]
    %v508 = vld [vmem:[%s1 + $0x764] sm:$0xf]
    %v509 = vld [vmem:[%s1 + $0x768] sm:$0xf]
    %v510 = vld [vmem:[%s1 + $0x76c] sm:$0xf]
    %v511 = vld [vmem:[%s1 + $0x770] sm:$0xf]
    %v512 = vld [vmem:[%s1 + $0x774] sm:$0xf]
    %v513 = vld [vmem:[%s1 + $0x778] sm:$0xf]
    %v514 = vld [vmem:[%s1 + $0x77c] sm:$0xf]
    %v515 = vld [vmem:[%s1 + $0x780] sm:$0xf]
    %v516 = vld [vmem:[%s1 + $0x784] sm:$0xf]
    %v517 = vld [vmem:[%s1 + $0x788] sm:$0xf]
    %v518 = vld [vmem:[%s1 + $0x78c] sm:$0xf]
    %v519 = vld [vmem:[%s1 + $0x790] sm:$0xf]
    %v520 = vld [vmem:[%s1 + $0x794] sm:$0xf]
    %v521 = vld [vmem:[%s1 + $0x798] sm:$0xf]
    %v522 = vld [vmem:[%s1 + $0x79c] sm:$0xf]
    %v523 = vld [vmem:[%s1 + $0x7a0] sm:$0xf]
    %v524 = vld [vmem:[%s1 + $0x7a4] sm:$0xf]
    %v525 = vld [vmem:[%s1 + $0x7a8] sm:$0xf]
    %v526 = vld [vmem:[%s1 + $0x7ac] sm:$0xf]
    %v527 = vld [vmem:[%s1 + $0x7b0] sm:$0xf]
    %v528 = vld [vmem:[%s1 + $0x7b4] sm:$0xf]
    %v529 = vld [vmem:[%s1 + $0x7b8] sm:$0xf]
    %v530 = vld [vmem:[%s1 + $0x7bc] sm:$0xf]
    %v531 = vld [vmem:[%s1 + $0x7c0] sm:$0xf]
    %v532 = vld [vmem:[%s1 + $0x7c4] sm:$0xf]
    %v533 = vld [vmem:[%s1 + $0x7c8] sm:$0xf]
    %v534 = vld [vmem:[%s1 + $0x7cc] sm:$0xf]
    %v535 = vld [vmem:[%s1 + $0x7d0] sm:$0xf]
    %v536 = vld [vmem:[%s1 + $0x7d4] sm:$0xf]
    %v537 = vld [vmem:[%s1 + $0x7d8] sm:$0xf]
    %v538 = vld [vmem:[%s1 + $0x7dc] sm:$0xf]
    %v539 = vld [vmem:[%s1 + $0x7e0] sm:$0xf]
    %v540 = vld [vmem:[%s1 + $0x7e4] sm:$0xf]
    %v541 = vld [vmem:[%s1 + $0x7e8] sm:$0xf]
    %v542 = vld [vmem:[%s1 + $0x7ec] sm:$0xf]
    %v543 = vld [vmem:[%s1 + $0x7f0] sm:$0xf]
    %v544 = vld [vmem:[%s1 + $0x7f4] sm:$0xf]
    %v545 = vld [vmem:[%s1 + $0x7f8] sm:$0xf]
    %v546 = vld [vmem:[%s1 + $0x7fc] sm:$0xf]
    %v547 = vld [vmem:[%s1 + $0x800] sm:$0xf]
    %v548 = vld [vmem:[%s1 + $0x804] sm:$0xf]
    %v549 = vld [vmem:[%s1 + $0x808] sm:$0xf]
    %v550 = vld [vmem:[%s1 + $0x80c] sm:$0xf]
    %v551 = vld [vmem:[%s1 + $0x810] sm:$0xf]
    %v552 = vld [vmem:[%s1 + $0x814] sm:$0xf]
    %v553 = vld [vmem:[%s1 + $0x818] sm:$0xf]
    %v554 = vld [vmem:[%s1 + $0x81c] sm:$0xf]
    %v555 = vld [vmem:[%s1 + $0x820] sm:$0xf]
    %v556 = vld [vmem:[%s1 + $0x824] sm:$0xf]
    %v557 = vld [vmem:[%s1 + $0x828] sm:$0xf]
    %v558 = vld [vmem:[%s1 + $0x82c] sm:$0xf]
    %v559 = vld [vmem:[%s1 + $0x830] sm:$0xf]
    %v560 = vld [vmem:[%s1 + $0x834] sm:$0xf]
    %v561 = vld [vmem:[%s1 + $0x838] sm:$0xf]
    %v562 = vld [vmem:[%s1 + $0x83c] sm:$0xf]
    %v563 = vld [vmem:[%s1 + $0x840] sm:$0xf]
    %v564 = vld [vmem:[%s1 + $0x844] sm:$0xf]
    %v565 = vld [vmem:[%s1 + $0x848] sm:$0xf]
    %v566 = vld [vmem:[%s1 + $0x84c] sm:$0xf]
    %v567 = vld [vmem:[%s1 + $0x850] sm:$0xf]
    %v568 = vld [vmem:[%s1 + $0x854] sm:$0xf]
    %v569 = vld [vmem:[%s1 + $0x858] sm:$0xf]
    %v570 = vld [vmem:[%s1 + $0x85c] sm:$0xf]
    %v571 = vld [vmem:[%s1 + $0x860] sm:$0xf]
    %v572 = vld [vmem:[%s1 + $0x864] sm:$0xf]
    %v573 = vld [vmem:[%s1 + $0x868] sm:$0xf]
    %v574 = vld [vmem:[%s1 + $0x86c] sm:$0xf]
    %v575 = vld [vmem:[%s1 + $0x870] sm:$0xf]
    %v576 = vld [vmem:[%s1 + $0x874] sm:$0xf]
    %v577 = vld [vmem:[%s1 + $0x878] sm:$0xf]
    %v578 = vld [vmem:[%s1 + $0x87c] sm:$0xf]
    %v579 = vld [vmem:[%s1 + $0x880] sm:$0xf]
    %v580 = vld [vmem:[%s1 + $0x884] sm:$0xf]
    %v581 = vld [vmem:[%s1 + $0x888] sm:$0xf]
    %v582 = vld [vmem:[%s1 + $0x88c] sm:$0xf]
    %v583 = vld [vmem:[%s1 + $0x890] sm:$0xf]
    %v584 = vld [vmem:[%s1 + $0x894] sm:$0xf]
    %v585 = vld [vmem:[%s1 + $0x898] sm:$0xf]
    %v586 = vld [vmem:[%s1 + $0x89c] sm:$0xf]
    %v587 = vld [vmem:[%s1 + $0x8a0] sm:$0xf]
    %v588 = vld [vmem:[%s1 + $0x8a4] sm:$0xf]
    %v589 = vld [vmem:[%s1 + $0x8a8] sm:$0xf]
    %v590 = vld [vmem:[%s1 + $0x8ac] sm:$0xf]
    %v591 = vld [vmem:[%s1 + $0x8b0] sm:$0xf]
    %v592 = vld [vmem:[%s1 + $0x8b4] sm:$0xf]
    %v593 = vld [vmem:[%s1 + $0x8b8] sm:$0xf]
    %v594 = vld [vmem:[%s1 + $0x8bc] sm:$0xf]
    %v595 = vld [vmem:[%s1 + $0x8c0] sm:$0xf]
    %v596 = vld [vmem:[%s1 + $0x8c4] sm:$0xf]
    %v597 = vld [vmem:[%s1 + $0x8c8] sm:$0xf]
    %v598 = vld [vmem:[%s1 + $0x8cc] sm:$0xf]
    %v599 = vld [vmem:[%s1 + $0x8d0] sm:$0xf]
    %v600 = vld [vmem:[%s1 + $0x8d4] sm:$0xf]
    %v601 = vld [vmem:[%s1 + $0x8d8] sm:$0xf]
    %v602 = vld [vmem:[%s1 + $0x8dc] sm:$0xf]
    %v603 = vld [vmem:[%s1 + $0x8e0] sm:$0xf]
    %v604 = vld [vmem:[%s1 + $0x8e4] sm:$0xf]
    %v605 = vld [vmem:[%s1 + $0x8e8] sm:$0xf]
    %v606 = vld [vmem:[%s1 + $0x8ec] sm:$0xf]
    %v607 = vld [vmem:[%s1 + $0x8f0] sm:$0xf]
    %v608 = vld [vmem:[%s1 + $0x8f4] sm:$0xf]
    %v609 = vld [vmem:[%s1 + $0x8f8] sm:$0xf]
    %v610 = vld [vmem:[%s1 + $0x8fc] sm:$0xf]
    %v611 = vld [vmem:[%s1 + $0x900] sm:$0xf]
    %v612 = vld [vmem:[%s1 + $0x904] sm:$0xf]
    %v613 = vld [vmem:[%s1 + $0x908] sm:$0xf]
    %v614 = vld [vmem:[%s1 + $0x90c] sm:$0xf]
    %v615 = vld [vmem:[%s1 + $0x910] sm:$0xf]
    %v616 = vld [vmem:[%s1 + $0x914] sm:$0xf]
    %v617 = vld [vmem:[%s1 + $0x918] sm:$0xf]
    %v618 = vld [vmem:[%s1 + $0x91c] sm:$0xf]
    %v619 = vld [vmem:[%s1 + $0x920] sm:$0xf]
    %v620 = vld [vmem:[%s1 + $0x924] sm:$0xf]
    %v621 = vld [vmem:[%s1 + $0x928] sm:$0xf]
    %v622 = vld [vmem:[%s1 + $0x92c] sm:$0xf]
    %v623 = vld [vmem:[%s1 + $0x930] sm:$0xf]
    %v624 = vld [vmem:[%s1 + $0x934] sm:$0xf]
    %v625 = vld [vmem:[%s1 + $0x938] sm:$0xf]
    %v626 = vld [vmem:[%s1 + $0x93c] sm:$0xf]
    %v627 = vld [vmem:[%s1 + $0x940] sm:$0xf]
    %v628 = vld [vmem:[%s1 + $0x944] sm:$0xf]
    %v629 = vld [vmem:[%s1 + $0x948] sm:$0xf]
    %v630 = vld [vmem:[%s1 + $0x94c] sm:$0xf]
    %v631 = vld [vmem:[%s1 + $0x950] sm:$0xf]
    %v632 = vld [vmem:[%s1 + $0x954] sm:$0xf]
    %v633 = vld [vmem:[%s1 + $0x958] sm:$0xf]
    %v634 = vld [vmem:[%s1 + $0x95c] sm:$0xf]
    %v635 = vld [vmem:[%s1 + $0x960] sm:$0xf]
    %v636 = vld [vmem:[%s1 + $0x964] sm:$0xf]
    %v637 = vld [vmem:[%s1 + $0x968] sm:$0xf]
    %v638 = vld [vmem:[%s1 + $0x96c] sm:$0xf]
    %v639 = vld [vmem:[%s1 + $0x970] sm:$0xf]
    %v640 = vld [vmem:[%s1 + $0x974] sm:$0xf]
    %v641 = vld [vmem:[%s1 + $0x978] sm:$0xf]
    %v642 = vld [vmem:[%s1 + $0x97c] sm:$0xf]
    %v643 = vld [vmem:[%s1 + $0x980] sm:$0xf]
    %v644 = vld [vmem:[%s1 + $0x984] sm:$0xf]
    %v645 = vld [vmem:[%s1 + $0x988] sm:$0xf]
    %v646 = vld [vmem:[%s1 + $0x98c] sm:$0xf]
    %v647 = vld [vmem:[%s1 + $0x990] sm:$0xf]
    %v648 = vld [vmem:[%s1 + $0x994] sm:$0xf]
    %v649 = vld [vmem:[%s1 + $0x998] sm:$0xf]
    %v650 = vld [vmem:[%s1 + $0x99c] sm:$0xf]
    %v651 = vld [vmem:[%s1 + $0x9a0] sm:$0xf]
    %v652 = vld [vmem:[%s1 + $0x9a4] sm:$0xf]
    %v653 = vld [vmem:[%s1 + $0x9a8] sm:$0xf]
    %v654 = vld [vmem:[%s1 + $0x9ac] sm:$0xf]
    %v655 = vld [vmem:[%s1 + $0x9b0] sm:$0xf]
    %v656 = vld [vmem:[%s1 + $0x9b4] sm:$0xf]
    %v657 = vld [vmem:[%s1 + $0x9b8] sm:$0xf]
    %v658 = vld [vmem:[%s1 + $0x9bc] sm:$0xf]
    %v659 = vld [vmem:[%s1 + $0x9c0] sm:$0xf]
    %v660 = vld [vmem:[%s1 + $0x9c4] sm:$0xf]
    %v661 = vld [vmem:[%s1 + $0x9c8] sm:$0xf]
    %v662 = vld [vmem:[%s1 + $0x9cc] sm:$0xf]
    %v663 = vld [vmem:[%s1 + $0x9d0] sm:$0xf]
    %v664 = vld [vmem:[%s1 + $0x9d4] sm:$0xf]
    %v665 = vld [vmem:[%s1 + $0x9d8] sm:$0xf]
    %v666 = vld [vmem:[%s1 + $0x9dc] sm:$0xf]
    %v667 = vld [vmem:[%s1 + $0x9e0] sm:$0xf]
    %v668 = vld [vmem:[%s1 + $0x9e4] sm:$0xf]
    %v669 = vld [vmem:[%s1 + $0x9e8] sm:$0xf]
    %v670 = vld [vmem:[%s1 + $0x9ec] sm:$0xf]
    %v671 = vld [vmem:[%s1 + $0x9f0] sm:$0xf]
    %v672 = vld [vmem:[%s1 + $0x9f4] sm:$0xf]
    %v673 = vld [vmem:[%s1 + $0x9f8] sm:$0xf]
    %v674 = vld [vmem:[%s1 + $0x9fc] sm:$0xf]
    %v675 = vld [vmem:[%s1 + $0xa00] sm:$0xf]
    %v676 = vld [vmem:[%s1 + $0xa04] sm:$0xf]
    %v677 = vld [vmem:[%s1 + $0xa08] sm:$0xf]
    %v678 = vld [vmem:[%s1 + $0xa0c] sm:$0xf]
    %v679 = vld [vmem:[%s1 + $0xa10] sm:$0xf]
    %v680 = vld [vmem:[%s1 + $0xa14] sm:$0xf]
    %v681 = vld [vmem:[%s1 + $0xa18] sm:$0xf]
    %v682 = vld [vmem:[%s1 + $0xa1c] sm:$0xf]
    %v683 = vld [vmem:[%s1 + $0xa20] sm:$0xf]
    %v684 = vld [vmem:[%s1 + $0xa24] sm:$0xf]
    %v685 = vld [vmem:[%s1 + $0xa28] sm:$0xf]
    %v686 = vld [vmem:[%s1 + $0xa2c] sm:$0xf]
    %v687 = vld [vmem:[%s1 + $0xa30] sm:$0xf]
    %v688 = vld [vmem:[%s1 + $0xa34] sm:$0xf]
    %v689 = vld [vmem:[%s1 + $0xa38] sm:$0xf]
    %v690 = vld [vmem:[%s1 + $0xa3c] sm:$0xf]
    %v691 = vld [vmem:[%s1 + $0xa40] sm:$0xf]
    %v692 = vld [vmem:[%s1 + $0xa44] sm:$0xf]
    %v693 = vld [vmem:[%s1 + $0xa48] sm:$0xf]
    %v694 = vld [vmem:[%s1 + $0xa4c] sm:$0xf]
    %v695 = vld [vmem:[%s1 + $0xa50] sm:$0xf]
    %v696 = vld [vmem:[%s1 + $0xa54] sm:$0xf]
    %v697 = vld [vmem:[%s1 + $0xa58] sm:$0xf]
    %v698 = vld [vmem:[%s1 + $0xa5c] sm:$0xf]
    %v699 = vld [vmem:[%s1 + $0xa60] sm:$0xf]
    %v700 = vld [vmem:[%s1 + $0xa64] sm:$0xf]
    %v701 = vld [vmem:[%s1 + $0xa68] sm:$0xf]
    %v702 = vld [vmem:[%s1 + $0xa6c] sm:$0xf]
    %v703 = vld [vmem:[%s1 + $0xa70] sm:$0xf]
    %v704 = vld [vmem:[%s1 + $0xa74] sm:$0xf]
    %v705 = vld [vmem:[%s1 + $0xa78] sm:$0xf]
    %v706 = vld [vmem:[%s1 + $0xa7c] sm:$0xf]
    %v707 = vld [vmem:[%s1 + $0xa80] sm:$0xf]
    %v708 = vld [vmem:[%s1 + $0xa84] sm:$0xf]
    %v709 = vld [vmem:[%s1 + $0xa88] sm:$0xf]
    %v710 = vld [vmem:[%s1 + $0xa8c] sm:$0xf]
    %v711 = vld [vmem:[%s1 + $0xa90] sm:$0xf]
    %v712 = vld [vmem:[%s1 + $0xa94] sm:$0xf]
    %v713 = vld [vmem:[%s1 + $0xa98] sm:$0xf]
    %v714 = vld [vmem:[%s1 + $0xa9c] sm:$0xf]
    %v715 = vld [vmem:[%s1 + $0xaa0] sm:$0xf]
    %v716 = vld [vmem:[%s1 + $0xaa4] sm:$0xf]
    %v717 = vld [vmem:[%s1 + $0xaa8] sm:$0xf]
    %v718 = vld [vmem:[%s1 + $0xaac] sm:$0xf]
    %v719 = vld [vmem:[%s1 + $0xab0] sm:$0xf]
    %v720 = vld [vmem:[%s1 + $0xab4] sm:$0xf]
    %v721 = vld [vmem:[%s1 + $0xab8] sm:$0xf]
    %v722 = vld [vmem:[%s1 + $0xabc] sm:$0xf]
    %v723 = vld [vmem:[%s1 + $0xac0] sm:$0xf]
    %v724 = vld [vmem:[%s1 + $0xac4] sm:$0xf]
    %v725 = vld [vmem:[%s1 + $0xac8] sm:$0xf]
    %v726 = vld [vmem:[%s1 + $0xacc] sm:$0xf]
    %v727 = vld [vmem:[%s1 + $0xad0] sm:$0xf]
    %v728 = vld [vmem:[%s1 + $0xad4] sm:$0xf]
    %v729 = vld [vmem:[%s1 + $0xad8] sm:$0xf]
    %v730 = vld [vmem:[%s1 + $0xadc] sm:$0xf]
    %v731 = vld [vmem:[%s1 + $0xae0] sm:$0xf]
    %v732 = vld [vmem:[%s1 + $0xae4] sm:$0xf]
    %v733 = vld [vmem:[%s1 + $0xae8] sm:$0xf]
    %v734 = vld [vmem:[%s1 + $0xaec] sm:$0xf]
    %v735 = vld [vmem:[%s1 + $0xaf0] sm:$0xf]
    %v736 = vld [vmem:[%s1 + $0xaf4] sm:$0xf]
    %v737 = vld [vmem:[%s1 + $0xaf8] sm:$0xf]
    %v738 = vld [vmem:[%s1 + $0xafc] sm:$0xf]
    %v739 = vld [vmem:[%s1 + $0xb00] sm:$0xf]
    %v740 = vld [vmem:[%s1 + $0xb04] sm:$0xf]
    %v741 = vld [vmem:[%s1 + $0xb08] sm:$0xf]
    %v742 = vld [vmem:[%s1 + $0xb0c] sm:$0xf]
    %v743 = vld [vmem:[%s1 + $0xb10] sm:$0xf]
    %v744 = vld [vmem:[%s1 + $0xb14] sm:$0xf]
    %v745 = vld [vmem:[%s1 + $0xb18] sm:$0xf]
    %v746 = vld [vmem:[%s1 + $0xb1c] sm:$0xf]
    %v747 = vld [vmem:[%s1 + $0xb20] sm:$0xf]
    %v748 = vld [vmem:[%s1 + $0xb24] sm:$0xf]
    %v749 = vld [vmem:[%s1 + $0xb28] sm:$0xf]
    %v750 = vld [vmem:[%s1 + $0xb2c] sm:$0xf]
    %v751 = vld [vmem:[%s1 + $0xb30] sm:$0xf]
    %v752 = vld [vmem:[%s1 + $0xb34] sm:$0xf]
    %v753 = vld [vmem:[%s1 + $0xb38] sm:$0xf]
    %v754 = vld [vmem:[%s1 + $0xb3c] sm:$0xf]
    %v755 = vld [vmem:[%s1 + $0xb40] sm:$0xf]
    %v756 = vld [vmem:[%s1 + $0xb44] sm:$0xf]
    %v757 = vld [vmem:[%s1 + $0xb48] sm:$0xf]
    %v758 = vld [vmem:[%s1 + $0xb4c] sm:$0xf]
    %v759 = vld [vmem:[%s1 + $0xb50] sm:$0xf]
    %v760 = vld [vmem:[%s1 + $0xb54] sm:$0xf]
    %v761 = vld [vmem:[%s1 + $0xb58] sm:$0xf]
    %v762 = vld [vmem:[%s1 + $0xb5c] sm:$0xf]
    %v763 = vld [vmem:[%s1 + $0xb60] sm:$0xf]
    %v764 = vld [vmem:[%s1 + $0xb64] sm:$0xf]
    %v765 = vld [vmem:[%s1 + $0xb68] sm:$0xf]
    %v766 = vld [vmem:[%s1 + $0xb6c] sm:$0xf]
    %v767 = vld [vmem:[%s1 + $0xb70] sm:$0xf]
    %v768 = vld [vmem:[%s1 + $0xb74] sm:$0xf]
    %v769 = vld [vmem:[%s1 + $0xb78] sm:$0xf]
    %v770 = vld [vmem:[%s1 + $0xb7c] sm:$0xf]
    %v771 = vld [vmem:[%s1 + $0xb80] sm:$0xf]
    %v772 = vld [vmem:[%s1 + $0xb84] sm:$0xf]
    %v773 = vld [vmem:[%s1 + $0xb88] sm:$0xf]
    %v774 = vld [vmem:[%s1 + $0xb8c] sm:$0xf]
    %v775 = vld [vmem:[%s1 + $0xb90] sm:$0xf]
    %v776 = vld [vmem:[%s1 + $0xb94] sm:$0xf]
    %v777 = vld [vmem:[%s1 + $0xb98] sm:$0xf]
    %v778 = vld [vmem:[%s1 + $0xb9c] sm:$0xf]
    %v779 = vld [vmem:[%s1 + $0xba0] sm:$0xf]
    %v780 = vld [vmem:[%s1 + $0xba4] sm:$0xf]
    %v781 = vld [vmem:[%s1 + $0xba8] sm:$0xf]
    %v782 = vld [vmem:[%s1 + $0xbac] sm:$0xf]
    %v783 = vld [vmem:[%s1 + $0xbb0] sm:$0xf]
    %v784 = vld [vmem:[%s1 + $0xbb4] sm:$0xf]
    %v785 = vld [vmem:[%s1 + $0xbb8] sm:$0xf]
    %v786 = vld [vmem:[%s1 + $0xbbc] sm:$0xf]
    %v787 = vld [vmem:[%s1 + $0xbc0] sm:$0xf]
    %v788 = vld [vmem:[%s1 + $0xbc4] sm:$0xf]
    %v789 = vld [vmem:[%s1 + $0xbc8] sm:$0xf]
    %v790 = vld [vmem:[%s1 + $0xbcc] sm:$0xf]
    %v791 = vld [vmem:[%s1 + $0xbd0] sm:$0xf]
    %v792 = vld [vmem:[%s1 + $0xbd4] sm:$0xf]
    %v793 = vld [vmem:[%s1 + $0xbd8] sm:$0xf]
    %v794 = vld [vmem:[%s1 + $0xbdc] sm:$0xf]
    %v795 = vld [vmem:[%s1 + $0xbe0] sm:$0xf]
    %v796 = vld [vmem:[%s1 + $0xbe4] sm:$0xf]
    %v797 = vld [vmem:[%s1 + $0xbe8] sm:$0xf]
    %v798 = vld [vmem:[%s1 + $0xbec] sm:$0xf]
    %v799 = vld [vmem:[%s1 + $0xbf0] sm:$0xf]
    %v800 = vld [vmem:[%s1 + $0xbf4] sm:$0xf]
    %v801 = vld [vmem:[%s1 + $0xbf8] sm:$0xf]
    %v802 = vld [vmem:[%s1 + $0xbfc] sm:$0xf]
    %v803 = vld [vmem:[%s1 + $0xc00] sm:$0xf]
    %v804 = vld [vmem:[%s1 + $0xc04] sm:$0xf]
    %v805 = vld [vmem:[%s1 + $0xc08] sm:$0xf]
    %v806 = vld [vmem:[%s1 + $0xc0c] sm:$0xf]
    %v807 = vld [vmem:[%s1 + $0xc10] sm:$0xf]
    %v808 = vld [vmem:[%s1 + $0xc14] sm:$0xf]
    %v809 = vld [vmem:[%s1 + $0xc18] sm:$0xf]
    %v810 = vld [vmem:[%s1 + $0xc1c] sm:$0xf]
    %v811 = vld [vmem:[%s1 + $0xc20] sm:$0xf]
    %v812 = vld [vmem:[%s1 + $0xc24] sm:$0xf]
    %v813 = vld [vmem:[%s1 + $0xc28] sm:$0xf]
    %v814 = vld [vmem:[%s1 + $0xc2c] sm:$0xf]
    %v815 = vld [vmem:[%s1 + $0xc30] sm:$0xf]
    %v816 = vld [vmem:[%s1 + $0xc34] sm:$0xf]
    %v817 = vld [vmem:[%s1 + $0xc38] sm:$0xf]
    %v818 = vld [vmem:[%s1 + $0xc3c] sm:$0xf]
    %v819 = vld [vmem:[%s1 + $0xc40] sm:$0xf]
    %v820 = vld [vmem:[%s1 + $0xc44] sm:$0xf]
    %v821 = vld [vmem:[%s1 + $0xc48] sm:$0xf]
    %v822 = vld [vmem:[%s1 + $0xc4c] sm:$0xf]
    %v823 = vld [vmem:[%s1 + $0xc50] sm:$0xf]
    %v824 = vld [vmem:[%s1 + $0xc54] sm:$0xf]
    %v825 = vld [vmem:[%s1 + $0xc58] sm:$0xf]
    %v826 = vld [vmem:[%s1 + $0xc5c] sm:$0xf]
    %v827 = vld [vmem:[%s1 + $0xc60] sm:$0xf]
    %v828 = vld [vmem:[%s1 + $0xc64] sm:$0xf]
    %v829 = vld [vmem:[%s1 + $0xc68] sm:$0xf]
    %v830 = vld [vmem:[%s1 + $0xc6c] sm:$0xf]
    %v831 = vld [vmem:[%s1 + $0xc70] sm:$0xf]
    %v832 = vld [vmem:[%s1 + $0xc74] sm:$0xf]
    %v833 = vld [vmem:[%s1 + $0xc78] sm:$0xf]
    %v834 = vld [vmem:[%s1 + $0xc7c] sm:$0xf]
    %v835 = vld [vmem:[%s2] sm:$0x1]
    %v837 = vperm.slane %v835, 0
    %840 = vst [vmem:[#allocation1] ss:$9 sm:$0xff] %v28
    %v841 = vld [vmem:[#allocation1] sm:$0xff]
    %v842 = vld [vmem:[#allocation1 + $0x9] sm:$0xff]
    %v843 = vld [vmem:[#allocation1 + $0x12] sm:$0xff]
    %v844 = vld [vmem:[#allocation1 + $0x1b] sm:$0xff]
    %v845 = vld [vmem:[#allocation1 + $0x24] sm:$0xff]
    %v846 = vld [vmem:[#allocation1 + $0x2d] sm:$0xff]
    %v847 = vld [vmem:[#allocation1 + $0x36] sm:$0xff]
    %v848 = vld [vmem:[#allocation1 + $0x3f] sm:$0xff]
    %850 = vst [vmem:[#allocation1] ss:$9 sm:$0xff] %v29
    %v851 = vld [vmem:[#allocation1] sm:$0xff]
    %v852 = vld [vmem:[#allocation1 + $0x9] sm:$0xff]
    %v853 = vld [vmem:[#allocation1 + $0x12] sm:$0xff]
    %v854 = vld [vmem:[#allocation1 + $0x1b] sm:$0xff]
    %v855 = vld [vmem:[#allocation1 + $0x24] sm:$0xff]
    %v856 = vld [vmem:[#allocation1 + $0x2d] sm:$0xff]
    %v857 = vld [vmem:[#allocation1 + $0x36] sm:$0xff]
    %v858 = vld [vmem:[#allocation1 + $0x3f] sm:$0xff]
    %860 = vst [vmem:[#allocation1] ss:$9 sm:$0xff] %v30
    %v861 = vld [vmem:[#allocation1] sm:$0xff]
    %v862 = vld [vmem:[#allocation1 + $0x9] sm:$0xff]
    %v863 = vld [vmem:[#allocation1 + $0x12] sm:$0xff]
    %v864 = vld [vmem:[#allocation1 + $0x1b] sm:$0xff]
    %v865 = vld [vmem:[#allocation1 + $0x24] sm:$0xff]
    %v866 = vld [vmem:[#allocation1 + $0x2d] sm:$0xff]
    %v867 = vld [vmem:[#allocation1 + $0x36] sm:$0xff]
    %v868 = vld [vmem:[#allocation1 + $0x3f] sm:$0xff]
    %870 = vst [vmem:[#allocation1] ss:$9 sm:$0xff] %v31
    %v871 = vld [vmem:[#allocation1] sm:$0xff]
    %v872 = vld [vmem:[#allocation1 + $0x9] sm:$0xff]
    %v873 = vld [vmem:[#allocation1 + $0x12] sm:$0xff]
    %v874 = vld [vmem:[#allocation1 + $0x1b] sm:$0xff]
    %v875 = vld [vmem:[#allocation1 + $0x24] sm:$0xff]
    %v876 = vld [vmem:[#allocation1 + $0x2d] sm:$0xff]
    %v877 = vld [vmem:[#allocation1 + $0x36] sm:$0xff]
    %v878 = vld [vmem:[#allocation1 + $0x3f] sm:$0xff]
    %880 = vst [vmem:[#allocation1] ss:$9 sm:$0xff] %v32
    %v881 = vld [vmem:[#allocation1] sm:$0xff]
    %v882 = vld [vmem:[#allocation1 + $0x9] sm:$0xff]
    %v883 = vld [vmem:[#allocation1 + $0x12] sm:$0xff]
    %v884 = vld [vmem:[#allocation1 + $0x1b] sm:$0xff]
    %v885 = vld [vmem:[#allocation1 + $0x24] sm:$0xff]
    %v886 = vld [vmem:[#allocation1 + $0x2d] sm:$0xff]
    %v887 = vld [vmem:[#allocation1 + $0x36] sm:$0xff]
    %v888 = vld [vmem:[#allocation1 + $0x3f] sm:$0xff]
    %890 = vst [vmem:[#allocation1] ss:$9 sm:$0xff] %v33
    %v891 = vld [vmem:[#allocation1] sm:$0xff]
    %v892 = vld [vmem:[#allocation1 + $0x9] sm:$0xff]
    %v893 = vld [vmem:[#allocation1 + $0x12] sm:$0xff]
    %v894 = vld [vmem:[#allocation1 + $0x1b] sm:$0xff]
    %v895 = vld [vmem:[#allocation1 + $0x24] sm:$0xff]
    %v896 = vld [vmem:[#allocation1 + $0x2d] sm:$0xff]
    %v897 = vld [vmem:[#allocation1 + $0x36] sm:$0xff]
    %v898 = vld [vmem:[#allocation1 + $0x3f] sm:$0xff]
    %900 = vst [vmem:[#allocation1] ss:$9 sm:$0xff] %v34
    %v901 = vld [vmem:[#allocation1] sm:$0xff]
    %v902 = vld [vmem:[#allocation1 + $0x9] sm:$0xff]
    %v1753 = vunpack.c.l.b16 %v35
    %v1754 = vunpack.c.l.b16 %v36
    %v1755 = vunpack.c.l.b16 %v37
    %v1756 = vunpack.c.l.b16 %v38
    %v1757 = vunpack.c.l.b16 %v39
    %v1758 = vunpack.c.l.b16 %v40
    %v1759 = vunpack.c.l.b16 %v41
    %v1760 = vunpack.c.l.b16 %v42
    %v1761 = vunpack.c.l.b16 %v43
    %v1762 = vunpack.c.l.b16 %v44
    %v1763 = vunpack.c.l.b16 %v45
    %v1764 = vunpack.c.l.b16 %v46
    %v1765 = vunpack.c.l.b16 %v47
    %v1766 = vunpack.c.l.b16 %v48
    %v1767 = vunpack.c.l.b16 %v49
    %v1768 = vunpack.c.l.b16 %v50
    %v1769 = vunpack.c.l.b16 %v51
    %v1770 = vunpack.c.l.b16 %v52
    %v1771 = vunpack.c.l.b16 %v53
    %v1772 = vunpack.c.l.b16 %v54
    %v1773 = vunpack.c.l.b16 %v55
    %v1774 = vunpack.c.l.b16 %v56
    %v1775 = vunpack.c.l.b16 %v57
    %v1776 = vunpack.c.l.b16 %v58
    %v1777 = vunpack.c.l.b16 %v59
    %v1778 = vunpack.c.l.b16 %v60
    %v1779 = vunpack.c.l.b16 %v61
    %v1780 = vunpack.c.l.b16 %v62
    %v1781 = vunpack.c.l.b16 %v63
    %v1782 = vunpack.c.l.b16 %v64
    %v1783 = vunpack.c.l.b16 %v65
    %v1784 = vunpack.c.l.b16 %v66
    %v1785 = vunpack.c.l.b16 %v67
    %v1786 = vunpack.c.l.b16 %v68
    %v1787 = vunpack.c.l.b16 %v69
    %v1788 = vunpack.c.l.b16 %v70
    %v1789 = vunpack.c.l.b16 %v71
    %v1790 = vunpack.c.l.b16 %v72
    %v1791 = vunpack.c.l.b16 %v73
    %v1792 = vunpack.c.l.b16 %v74
    %v1793 = vunpack.c.l.b16 %v75
    %v1794 = vunpack.c.l.b16 %v76
    %v1795 = vunpack.c.l.b16 %v77
    %v1796 = vunpack.c.l.b16 %v78
    %v1797 = vunpack.c.l.b16 %v79
    %v1798 = vunpack.c.l.b16 %v80
    %v1799 = vunpack.c.l.b16 %v81
    %v1800 = vunpack.c.l.b16 %v82
    %v1801 = vunpack.c.l.b16 %v83
    %v1802 = vunpack.c.l.b16 %v84
    %v1803 = vunpack.c.l.b16 %v85
    %v1804 = vunpack.c.l.b16 %v86
    %v1805 = vunpack.c.l.b16 %v87
    %v1806 = vunpack.c.l.b16 %v88
    %v1807 = vunpack.c.l.b16 %v89
    %v1808 = vunpack.c.l.b16 %v90
    %v1809 = vunpack.c.l.b16 %v91
    %v1810 = vunpack.c.l.b16 %v92
    %v1811 = vunpack.c.l.b16 %v93
    %v1812 = vunpack.c.l.b16 %v94
    %v1813 = vunpack.c.l.b16 %v95
    %v1814 = vunpack.c.l.b16 %v96
    %v1815 = vunpack.c.l.b16 %v97
    %v1816 = vunpack.c.l.b16 %v98
    %v1817 = vunpack.c.l.b16 %v99
    %v1818 = vunpack.c.l.b16 %v100
    %v1819 = vunpack.c.l.b16 %v101
    %v1820 = vunpack.c.l.b16 %v102
    %v1821 = vunpack.c.l.b16 %v103
    %v1822 = vunpack.c.l.b16 %v104
    %v1823 = vunpack.c.l.b16 %v105
    %v1824 = vunpack.c.l.b16 %v106
    %v1825 = vunpack.c.l.b16 %v107
    %v1826 = vunpack.c.l.b16 %v108
    %v1827 = vunpack.c.l.b16 %v109
    %v1828 = vunpack.c.l.b16 %v110
    %v1829 = vunpack.c.l.b16 %v111
    %v1830 = vunpack.c.l.b16 %v112
    %v1831 = vunpack.c.l.b16 %v113
    %v1832 = vunpack.c.l.b16 %v114
    %v1833 = vunpack.c.l.b16 %v115
    %v1834 = vunpack.c.l.b16 %v116
    %v1835 = vunpack.c.l.b16 %v117
    %v1836 = vunpack.c.l.b16 %v118
    %v1837 = vunpack.c.l.b16 %v119
    %v1838 = vunpack.c.l.b16 %v120
    %v1839 = vunpack.c.l.b16 %v121
    %v1840 = vunpack.c.l.b16 %v122
    %v1841 = vunpack.c.l.b16 %v123
    %v1842 = vunpack.c.l.b16 %v124
    %v1843 = vunpack.c.l.b16 %v125
    %v1844 = vunpack.c.l.b16 %v126
    %v1845 = vunpack.c.l.b16 %v127
    %v1846 = vunpack.c.l.b16 %v128
    %v1847 = vunpack.c.l.b16 %v129
    %v1848 = vunpack.c.l.b16 %v130
    %v1849 = vunpack.c.l.b16 %v131
    %v1850 = vunpack.c.l.b16 %v132
    %v1851 = vunpack.c.l.b16 %v133
    %v1852 = vunpack.c.l.b16 %v134
    %v1853 = vunpack.c.l.b16 %v135
    %v1854 = vunpack.c.l.b16 %v136
    %v1855 = vunpack.c.l.b16 %v137
    %v1856 = vunpack.c.l.b16 %v138
    %v1857 = vunpack.c.l.b16 %v139
    %v1858 = vunpack.c.l.b16 %v140
    %v1859 = vunpack.c.l.b16 %v141
    %v1860 = vunpack.c.l.b16 %v142
    %v1861 = vunpack.c.l.b16 %v143
    %v1862 = vunpack.c.l.b16 %v144
    %v1863 = vunpack.c.l.b16 %v145
    %v1864 = vunpack.c.l.b16 %v146
    %v1865 = vunpack.c.l.b16 %v147
    %v1866 = vunpack.c.l.b16 %v148
    %v1867 = vunpack.c.l.b16 %v149
    %v1868 = vunpack.c.l.b16 %v150
    %v1869 = vunpack.c.l.b16 %v151
    %v1870 = vunpack.c.l.b16 %v152
    %v1871 = vunpack.c.l.b16 %v153
    %v1872 = vunpack.c.l.b16 %v154
    %v1873 = vunpack.c.l.b16 %v155
    %v1874 = vunpack.c.l.b16 %v156
    %v1875 = vunpack.c.l.b16 %v157
    %v1876 = vunpack.c.l.b16 %v158
    %v1877 = vunpack.c.l.b16 %v159
    %v1878 = vunpack.c.l.b16 %v160
    %v1879 = vunpack.c.l.b16 %v161
    %v1880 = vunpack.c.l.b16 %v162
    %v1881 = vunpack.c.l.b16 %v163
    %v1882 = vunpack.c.l.b16 %v164
    %v1883 = vunpack.c.l.b16 %v165
    %v1884 = vunpack.c.l.b16 %v166
    %v1885 = vunpack.c.l.b16 %v167
    %v1886 = vunpack.c.l.b16 %v168
    %v1887 = vunpack.c.l.b16 %v169
    %v1888 = vunpack.c.l.b16 %v170
    %v1889 = vunpack.c.l.b16 %v171
    %v1890 = vunpack.c.l.b16 %v172
    %v1891 = vunpack.c.l.b16 %v173
    %v1892 = vunpack.c.l.b16 %v174
    %v1893 = vunpack.c.l.b16 %v175
    %v1894 = vunpack.c.l.b16 %v176
    %v1895 = vunpack.c.l.b16 %v177
    %v1896 = vunpack.c.l.b16 %v178
    %v1897 = vunpack.c.l.b16 %v179
    %v1898 = vunpack.c.l.b16 %v180
    %v1899 = vunpack.c.l.b16 %v181
    %v1900 = vunpack.c.l.b16 %v182
    %v1901 = vunpack.c.l.b16 %v183
    %v1902 = vunpack.c.l.b16 %v184
    %v1903 = vunpack.c.l.b16 %v185
    %v1904 = vunpack.c.l.b16 %v186
    %v1905 = vunpack.c.l.b16 %v187
    %v1906 = vunpack.c.l.b16 %v188
    %v1907 = vunpack.c.l.b16 %v189
    %v1908 = vunpack.c.l.b16 %v190
    %v1909 = vunpack.c.l.b16 %v191
    %v1910 = vunpack.c.l.b16 %v192
    %v1911 = vunpack.c.l.b16 %v193
    %v1912 = vunpack.c.l.b16 %v194
    %v1913 = vunpack.c.l.b16 %v195
    %v1914 = vunpack.c.l.b16 %v196
    %v1915 = vunpack.c.l.b16 %v197
    %v1916 = vunpack.c.l.b16 %v198
    %v1917 = vunpack.c.l.b16 %v199
    %v1918 = vunpack.c.l.b16 %v200
    %v1919 = vunpack.c.l.b16 %v201
    %v1920 = vunpack.c.l.b16 %v202
    %v1921 = vunpack.c.l.b16 %v203
    %v1922 = vunpack.c.l.b16 %v204
    %v1923 = vunpack.c.l.b16 %v205
    %v1924 = vunpack.c.l.b16 %v206
    %v1925 = vunpack.c.l.b16 %v207
    %v1926 = vunpack.c.l.b16 %v208
    %v1927 = vunpack.c.l.b16 %v209
    %v1928 = vunpack.c.l.b16 %v210
    %v1929 = vunpack.c.l.b16 %v211
    %v1930 = vunpack.c.l.b16 %v212
    %v1931 = vunpack.c.l.b16 %v213
    %v1932 = vunpack.c.l.b16 %v214
    %v1933 = vunpack.c.l.b16 %v215
    %v1934 = vunpack.c.l.b16 %v216
    %v1935 = vunpack.c.l.b16 %v217
    %v1936 = vunpack.c.l.b16 %v218
    %v1937 = vunpack.c.l.b16 %v219
    %v1938 = vunpack.c.l.b16 %v220
    %v1939 = vunpack.c.l.b16 %v221
    %v1940 = vunpack.c.l.b16 %v222
    %v1941 = vunpack.c.l.b16 %v223
    %v1942 = vunpack.c.l.b16 %v224
    %v1943 = vunpack.c.l.b16 %v225
    %v1944 = vunpack.c.l.b16 %v226
    %v1945 = vunpack.c.l.b16 %v227
    %v1946 = vunpack.c.l.b16 %v228
    %v1947 = vunpack.c.l.b16 %v229
    %v1948 = vunpack.c.l.b16 %v230
    %v1949 = vunpack.c.l.b16 %v231
    %v1950 = vunpack.c.l.b16 %v232
    %v1951 = vunpack.c.l.b16 %v233
    %v1952 = vunpack.c.l.b16 %v234
    %v1953 = vunpack.c.l.b16 %v235
    %v1954 = vunpack.c.l.b16 %v236
    %v1955 = vunpack.c.l.b16 %v237
    %v1956 = vunpack.c.l.b16 %v238
    %v1957 = vunpack.c.l.b16 %v239
    %v1958 = vunpack.c.l.b16 %v240
    %v1959 = vunpack.c.l.b16 %v241
    %v1960 = vunpack.c.l.b16 %v242
    %v1961 = vunpack.c.l.b16 %v243
    %v1962 = vunpack.c.l.b16 %v244
    %v1963 = vunpack.c.l.b16 %v245
    %v1964 = vunpack.c.l.b16 %v246
    %v1965 = vunpack.c.l.b16 %v247
    %v1966 = vunpack.c.l.b16 %v248
    %v1967 = vunpack.c.l.b16 %v249
    %v1968 = vunpack.c.l.b16 %v250
    %v1969 = vunpack.c.l.b16 %v251
    %v1970 = vunpack.c.l.b16 %v252
    %v1971 = vunpack.c.l.b16 %v253
    %v1972 = vunpack.c.l.b16 %v254
    %v1973 = vunpack.c.l.b16 %v255
    %v1974 = vunpack.c.l.b16 %v256
    %v1975 = vunpack.c.l.b16 %v257
    %v1976 = vunpack.c.l.b16 %v258
    %v1977 = vunpack.c.l.b16 %v259
    %v1978 = vunpack.c.l.b16 %v260
    %v1979 = vunpack.c.l.b16 %v261
    %v1980 = vunpack.c.l.b16 %v262
    %v1981 = vunpack.c.l.b16 %v263
    %v1982 = vunpack.c.l.b16 %v264
    %v1983 = vunpack.c.l.b16 %v265
    %v1984 = vunpack.c.l.b16 %v266
    %v1985 = vunpack.c.l.b16 %v267
    %v1986 = vunpack.c.l.b16 %v268
    %v1987 = vunpack.c.l.b16 %v269
    %v1988 = vunpack.c.l.b16 %v270
    %v1989 = vunpack.c.l.b16 %v271
    %v1990 = vunpack.c.l.b16 %v272
    %v1991 = vunpack.c.l.b16 %v273
    %v1992 = vunpack.c.l.b16 %v274
    %v1993 = vunpack.c.l.b16 %v275
    %v1994 = vunpack.c.l.b16 %v276
    %v1995 = vunpack.c.l.b16 %v277
    %v1996 = vunpack.c.l.b16 %v278
    %v1997 = vunpack.c.l.b16 %v279
    %v1998 = vunpack.c.l.b16 %v280
    %v1999 = vunpack.c.l.b16 %v281
    %v2000 = vunpack.c.l.b16 %v282
    %v2001 = vunpack.c.l.b16 %v283
    %v2002 = vunpack.c.l.b16 %v284
    %v2003 = vunpack.c.l.b16 %v285
    %v2004 = vunpack.c.l.b16 %v286
    %v2005 = vunpack.c.l.b16 %v287
    %v2006 = vunpack.c.l.b16 %v288
    %v2007 = vunpack.c.l.b16 %v289
    %v2008 = vunpack.c.l.b16 %v290
    %v2009 = vunpack.c.l.b16 %v291
    %v2010 = vunpack.c.l.b16 %v292
    %v2011 = vunpack.c.l.b16 %v293
    %v2012 = vunpack.c.l.b16 %v294
    %v2013 = vunpack.c.l.b16 %v295
    %v2014 = vunpack.c.l.b16 %v296
    %v2015 = vunpack.c.l.b16 %v297
    %v2016 = vunpack.c.l.b16 %v298
    %v2017 = vunpack.c.l.b16 %v299
    %v2018 = vunpack.c.l.b16 %v300
    %v2019 = vunpack.c.l.b16 %v301
    %v2020 = vunpack.c.l.b16 %v302
    %v2021 = vunpack.c.l.b16 %v303
    %v2022 = vunpack.c.l.b16 %v304
    %v2023 = vunpack.c.l.b16 %v305
    %v2024 = vunpack.c.l.b16 %v306
    %v2025 = vunpack.c.l.b16 %v307
    %v2026 = vunpack.c.l.b16 %v308
    %v2027 = vunpack.c.l.b16 %v309
    %v2028 = vunpack.c.l.b16 %v310
    %v2029 = vunpack.c.l.b16 %v311
    %v2030 = vunpack.c.l.b16 %v312
    %v2031 = vunpack.c.l.b16 %v313
    %v2032 = vunpack.c.l.b16 %v314
    %v2033 = vunpack.c.l.b16 %v315
    %v2034 = vunpack.c.l.b16 %v316
    %v2035 = vunpack.c.l.b16 %v317
    %v2036 = vunpack.c.l.b16 %v318
    %v2037 = vunpack.c.l.b16 %v319
    %v2038 = vunpack.c.l.b16 %v320
    %v2039 = vunpack.c.l.b16 %v321
    %v2040 = vunpack.c.l.b16 %v322
    %v2041 = vunpack.c.l.b16 %v323
    %v2042 = vunpack.c.l.b16 %v324
    %v2043 = vunpack.c.l.b16 %v325
    %v2044 = vunpack.c.l.b16 %v326
    %v2045 = vunpack.c.l.b16 %v327
    %v2046 = vunpack.c.l.b16 %v328
    %v2047 = vunpack.c.l.b16 %v329
    %v2048 = vunpack.c.l.b16 %v330
    %v2049 = vunpack.c.l.b16 %v331
    %v2050 = vunpack.c.l.b16 %v332
    %v2051 = vunpack.c.l.b16 %v333
    %v2052 = vunpack.c.l.b16 %v334
    %v2053 = vunpack.c.l.b16 %v335
    %v2054 = vunpack.c.l.b16 %v336
    %v2055 = vunpack.c.l.b16 %v337
    %v2056 = vunpack.c.l.b16 %v338
    %v2057 = vunpack.c.l.b16 %v339
    %v2058 = vunpack.c.l.b16 %v340
    %v2059 = vunpack.c.l.b16 %v341
    %v2060 = vunpack.c.l.b16 %v342
    %v2061 = vunpack.c.l.b16 %v343
    %v2062 = vunpack.c.l.b16 %v344
    %v2063 = vunpack.c.l.b16 %v345
    %v2064 = vunpack.c.l.b16 %v346
    %v2065 = vunpack.c.l.b16 %v347
    %v2066 = vunpack.c.l.b16 %v348
    %v2067 = vunpack.c.l.b16 %v349
    %v2068 = vunpack.c.l.b16 %v350
    %v2069 = vunpack.c.l.b16 %v351
    %v2070 = vunpack.c.l.b16 %v352
    %v2071 = vunpack.c.l.b16 %v353
    %v2072 = vunpack.c.l.b16 %v354
    %v2073 = vunpack.c.l.b16 %v355
    %v2074 = vunpack.c.l.b16 %v356
    %v2075 = vunpack.c.l.b16 %v357
    %v2076 = vunpack.c.l.b16 %v358
    %v2077 = vunpack.c.l.b16 %v359
    %v2078 = vunpack.c.l.b16 %v360
    %v2079 = vunpack.c.l.b16 %v361
    %v2080 = vunpack.c.l.b16 %v362
    %v2081 = vunpack.c.l.b16 %v363
    %v2082 = vunpack.c.l.b16 %v364
    %v2083 = vunpack.c.l.b16 %v365
    %v2084 = vunpack.c.l.b16 %v366
    %v2085 = vunpack.c.l.b16 %v367
    %v2086 = vunpack.c.l.b16 %v368
    %v2087 = vunpack.c.l.b16 %v369
    %v2088 = vunpack.c.l.b16 %v370
    %v2089 = vunpack.c.l.b16 %v371
    %v2090 = vunpack.c.l.b16 %v372
    %v2091 = vunpack.c.l.b16 %v373
    %v2092 = vunpack.c.l.b16 %v374
    %v2093 = vunpack.c.l.b16 %v375
    %v2094 = vunpack.c.l.b16 %v376
    %v2095 = vunpack.c.l.b16 %v377
    %v2096 = vunpack.c.l.b16 %v378
    %v2097 = vunpack.c.l.b16 %v379
    %v2098 = vunpack.c.l.b16 %v380
    %v2099 = vunpack.c.l.b16 %v381
    %v2100 = vunpack.c.l.b16 %v382
    %v2101 = vunpack.c.l.b16 %v383
    %v2102 = vunpack.c.l.b16 %v384
    %v2103 = vunpack.c.l.b16 %v385
    %v2104 = vunpack.c.l.b16 %v386
    %v2105 = vunpack.c.l.b16 %v387
    %v2106 = vunpack.c.l.b16 %v388
    %v2107 = vunpack.c.l.b16 %v389
    %v2108 = vunpack.c.l.b16 %v390
    %v2109 = vunpack.c.l.b16 %v391
    %v2110 = vunpack.c.l.b16 %v392
    %v2111 = vunpack.c.l.b16 %v393
    %v2112 = vunpack.c.l.b16 %v394
    %v2113 = vunpack.c.l.b16 %v395
    %v2114 = vunpack.c.l.b16 %v396
    %v2115 = vunpack.c.l.b16 %v397
    %v2116 = vunpack.c.l.b16 %v398
    %v2117 = vunpack.c.l.b16 %v399
    %v2118 = vunpack.c.l.b16 %v400
    %v2119 = vunpack.c.l.b16 %v401
    %v2120 = vunpack.c.l.b16 %v402
    %v2121 = vunpack.c.l.b16 %v403
    %v2122 = vunpack.c.l.b16 %v404
    %v2123 = vunpack.c.l.b16 %v405
    %v2124 = vunpack.c.l.b16 %v406
    %v2125 = vunpack.c.l.b16 %v407
    %v2126 = vunpack.c.l.b16 %v408
    %v2127 = vunpack.c.l.b16 %v409
    %v2128 = vunpack.c.l.b16 %v410
    %v2129 = vunpack.c.l.b16 %v411
    %v2130 = vunpack.c.l.b16 %v412
    %v2131 = vunpack.c.l.b16 %v413
    %v2132 = vunpack.c.l.b16 %v414
    %v2133 = vunpack.c.l.b16 %v415
    %v2134 = vunpack.c.l.b16 %v416
    %v2135 = vunpack.c.l.b16 %v417
    %v2136 = vunpack.c.l.b16 %v418
    %v2137 = vunpack.c.l.b16 %v419
    %v2138 = vunpack.c.l.b16 %v420
    %v2139 = vunpack.c.l.b16 %v421
    %v2140 = vunpack.c.l.b16 %v422
    %v2141 = vunpack.c.l.b16 %v423
    %v2142 = vunpack.c.l.b16 %v424
    %v2143 = vunpack.c.l.b16 %v425
    %v2144 = vunpack.c.l.b16 %v426
    %v2145 = vunpack.c.l.b16 %v427
    %v2146 = vunpack.c.l.b16 %v428
    %v2147 = vunpack.c.l.b16 %v429
    %v2148 = vunpack.c.l.b16 %v430
    %v2149 = vunpack.c.l.b16 %v431
    %v2150 = vunpack.c.l.b16 %v432
    %v2151 = vunpack.c.l.b16 %v433
    %v2152 = vunpack.c.l.b16 %v434
    %v2153 = vunpack.c.l.b16 %v435
    %v2154 = vunpack.c.l.b16 %v436
    %v2155 = vunpack.c.l.b16 %v437
    %v2156 = vunpack.c.l.b16 %v438
    %v2157 = vunpack.c.l.b16 %v439
    %v2158 = vunpack.c.l.b16 %v440
    %v2159 = vunpack.c.l.b16 %v441
    %v2160 = vunpack.c.l.b16 %v442
    %v2161 = vunpack.c.l.b16 %v443
    %v2162 = vunpack.c.l.b16 %v444
    %v2163 = vunpack.c.l.b16 %v445
    %v2164 = vunpack.c.l.b16 %v446
    %v2165 = vunpack.c.l.b16 %v447
    %v2166 = vunpack.c.l.b16 %v448
    %v2167 = vunpack.c.l.b16 %v449
    %v2168 = vunpack.c.l.b16 %v450
    %v2169 = vunpack.c.l.b16 %v451
    %v2170 = vunpack.c.l.b16 %v452
    %v2171 = vunpack.c.l.b16 %v453
    %v2172 = vunpack.c.l.b16 %v454
    %v2173 = vunpack.c.l.b16 %v455
    %v2174 = vunpack.c.l.b16 %v456
    %v2175 = vunpack.c.l.b16 %v457
    %v2176 = vunpack.c.l.b16 %v458
    %v2177 = vunpack.c.l.b16 %v459
    %v2178 = vunpack.c.l.b16 %v460
    %v2179 = vunpack.c.l.b16 %v461
    %v2180 = vunpack.c.l.b16 %v462
    %v2181 = vunpack.c.l.b16 %v463
    %v2182 = vunpack.c.l.b16 %v464
    %v2183 = vunpack.c.l.b16 %v465
    %v2184 = vunpack.c.l.b16 %v466
    %v2185 = vunpack.c.l.b16 %v467
    %v2186 = vunpack.c.l.b16 %v468
    %v2187 = vunpack.c.l.b16 %v469
    %v2188 = vunpack.c.l.b16 %v470
    %v2189 = vunpack.c.l.b16 %v471
    %v2190 = vunpack.c.l.b16 %v472
    %v2191 = vunpack.c.l.b16 %v473
    %v2192 = vunpack.c.l.b16 %v474
    %v2193 = vunpack.c.l.b16 %v475
    %v2194 = vunpack.c.l.b16 %v476
    %v2195 = vunpack.c.l.b16 %v477
    %v2196 = vunpack.c.l.b16 %v478
    %v2197 = vunpack.c.l.b16 %v479
    %v2198 = vunpack.c.l.b16 %v480
    %v2199 = vunpack.c.l.b16 %v481
    %v2200 = vunpack.c.l.b16 %v482
    %v2201 = vunpack.c.l.b16 %v483
    %v2202 = vunpack.c.l.b16 %v484
    %v2203 = vunpack.c.l.b16 %v485
    %v2204 = vunpack.c.l.b16 %v486
    %v2205 = vunpack.c.l.b16 %v487
    %v2206 = vunpack.c.l.b16 %v488
    %v2207 = vunpack.c.l.b16 %v489
    %v2208 = vunpack.c.l.b16 %v490
    %v2209 = vunpack.c.l.b16 %v491
    %v2210 = vunpack.c.l.b16 %v492
    %v2211 = vunpack.c.l.b16 %v493
    %v2212 = vunpack.c.l.b16 %v494
    %v2213 = vunpack.c.l.b16 %v495
    %v2214 = vunpack.c.l.b16 %v496
    %v2215 = vunpack.c.l.b16 %v497
    %v2216 = vunpack.c.l.b16 %v498
    %v2217 = vunpack.c.l.b16 %v499
    %v2218 = vunpack.c.l.b16 %v500
    %v2219 = vunpack.c.l.b16 %v501
    %v2220 = vunpack.c.l.b16 %v502
    %v2221 = vunpack.c.l.b16 %v503
    %v2222 = vunpack.c.l.b16 %v504
    %v2223 = vunpack.c.l.b16 %v505
    %v2224 = vunpack.c.l.b16 %v506
    %v2225 = vunpack.c.l.b16 %v507
    %v2226 = vunpack.c.l.b16 %v508
    %v2227 = vunpack.c.l.b16 %v509
    %v2228 = vunpack.c.l.b16 %v510
    %v2229 = vunpack.c.l.b16 %v511
    %v2230 = vunpack.c.l.b16 %v512
    %v2231 = vunpack.c.l.b16 %v513
    %v2232 = vunpack.c.l.b16 %v514
    %v2233 = vunpack.c.l.b16 %v515
    %v2234 = vunpack.c.l.b16 %v516
    %v2235 = vunpack.c.l.b16 %v517
    %v2236 = vunpack.c.l.b16 %v518
    %v2237 = vunpack.c.l.b16 %v519
    %v2238 = vunpack.c.l.b16 %v520
    %v2239 = vunpack.c.l.b16 %v521
    %v2240 = vunpack.c.l.b16 %v522
    %v2241 = vunpack.c.l.b16 %v523
    %v2242 = vunpack.c.l.b16 %v524
    %v2243 = vunpack.c.l.b16 %v525
    %v2244 = vunpack.c.l.b16 %v526
    %v2245 = vunpack.c.l.b16 %v527
    %v2246 = vunpack.c.l.b16 %v528
    %v2247 = vunpack.c.l.b16 %v529
    %v2248 = vunpack.c.l.b16 %v530
    %v2249 = vunpack.c.l.b16 %v531
    %v2250 = vunpack.c.l.b16 %v532
    %v2251 = vunpack.c.l.b16 %v533
    %v2252 = vunpack.c.l.b16 %v534
    %v2253 = vunpack.c.l.b16 %v535
    %v2254 = vunpack.c.l.b16 %v536
    %v2255 = vunpack.c.l.b16 %v537
    %v2256 = vunpack.c.l.b16 %v538
    %v2257 = vunpack.c.l.b16 %v539
    %v2258 = vunpack.c.l.b16 %v540
    %v2259 = vunpack.c.l.b16 %v541
    %v2260 = vunpack.c.l.b16 %v542
    %v2261 = vunpack.c.l.b16 %v543
    %v2262 = vunpack.c.l.b16 %v544
    %v2263 = vunpack.c.l.b16 %v545
    %v2264 = vunpack.c.l.b16 %v546
    %v2265 = vunpack.c.l.b16 %v547
    %v2266 = vunpack.c.l.b16 %v548
    %v2267 = vunpack.c.l.b16 %v549
    %v2268 = vunpack.c.l.b16 %v550
    %v2269 = vunpack.c.l.b16 %v551
    %v2270 = vunpack.c.l.b16 %v552
    %v2271 = vunpack.c.l.b16 %v553
    %v2272 = vunpack.c.l.b16 %v554
    %v2273 = vunpack.c.l.b16 %v555
    %v2274 = vunpack.c.l.b16 %v556
    %v2275 = vunpack.c.l.b16 %v557
    %v2276 = vunpack.c.l.b16 %v558
    %v2277 = vunpack.c.l.b16 %v559
    %v2278 = vunpack.c.l.b16 %v560
    %v2279 = vunpack.c.l.b16 %v561
    %v2280 = vunpack.c.l.b16 %v562
    %v2281 = vunpack.c.l.b16 %v563
    %v2282 = vunpack.c.l.b16 %v564
    %v2283 = vunpack.c.l.b16 %v565
    %v2284 = vunpack.c.l.b16 %v566
    %v2285 = vunpack.c.l.b16 %v567
    %v2286 = vunpack.c.l.b16 %v568
    %v2287 = vunpack.c.l.b16 %v569
    %v2288 = vunpack.c.l.b16 %v570
    %v2289 = vunpack.c.l.b16 %v571
    %v2290 = vunpack.c.l.b16 %v572
    %v2291 = vunpack.c.l.b16 %v573
    %v2292 = vunpack.c.l.b16 %v574
    %v2293 = vunpack.c.l.b16 %v575
    %v2294 = vunpack.c.l.b16 %v576
    %v2295 = vunpack.c.l.b16 %v577
    %v2296 = vunpack.c.l.b16 %v578
    %v2297 = vunpack.c.l.b16 %v579
    %v2298 = vunpack.c.l.b16 %v580
    %v2299 = vunpack.c.l.b16 %v581
    %v2300 = vunpack.c.l.b16 %v582
    %v2301 = vunpack.c.l.b16 %v583
    %v2302 = vunpack.c.l.b16 %v584
    %v2303 = vunpack.c.l.b16 %v585
    %v2304 = vunpack.c.l.b16 %v586
    %v2305 = vunpack.c.l.b16 %v587
    %v2306 = vunpack.c.l.b16 %v588
    %v2307 = vunpack.c.l.b16 %v589
    %v2308 = vunpack.c.l.b16 %v590
    %v2309 = vunpack.c.l.b16 %v591
    %v2310 = vunpack.c.l.b16 %v592
    %v2311 = vunpack.c.l.b16 %v593
    %v2312 = vunpack.c.l.b16 %v594
    %v2313 = vunpack.c.l.b16 %v595
    %v2314 = vunpack.c.l.b16 %v596
    %v2315 = vunpack.c.l.b16 %v597
    %v2316 = vunpack.c.l.b16 %v598
    %v2317 = vunpack.c.l.b16 %v599
    %v2318 = vunpack.c.l.b16 %v600
    %v2319 = vunpack.c.l.b16 %v601
    %v2320 = vunpack.c.l.b16 %v602
    %v2321 = vunpack.c.l.b16 %v603
    %v2322 = vunpack.c.l.b16 %v604
    %v2323 = vunpack.c.l.b16 %v605
    %v2324 = vunpack.c.l.b16 %v606
    %v2325 = vunpack.c.l.b16 %v607
    %v2326 = vunpack.c.l.b16 %v608
    %v2327 = vunpack.c.l.b16 %v609
    %v2328 = vunpack.c.l.b16 %v610
    %v2329 = vunpack.c.l.b16 %v611
    %v2330 = vunpack.c.l.b16 %v612
    %v2331 = vunpack.c.l.b16 %v613
    %v2332 = vunpack.c.l.b16 %v614
    %v2333 = vunpack.c.l.b16 %v615
    %v2334 = vunpack.c.l.b16 %v616
    %v2335 = vunpack.c.l.b16 %v617
    %v2336 = vunpack.c.l.b16 %v618
    %v2337 = vunpack.c.l.b16 %v619
    %v2338 = vunpack.c.l.b16 %v620
    %v2339 = vunpack.c.l.b16 %v621
    %v2340 = vunpack.c.l.b16 %v622
    %v2341 = vunpack.c.l.b16 %v623
    %v2342 = vunpack.c.l.b16 %v624
    %v2343 = vunpack.c.l.b16 %v625
    %v2344 = vunpack.c.l.b16 %v626
    %v2345 = vunpack.c.l.b16 %v627
    %v2346 = vunpack.c.l.b16 %v628
    %v2347 = vunpack.c.l.b16 %v629
    %v2348 = vunpack.c.l.b16 %v630
    %v2349 = vunpack.c.l.b16 %v631
    %v2350 = vunpack.c.l.b16 %v632
    %v2351 = vunpack.c.l.b16 %v633
    %v2352 = vunpack.c.l.b16 %v634
    %v2353 = vunpack.c.l.b16 %v635
    %v2354 = vunpack.c.l.b16 %v636
    %v2355 = vunpack.c.l.b16 %v637
    %v2356 = vunpack.c.l.b16 %v638
    %v2357 = vunpack.c.l.b16 %v639
    %v2358 = vunpack.c.l.b16 %v640
    %v2359 = vunpack.c.l.b16 %v641
    %v2360 = vunpack.c.l.b16 %v642
    %v2361 = vunpack.c.l.b16 %v643
    %v2362 = vunpack.c.l.b16 %v644
    %v2363 = vunpack.c.l.b16 %v645
    %v2364 = vunpack.c.l.b16 %v646
    %v2365 = vunpack.c.l.b16 %v647
    %v2366 = vunpack.c.l.b16 %v648
    %v2367 = vunpack.c.l.b16 %v649
    %v2368 = vunpack.c.l.b16 %v650
    %v2369 = vunpack.c.l.b16 %v651
    %v2370 = vunpack.c.l.b16 %v652
    %v2371 = vunpack.c.l.b16 %v653
    %v2372 = vunpack.c.l.b16 %v654
    %v2373 = vunpack.c.l.b16 %v655
    %v2374 = vunpack.c.l.b16 %v656
    %v2375 = vunpack.c.l.b16 %v657
    %v2376 = vunpack.c.l.b16 %v658
    %v2377 = vunpack.c.l.b16 %v659
    %v2378 = vunpack.c.l.b16 %v660
    %v2379 = vunpack.c.l.b16 %v661
    %v2380 = vunpack.c.l.b16 %v662
    %v2381 = vunpack.c.l.b16 %v663
    %v2382 = vunpack.c.l.b16 %v664
    %v2383 = vunpack.c.l.b16 %v665
    %v2384 = vunpack.c.l.b16 %v666
    %v2385 = vunpack.c.l.b16 %v667
    %v2386 = vunpack.c.l.b16 %v668
    %v2387 = vunpack.c.l.b16 %v669
    %v2388 = vunpack.c.l.b16 %v670
    %v2389 = vunpack.c.l.b16 %v671
    %v2390 = vunpack.c.l.b16 %v672
    %v2391 = vunpack.c.l.b16 %v673
    %v2392 = vunpack.c.l.b16 %v674
    %v2393 = vunpack.c.l.b16 %v675
    %v2394 = vunpack.c.l.b16 %v676
    %v2395 = vunpack.c.l.b16 %v677
    %v2396 = vunpack.c.l.b16 %v678
    %v2397 = vunpack.c.l.b16 %v679
    %v2398 = vunpack.c.l.b16 %v680
    %v2399 = vunpack.c.l.b16 %v681
    %v2400 = vunpack.c.l.b16 %v682
    %v2401 = vunpack.c.l.b16 %v683
    %v2402 = vunpack.c.l.b16 %v684
    %v2403 = vunpack.c.l.b16 %v685
    %v2404 = vunpack.c.l.b16 %v686
    %v2405 = vunpack.c.l.b16 %v687
    %v2406 = vunpack.c.l.b16 %v688
    %v2407 = vunpack.c.l.b16 %v689
    %v2408 = vunpack.c.l.b16 %v690
    %v2409 = vunpack.c.l.b16 %v691
    %v2410 = vunpack.c.l.b16 %v692
    %v2411 = vunpack.c.l.b16 %v693
    %v2412 = vunpack.c.l.b16 %v694
    %v2413 = vunpack.c.l.b16 %v695
    %v2414 = vunpack.c.l.b16 %v696
    %v2415 = vunpack.c.l.b16 %v697
    %v2416 = vunpack.c.l.b16 %v698
    %v2417 = vunpack.c.l.b16 %v699
    %v2418 = vunpack.c.l.b16 %v700
    %v2419 = vunpack.c.l.b16 %v701
    %v2420 = vunpack.c.l.b16 %v702
    %v2421 = vunpack.c.l.b16 %v703
    %v2422 = vunpack.c.l.b16 %v704
    %v2423 = vunpack.c.l.b16 %v705
    %v2424 = vunpack.c.l.b16 %v706
    %v2425 = vunpack.c.l.b16 %v707
    %v2426 = vunpack.c.l.b16 %v708
    %v2427 = vunpack.c.l.b16 %v709
    %v2428 = vunpack.c.l.b16 %v710
    %v2429 = vunpack.c.l.b16 %v711
    %v2430 = vunpack.c.l.b16 %v712
    %v2431 = vunpack.c.l.b16 %v713
    %v2432 = vunpack.c.l.b16 %v714
    %v2433 = vunpack.c.l.b16 %v715
    %v2434 = vunpack.c.l.b16 %v716
    %v2435 = vunpack.c.l.b16 %v717
    %v2436 = vunpack.c.l.b16 %v718
    %v2437 = vunpack.c.l.b16 %v719
    %v2438 = vunpack.c.l.b16 %v720
    %v2439 = vunpack.c.l.b16 %v721
    %v2440 = vunpack.c.l.b16 %v722
    %v2441 = vunpack.c.l.b16 %v723
    %v2442 = vunpack.c.l.b16 %v724
    %v2443 = vunpack.c.l.b16 %v725
    %v2444 = vunpack.c.l.b16 %v726
    %v2445 = vunpack.c.l.b16 %v727
    %v2446 = vunpack.c.l.b16 %v728
    %v2447 = vunpack.c.l.b16 %v729
    %v2448 = vunpack.c.l.b16 %v730
    %v2449 = vunpack.c.l.b16 %v731
    %v2450 = vunpack.c.l.b16 %v732
    %v2451 = vunpack.c.l.b16 %v733
    %v2452 = vunpack.c.l.b16 %v734
    %v2453 = vunpack.c.l.b16 %v735
    %v2454 = vunpack.c.l.b16 %v736
    %v2455 = vunpack.c.l.b16 %v737
    %v2456 = vunpack.c.l.b16 %v738
    %v2457 = vunpack.c.l.b16 %v739
    %v2458 = vunpack.c.l.b16 %v740
    %v2459 = vunpack.c.l.b16 %v741
    %v2460 = vunpack.c.l.b16 %v742
    %v2461 = vunpack.c.l.b16 %v743
    %v2462 = vunpack.c.l.b16 %v744
    %v2463 = vunpack.c.l.b16 %v745
    %v2464 = vunpack.c.l.b16 %v746
    %v2465 = vunpack.c.l.b16 %v747
    %v2466 = vunpack.c.l.b16 %v748
    %v2467 = vunpack.c.l.b16 %v749
    %v2468 = vunpack.c.l.b16 %v750
    %v2469 = vunpack.c.l.b16 %v751
    %v2470 = vunpack.c.l.b16 %v752
    %v2471 = vunpack.c.l.b16 %v753
    %v2472 = vunpack.c.l.b16 %v754
    %v2473 = vunpack.c.l.b16 %v755
    %v2474 = vunpack.c.l.b16 %v756
    %v2475 = vunpack.c.l.b16 %v757
    %v2476 = vunpack.c.l.b16 %v758
    %v2477 = vunpack.c.l.b16 %v759
    %v2478 = vunpack.c.l.b16 %v760
    %v2479 = vunpack.c.l.b16 %v761
    %v2480 = vunpack.c.l.b16 %v762
    %v2481 = vunpack.c.l.b16 %v763
    %v2482 = vunpack.c.l.b16 %v764
    %v2483 = vunpack.c.l.b16 %v765
    %v2484 = vunpack.c.l.b16 %v766
    %v2485 = vunpack.c.l.b16 %v767
    %v2486 = vunpack.c.l.b16 %v768
    %v2487 = vunpack.c.l.b16 %v769
    %v2488 = vunpack.c.l.b16 %v770
    %v2489 = vunpack.c.l.b16 %v771
    %v2490 = vunpack.c.l.b16 %v772
    %v2491 = vunpack.c.l.b16 %v773
    %v2492 = vunpack.c.l.b16 %v774
    %v2493 = vunpack.c.l.b16 %v775
    %v2494 = vunpack.c.l.b16 %v776
    %v2495 = vunpack.c.l.b16 %v777
    %v2496 = vunpack.c.l.b16 %v778
    %v2497 = vunpack.c.l.b16 %v779
    %v2498 = vunpack.c.l.b16 %v780
    %v2499 = vunpack.c.l.b16 %v781
    %v2500 = vunpack.c.l.b16 %v782
    %v2501 = vunpack.c.l.b16 %v783
    %v2502 = vunpack.c.l.b16 %v784
    %v2503 = vunpack.c.l.b16 %v785
    %v2504 = vunpack.c.l.b16 %v786
    %v2505 = vunpack.c.l.b16 %v787
    %v2506 = vunpack.c.l.b16 %v788
    %v2507 = vunpack.c.l.b16 %v789
    %v2508 = vunpack.c.l.b16 %v790
    %v2509 = vunpack.c.l.b16 %v791
    %v2510 = vunpack.c.l.b16 %v792
    %v2511 = vunpack.c.l.b16 %v793
    %v2512 = vunpack.c.l.b16 %v794
    %v2513 = vunpack.c.l.b16 %v795
    %v2514 = vunpack.c.l.b16 %v796
    %v2515 = vunpack.c.l.b16 %v797
    %v2516 = vunpack.c.l.b16 %v798
    %v2517 = vunpack.c.l.b16 %v799
    %v2518 = vunpack.c.l.b16 %v800
    %v2519 = vunpack.c.l.b16 %v801
    %v2520 = vunpack.c.l.b16 %v802
    %v2521 = vunpack.c.l.b16 %v803
    %v2522 = vunpack.c.l.b16 %v804
    %v2523 = vunpack.c.l.b16 %v805
    %v2524 = vunpack.c.l.b16 %v806
    %v2525 = vunpack.c.l.b16 %v807
    %v2526 = vunpack.c.l.b16 %v808
    %v2527 = vunpack.c.l.b16 %v809
    %v2528 = vunpack.c.l.b16 %v810
    %v2529 = vunpack.c.l.b16 %v811
    %v2530 = vunpack.c.l.b16 %v812
    %v2531 = vunpack.c.l.b16 %v813
    %v2532 = vunpack.c.l.b16 %v814
    %v2533 = vunpack.c.l.b16 %v815
    %v2534 = vunpack.c.l.b16 %v816
    %v2535 = vunpack.c.l.b16 %v817
    %v2536 = vunpack.c.l.b16 %v818
    %v2537 = vunpack.c.l.b16 %v819
    %v2538 = vunpack.c.l.b16 %v820
    %v2539 = vunpack.c.l.b16 %v821
    %v2540 = vunpack.c.l.b16 %v822
    %v2541 = vunpack.c.l.b16 %v823
    %v2542 = vunpack.c.l.b16 %v824
    %v2543 = vunpack.c.l.b16 %v825
    %v2544 = vunpack.c.l.b16 %v826
    %v2545 = vunpack.c.l.b16 %v827
    %v2546 = vunpack.c.l.b16 %v828
    %v2547 = vunpack.c.l.b16 %v829
    %v2548 = vunpack.c.l.b16 %v830
    %v2549 = vunpack.c.l.b16 %v831
    %v2550 = vunpack.c.l.b16 %v832
    %v2551 = vunpack.c.l.b16 %v833
    %v2552 = vunpack.c.l.b16 %v834
    %v2553 = vpack.c.b16 %v1754, %v1753
    %v2554 = vpack.c.b16 %v1756, %v1755
    %v2555 = vpack.c.b16 %v1758, %v1757
    %v2556 = vpack.c.b16 %v1760, %v1759
    %v2557 = vpack.c.b16 %v1762, %v1761
    %v2558 = vpack.c.b16 %v1764, %v1763
    %v2559 = vpack.c.b16 %v1766, %v1765
    %v2560 = vpack.c.b16 %v1768, %v1767
    %v2561 = vpack.c.b16 %v1770, %v1769
    %v2562 = vpack.c.b16 %v1772, %v1771
    %v2563 = vpack.c.b16 %v1774, %v1773
    %v2564 = vpack.c.b16 %v1776, %v1775
    %v2565 = vpack.c.b16 %v1778, %v1777
    %v2566 = vpack.c.b16 %v1780, %v1779
    %v2567 = vpack.c.b16 %v1782, %v1781
    %v2568 = vpack.c.b16 %v1784, %v1783
    %v2569 = vpack.c.b16 %v1786, %v1785
    %v2570 = vpack.c.b16 %v1788, %v1787
    %v2571 = vpack.c.b16 %v1790, %v1789
    %v2572 = vpack.c.b16 %v1792, %v1791
    %v2573 = vpack.c.b16 %v1794, %v1793
    %v2574 = vpack.c.b16 %v1796, %v1795
    %v2575 = vpack.c.b16 %v1798, %v1797
    %v2576 = vpack.c.b16 %v1800, %v1799
    %v2577 = vpack.c.b16 %v1802, %v1801
    %v2578 = vpack.c.b16 %v1804, %v1803
    %v2579 = vpack.c.b16 %v1806, %v1805
    %v2580 = vpack.c.b16 %v1808, %v1807
    %v2581 = vpack.c.b16 %v1810, %v1809
    %v2582 = vpack.c.b16 %v1812, %v1811
    %v2583 = vpack.c.b16 %v1814, %v1813
    %v2584 = vpack.c.b16 %v1816, %v1815
    %v2585 = vpack.c.b16 %v1818, %v1817
    %v2586 = vpack.c.b16 %v1820, %v1819
    %v2587 = vpack.c.b16 %v1822, %v1821
    %v2588 = vpack.c.b16 %v1824, %v1823
    %v2589 = vpack.c.b16 %v1826, %v1825
    %v2590 = vpack.c.b16 %v1828, %v1827
    %v2591 = vpack.c.b16 %v1830, %v1829
    %v2592 = vpack.c.b16 %v1832, %v1831
    %v2593 = vpack.c.b16 %v1834, %v1833
    %v2594 = vpack.c.b16 %v1836, %v1835
    %v2595 = vpack.c.b16 %v1838, %v1837
    %v2596 = vpack.c.b16 %v1840, %v1839
    %v2597 = vpack.c.b16 %v1842, %v1841
    %v2598 = vpack.c.b16 %v1844, %v1843
    %v2599 = vpack.c.b16 %v1846, %v1845
    %v2600 = vpack.c.b16 %v1848, %v1847
    %v2601 = vpack.c.b16 %v1850, %v1849
    %v2602 = vpack.c.b16 %v1852, %v1851
    %v2603 = vpack.c.b16 %v1854, %v1853
    %v2604 = vpack.c.b16 %v1856, %v1855
    %v2605 = vpack.c.b16 %v1858, %v1857
    %v2606 = vpack.c.b16 %v1860, %v1859
    %v2607 = vpack.c.b16 %v1862, %v1861
    %v2608 = vpack.c.b16 %v1864, %v1863
    %v2609 = vpack.c.b16 %v1866, %v1865
    %v2610 = vpack.c.b16 %v1868, %v1867
    %v2611 = vpack.c.b16 %v1870, %v1869
    %v2612 = vpack.c.b16 %v1872, %v1871
    %v2613 = vpack.c.b16 %v1874, %v1873
    %v2614 = vpack.c.b16 %v1876, %v1875
    %v2615 = vpack.c.b16 %v1878, %v1877
    %v2616 = vpack.c.b16 %v1880, %v1879
    %v2617 = vpack.c.b16 %v1882, %v1881
    %v2618 = vpack.c.b16 %v1884, %v1883
    %v2619 = vpack.c.b16 %v1886, %v1885
    %v2620 = vpack.c.b16 %v1888, %v1887
    %v2621 = vpack.c.b16 %v1890, %v1889
    %v2622 = vpack.c.b16 %v1892, %v1891
    %v2623 = vpack.c.b16 %v1894, %v1893
    %v2624 = vpack.c.b16 %v1896, %v1895
    %v2625 = vpack.c.b16 %v1898, %v1897
    %v2626 = vpack.c.b16 %v1900, %v1899
    %v2627 = vpack.c.b16 %v1902, %v1901
    %v2628 = vpack.c.b16 %v1904, %v1903
    %v2629 = vpack.c.b16 %v1906, %v1905
    %v2630 = vpack.c.b16 %v1908, %v1907
    %v2631 = vpack.c.b16 %v1910, %v1909
    %v2632 = vpack.c.b16 %v1912, %v1911
    %v2633 = vpack.c.b16 %v1914, %v1913
    %v2634 = vpack.c.b16 %v1916, %v1915
    %v2635 = vpack.c.b16 %v1918, %v1917
    %v2636 = vpack.c.b16 %v1920, %v1919
    %v2637 = vpack.c.b16 %v1922, %v1921
    %v2638 = vpack.c.b16 %v1924, %v1923
    %v2639 = vpack.c.b16 %v1926, %v1925
    %v2640 = vpack.c.b16 %v1928, %v1927
    %v2641 = vpack.c.b16 %v1930, %v1929
    %v2642 = vpack.c.b16 %v1932, %v1931
    %v2643 = vpack.c.b16 %v1934, %v1933
    %v2644 = vpack.c.b16 %v1936, %v1935
    %v2645 = vpack.c.b16 %v1938, %v1937
    %v2646 = vpack.c.b16 %v1940, %v1939
    %v2647 = vpack.c.b16 %v1942, %v1941
    %v2648 = vpack.c.b16 %v1944, %v1943
    %v2649 = vpack.c.b16 %v1946, %v1945
    %v2650 = vpack.c.b16 %v1948, %v1947
    %v2651 = vpack.c.b16 %v1950, %v1949
    %v2652 = vpack.c.b16 %v1952, %v1951
    %v2653 = vpack.c.b16 %v1954, %v1953
    %v2654 = vpack.c.b16 %v1956, %v1955
    %v2655 = vpack.c.b16 %v1958, %v1957
    %v2656 = vpack.c.b16 %v1960, %v1959
    %v2657 = vpack.c.b16 %v1962, %v1961
    %v2658 = vpack.c.b16 %v1964, %v1963
    %v2659 = vpack.c.b16 %v1966, %v1965
    %v2660 = vpack.c.b16 %v1968, %v1967
    %v2661 = vpack.c.b16 %v1970, %v1969
    %v2662 = vpack.c.b16 %v1972, %v1971
    %v2663 = vpack.c.b16 %v1974, %v1973
    %v2664 = vpack.c.b16 %v1976, %v1975
    %v2665 = vpack.c.b16 %v1978, %v1977
    %v2666 = vpack.c.b16 %v1980, %v1979
    %v2667 = vpack.c.b16 %v1982, %v1981
    %v2668 = vpack.c.b16 %v1984, %v1983
    %v2669 = vpack.c.b16 %v1986, %v1985
    %v2670 = vpack.c.b16 %v1988, %v1987
    %v2671 = vpack.c.b16 %v1990, %v1989
    %v2672 = vpack.c.b16 %v1992, %v1991
    %v2673 = vpack.c.b16 %v1994, %v1993
    %v2674 = vpack.c.b16 %v1996, %v1995
    %v2675 = vpack.c.b16 %v1998, %v1997
    %v2676 = vpack.c.b16 %v2000, %v1999
    %v2677 = vpack.c.b16 %v2002, %v2001
    %v2678 = vpack.c.b16 %v2004, %v2003
    %v2679 = vpack.c.b16 %v2006, %v2005
    %v2680 = vpack.c.b16 %v2008, %v2007
    %v2681 = vpack.c.b16 %v2010, %v2009
    %v2682 = vpack.c.b16 %v2012, %v2011
    %v2683 = vpack.c.b16 %v2014, %v2013
    %v2684 = vpack.c.b16 %v2016, %v2015
    %v2685 = vpack.c.b16 %v2018, %v2017
    %v2686 = vpack.c.b16 %v2020, %v2019
    %v2687 = vpack.c.b16 %v2022, %v2021
    %v2688 = vpack.c.b16 %v2024, %v2023
    %v2689 = vpack.c.b16 %v2026, %v2025
    %v2690 = vpack.c.b16 %v2028, %v2027
    %v2691 = vpack.c.b16 %v2030, %v2029
    %v2692 = vpack.c.b16 %v2032, %v2031
    %v2693 = vpack.c.b16 %v2034, %v2033
    %v2694 = vpack.c.b16 %v2036, %v2035
    %v2695 = vpack.c.b16 %v2038, %v2037
    %v2696 = vpack.c.b16 %v2040, %v2039
    %v2697 = vpack.c.b16 %v2042, %v2041
    %v2698 = vpack.c.b16 %v2044, %v2043
    %v2699 = vpack.c.b16 %v2046, %v2045
    %v2700 = vpack.c.b16 %v2048, %v2047
    %v2701 = vpack.c.b16 %v2050, %v2049
    %v2702 = vpack.c.b16 %v2052, %v2051
    %v2703 = vpack.c.b16 %v2054, %v2053
    %v2704 = vpack.c.b16 %v2056, %v2055
    %v2705 = vpack.c.b16 %v2058, %v2057
    %v2706 = vpack.c.b16 %v2060, %v2059
    %v2707 = vpack.c.b16 %v2062, %v2061
    %v2708 = vpack.c.b16 %v2064, %v2063
    %v2709 = vpack.c.b16 %v2066, %v2065
    %v2710 = vpack.c.b16 %v2068, %v2067
    %v2711 = vpack.c.b16 %v2070, %v2069
    %v2712 = vpack.c.b16 %v2072, %v2071
    %v2713 = vpack.c.b16 %v2074, %v2073
    %v2714 = vpack.c.b16 %v2076, %v2075
    %v2715 = vpack.c.b16 %v2078, %v2077
    %v2716 = vpack.c.b16 %v2080, %v2079
    %v2717 = vpack.c.b16 %v2082, %v2081
    %v2718 = vpack.c.b16 %v2084, %v2083
    %v2719 = vpack.c.b16 %v2086, %v2085
    %v2720 = vpack.c.b16 %v2088, %v2087
    %v2721 = vpack.c.b16 %v2090, %v2089
    %v2722 = vpack.c.b16 %v2092, %v2091
    %v2723 = vpack.c.b16 %v2094, %v2093
    %v2724 = vpack.c.b16 %v2096, %v2095
    %v2725 = vpack.c.b16 %v2098, %v2097
    %v2726 = vpack.c.b16 %v2100, %v2099
    %v2727 = vpack.c.b16 %v2102, %v2101
    %v2728 = vpack.c.b16 %v2104, %v2103
    %v2729 = vpack.c.b16 %v2106, %v2105
    %v2730 = vpack.c.b16 %v2108, %v2107
    %v2731 = vpack.c.b16 %v2110, %v2109
    %v2732 = vpack.c.b16 %v2112, %v2111
    %v2733 = vpack.c.b16 %v2114, %v2113
    %v2734 = vpack.c.b16 %v2116, %v2115
    %v2735 = vpack.c.b16 %v2118, %v2117
    %v2736 = vpack.c.b16 %v2120, %v2119
    %v2737 = vpack.c.b16 %v2122, %v2121
    %v2738 = vpack.c.b16 %v2124, %v2123
    %v2739 = vpack.c.b16 %v2126, %v2125
    %v2740 = vpack.c.b16 %v2128, %v2127
    %v2741 = vpack.c.b16 %v2130, %v2129
    %v2742 = vpack.c.b16 %v2132, %v2131
    %v2743 = vpack.c.b16 %v2134, %v2133
    %v2744 = vpack.c.b16 %v2136, %v2135
    %v2745 = vpack.c.b16 %v2138, %v2137
    %v2746 = vpack.c.b16 %v2140, %v2139
    %v2747 = vpack.c.b16 %v2142, %v2141
    %v2748 = vpack.c.b16 %v2144, %v2143
    %v2749 = vpack.c.b16 %v2146, %v2145
    %v2750 = vpack.c.b16 %v2148, %v2147
    %v2751 = vpack.c.b16 %v2150, %v2149
    %v2752 = vpack.c.b16 %v2152, %v2151
    %v2753 = vpack.c.b16 %v2154, %v2153
    %v2754 = vpack.c.b16 %v2156, %v2155
    %v2755 = vpack.c.b16 %v2158, %v2157
    %v2756 = vpack.c.b16 %v2160, %v2159
    %v2757 = vpack.c.b16 %v2162, %v2161
    %v2758 = vpack.c.b16 %v2164, %v2163
    %v2759 = vpack.c.b16 %v2166, %v2165
    %v2760 = vpack.c.b16 %v2168, %v2167
    %v2761 = vpack.c.b16 %v2170, %v2169
    %v2762 = vpack.c.b16 %v2172, %v2171
    %v2763 = vpack.c.b16 %v2174, %v2173
    %v2764 = vpack.c.b16 %v2176, %v2175
    %v2765 = vpack.c.b16 %v2178, %v2177
    %v2766 = vpack.c.b16 %v2180, %v2179
    %v2767 = vpack.c.b16 %v2182, %v2181
    %v2768 = vpack.c.b16 %v2184, %v2183
    %v2769 = vpack.c.b16 %v2186, %v2185
    %v2770 = vpack.c.b16 %v2188, %v2187
    %v2771 = vpack.c.b16 %v2190, %v2189
    %v2772 = vpack.c.b16 %v2192, %v2191
    %v2773 = vpack.c.b16 %v2194, %v2193
    %v2774 = vpack.c.b16 %v2196, %v2195
    %v2775 = vpack.c.b16 %v2198, %v2197
    %v2776 = vpack.c.b16 %v2200, %v2199
    %v2777 = vpack.c.b16 %v2202, %v2201
    %v2778 = vpack.c.b16 %v2204, %v2203
    %v2779 = vpack.c.b16 %v2206, %v2205
    %v2780 = vpack.c.b16 %v2208, %v2207
    %v2781 = vpack.c.b16 %v2210, %v2209
    %v2782 = vpack.c.b16 %v2212, %v2211
    %v2783 = vpack.c.b16 %v2214, %v2213
    %v2784 = vpack.c.b16 %v2216, %v2215
    %v2785 = vpack.c.b16 %v2218, %v2217
    %v2786 = vpack.c.b16 %v2220, %v2219
    %v2787 = vpack.c.b16 %v2222, %v2221
    %v2788 = vpack.c.b16 %v2224, %v2223
    %v2789 = vpack.c.b16 %v2226, %v2225
    %v2790 = vpack.c.b16 %v2228, %v2227
    %v2791 = vpack.c.b16 %v2230, %v2229
    %v2792 = vpack.c.b16 %v2232, %v2231
    %v2793 = vpack.c.b16 %v2234, %v2233
    %v2794 = vpack.c.b16 %v2236, %v2235
    %v2795 = vpack.c.b16 %v2238, %v2237
    %v2796 = vpack.c.b16 %v2240, %v2239
    %v2797 = vpack.c.b16 %v2242, %v2241
    %v2798 = vpack.c.b16 %v2244, %v2243
    %v2799 = vpack.c.b16 %v2246, %v2245
    %v2800 = vpack.c.b16 %v2248, %v2247
    %v2801 = vpack.c.b16 %v2250, %v2249
    %v2802 = vpack.c.b16 %v2252, %v2251
    %v2803 = vpack.c.b16 %v2254, %v2253
    %v2804 = vpack.c.b16 %v2256, %v2255
    %v2805 = vpack.c.b16 %v2258, %v2257
    %v2806 = vpack.c.b16 %v2260, %v2259
    %v2807 = vpack.c.b16 %v2262, %v2261
    %v2808 = vpack.c.b16 %v2264, %v2263
    %v2809 = vpack.c.b16 %v2266, %v2265
    %v2810 = vpack.c.b16 %v2268, %v2267
    %v2811 = vpack.c.b16 %v2270, %v2269
    %v2812 = vpack.c.b16 %v2272, %v2271
    %v2813 = vpack.c.b16 %v2274, %v2273
    %v2814 = vpack.c.b16 %v2276, %v2275
    %v2815 = vpack.c.b16 %v2278, %v2277
    %v2816 = vpack.c.b16 %v2280, %v2279
    %v2817 = vpack.c.b16 %v2282, %v2281
    %v2818 = vpack.c.b16 %v2284, %v2283
    %v2819 = vpack.c.b16 %v2286, %v2285
    %v2820 = vpack.c.b16 %v2288, %v2287
    %v2821 = vpack.c.b16 %v2290, %v2289
    %v2822 = vpack.c.b16 %v2292, %v2291
    %v2823 = vpack.c.b16 %v2294, %v2293
    %v2824 = vpack.c.b16 %v2296, %v2295
    %v2825 = vpack.c.b16 %v2298, %v2297
    %v2826 = vpack.c.b16 %v2300, %v2299
    %v2827 = vpack.c.b16 %v2302, %v2301
    %v2828 = vpack.c.b16 %v2304, %v2303
    %v2829 = vpack.c.b16 %v2306, %v2305
    %v2830 = vpack.c.b16 %v2308, %v2307
    %v2831 = vpack.c.b16 %v2310, %v2309
    %v2832 = vpack.c.b16 %v2312, %v2311
    %v2833 = vpack.c.b16 %v2314, %v2313
    %v2834 = vpack.c.b16 %v2316, %v2315
    %v2835 = vpack.c.b16 %v2318, %v2317
    %v2836 = vpack.c.b16 %v2320, %v2319
    %v2837 = vpack.c.b16 %v2322, %v2321
    %v2838 = vpack.c.b16 %v2324, %v2323
    %v2839 = vpack.c.b16 %v2326, %v2325
    %v2840 = vpack.c.b16 %v2328, %v2327
    %v2841 = vpack.c.b16 %v2330, %v2329
    %v2842 = vpack.c.b16 %v2332, %v2331
    %v2843 = vpack.c.b16 %v2334, %v2333
    %v2844 = vpack.c.b16 %v2336, %v2335
    %v2845 = vpack.c.b16 %v2338, %v2337
    %v2846 = vpack.c.b16 %v2340, %v2339
    %v2847 = vpack.c.b16 %v2342, %v2341
    %v2848 = vpack.c.b16 %v2344, %v2343
    %v2849 = vpack.c.b16 %v2346, %v2345
    %v2850 = vpack.c.b16 %v2348, %v2347
    %v2851 = vpack.c.b16 %v2350, %v2349
    %v2852 = vpack.c.b16 %v2352, %v2351
    %v2853 = vpack.c.b16 %v2354, %v2353
    %v2854 = vpack.c.b16 %v2356, %v2355
    %v2855 = vpack.c.b16 %v2358, %v2357
    %v2856 = vpack.c.b16 %v2360, %v2359
    %v2857 = vpack.c.b16 %v2362, %v2361
    %v2858 = vpack.c.b16 %v2364, %v2363
    %v2859 = vpack.c.b16 %v2366, %v2365
    %v2860 = vpack.c.b16 %v2368, %v2367
    %v2861 = vpack.c.b16 %v2370, %v2369
    %v2862 = vpack.c.b16 %v2372, %v2371
    %v2863 = vpack.c.b16 %v2374, %v2373
    %v2864 = vpack.c.b16 %v2376, %v2375
    %v2865 = vpack.c.b16 %v2378, %v2377
    %v2866 = vpack.c.b16 %v2380, %v2379
    %v2867 = vpack.c.b16 %v2382, %v2381
    %v2868 = vpack.c.b16 %v2384, %v2383
    %v2869 = vpack.c.b16 %v2386, %v2385
    %v2870 = vpack.c.b16 %v2388, %v2387
    %v2871 = vpack.c.b16 %v2390, %v2389
    %v2872 = vpack.c.b16 %v2392, %v2391
    %v2873 = vpack.c.b16 %v2394, %v2393
    %v2874 = vpack.c.b16 %v2396, %v2395
    %v2875 = vpack.c.b16 %v2398, %v2397
    %v2876 = vpack.c.b16 %v2400, %v2399
    %v2877 = vpack.c.b16 %v2402, %v2401
    %v2878 = vpack.c.b16 %v2404, %v2403
    %v2879 = vpack.c.b16 %v2406, %v2405
    %v2880 = vpack.c.b16 %v2408, %v2407
    %v2881 = vpack.c.b16 %v2410, %v2409
    %v2882 = vpack.c.b16 %v2412, %v2411
    %v2883 = vpack.c.b16 %v2414, %v2413
    %v2884 = vpack.c.b16 %v2416, %v2415
    %v2885 = vpack.c.b16 %v2418, %v2417
    %v2886 = vpack.c.b16 %v2420, %v2419
    %v2887 = vpack.c.b16 %v2422, %v2421
    %v2888 = vpack.c.b16 %v2424, %v2423
    %v2889 = vpack.c.b16 %v2426, %v2425
    %v2890 = vpack.c.b16 %v2428, %v2427
    %v2891 = vpack.c.b16 %v2430, %v2429
    %v2892 = vpack.c.b16 %v2432, %v2431
    %v2893 = vpack.c.b16 %v2434, %v2433
    %v2894 = vpack.c.b16 %v2436, %v2435
    %v2895 = vpack.c.b16 %v2438, %v2437
    %v2896 = vpack.c.b16 %v2440, %v2439
    %v2897 = vpack.c.b16 %v2442, %v2441
    %v2898 = vpack.c.b16 %v2444, %v2443
    %v2899 = vpack.c.b16 %v2446, %v2445
    %v2900 = vpack.c.b16 %v2448, %v2447
    %v2901 = vpack.c.b16 %v2450, %v2449
    %v2902 = vpack.c.b16 %v2452, %v2451
    %v2903 = vpack.c.b16 %v2454, %v2453
    %v2904 = vpack.c.b16 %v2456, %v2455
    %v2905 = vpack.c.b16 %v2458, %v2457
    %v2906 = vpack.c.b16 %v2460, %v2459
    %v2907 = vpack.c.b16 %v2462, %v2461
    %v2908 = vpack.c.b16 %v2464, %v2463
    %v2909 = vpack.c.b16 %v2466, %v2465
    %v2910 = vpack.c.b16 %v2468, %v2467
    %v2911 = vpack.c.b16 %v2470, %v2469
    %v2912 = vpack.c.b16 %v2472, %v2471
    %v2913 = vpack.c.b16 %v2474, %v2473
    %v2914 = vpack.c.b16 %v2476, %v2475
    %v2915 = vpack.c.b16 %v2478, %v2477
    %v2916 = vpack.c.b16 %v2480, %v2479
    %v2917 = vpack.c.b16 %v2482, %v2481
    %v2918 = vpack.c.b16 %v2484, %v2483
    %v2919 = vpack.c.b16 %v2486, %v2485
    %v2920 = vpack.c.b16 %v2488, %v2487
    %v2921 = vpack.c.b16 %v2490, %v2489
    %v2922 = vpack.c.b16 %v2492, %v2491
    %v2923 = vpack.c.b16 %v2494, %v2493
    %v2924 = vpack.c.b16 %v2496, %v2495
    %v2925 = vpack.c.b16 %v2498, %v2497
    %v2926 = vpack.c.b16 %v2500, %v2499
    %v2927 = vpack.c.b16 %v2502, %v2501
    %v2928 = vpack.c.b16 %v2504, %v2503
    %v2929 = vpack.c.b16 %v2506, %v2505
    %v2930 = vpack.c.b16 %v2508, %v2507
    %v2931 = vpack.c.b16 %v2510, %v2509
    %v2932 = vpack.c.b16 %v2512, %v2511
    %v2933 = vpack.c.b16 %v2514, %v2513
    %v2934 = vpack.c.b16 %v2516, %v2515
    %v2935 = vpack.c.b16 %v2518, %v2517
    %v2936 = vpack.c.b16 %v2520, %v2519
    %v2937 = vpack.c.b16 %v2522, %v2521
    %v2938 = vpack.c.b16 %v2524, %v2523
    %v2939 = vpack.c.b16 %v2526, %v2525
    %v2940 = vpack.c.b16 %v2528, %v2527
    %v2941 = vpack.c.b16 %v2530, %v2529
    %v2942 = vpack.c.b16 %v2532, %v2531
    %v2943 = vpack.c.b16 %v2534, %v2533
    %v2944 = vpack.c.b16 %v2536, %v2535
    %v2945 = vpack.c.b16 %v2538, %v2537
    %v2946 = vpack.c.b16 %v2540, %v2539
    %v2947 = vpack.c.b16 %v2542, %v2541
    %v2948 = vpack.c.b16 %v2544, %v2543
    %v2949 = vpack.c.b16 %v2546, %v2545
    %v2950 = vpack.c.b16 %v2548, %v2547
    %v2951 = vpack.c.b16 %v2550, %v2549
    %v2952 = vpack.c.b16 %v2552, %v2551
    %3353 = vmatpush.bf16.msra.mxu0 %v2560
    %3354 = vmatpush.bf16.msra.mxu0 %v2559
    %3355 = vmatpush.bf16.msra.mxu0 %v2558
    %3356 = vmatpush.bf16.msra.mxu0 %v2557
    %3357 = vmatpush.bf16.msra.mxu0 %v2556
    %3358 = vmatpush.bf16.msra.mxu0 %v2555
    %3359 = vmatpush.bf16.msra.mxu0 %v2554
    %3360 = vmatpush.bf16.msra.mxu0 %v2553
    %3361 = vmatmul.bf16.gmra.mxu0 %v841
    %v3362 = vpop.f32.mrf.mxu0
    %v3363 = vadd.f32 %v837, %v3362
    %v3364 = vpop.f32.mrf.mxu0
    %3365 = vdwg.mxu0
    %3366 = vmatpush.bf16.msra.mxu0 %v2568
    %3367 = vmatpush.bf16.msra.mxu0 %v2567
    %3368 = vmatpush.bf16.msra.mxu0 %v2566
    %3369 = vmatpush.bf16.msra.mxu0 %v2565
    %3370 = vmatpush.bf16.msra.mxu0 %v2564
    %3371 = vmatpush.bf16.msra.mxu0 %v2563
    %3372 = vmatpush.bf16.msra.mxu0 %v2562
    %3373 = vmatpush.bf16.msra.mxu0 %v2561
    %3374 = vmatmul.bf16.gmra.mxu0 %v842
    %v3375 = vpop.f32.mrf.mxu0
    %v3376 = vadd.f32 %v3363, %v3375
    %v3377 = vpop.f32.mrf.mxu0
    %3378 = vdwg.mxu0
    %3379 = vmatpush.bf16.msra.mxu0 %v2576
    %3380 = vmatpush.bf16.msra.mxu0 %v2575
    %3381 = vmatpush.bf16.msra.mxu0 %v2574
    %3382 = vmatpush.bf16.msra.mxu0 %v2573
    %3383 = vmatpush.bf16.msra.mxu0 %v2572
    %3384 = vmatpush.bf16.msra.mxu0 %v2571
    %3385 = vmatpush.bf16.msra.mxu0 %v2570
    %3386 = vmatpush.bf16.msra.mxu0 %v2569
    %3387 = vmatmul.bf16.gmra.mxu0 %v843
    %v3388 = vpop.f32.mrf.mxu0
    %v3389 = vadd.f32 %v3376, %v3388
    %v3390 = vpop.f32.mrf.mxu0
    %3391 = vdwg.mxu0
    %3392 = vmatpush.bf16.msra.mxu0 %v2584
    %3393 = vmatpush.bf16.msra.mxu0 %v2583
    %3394 = vmatpush.bf16.msra.mxu0 %v2582
    %3395 = vmatpush.bf16.msra.mxu0 %v2581
    %3396 = vmatpush.bf16.msra.mxu0 %v2580
    %3397 = vmatpush.bf16.msra.mxu0 %v2579
    %3398 = vmatpush.bf16.msra.mxu0 %v2578
    %3399 = vmatpush.bf16.msra.mxu0 %v2577
    %3400 = vmatmul.bf16.gmra.mxu0 %v844
    %v3401 = vpop.f32.mrf.mxu0
    %v3402 = vadd.f32 %v3389, %v3401
    %v3403 = vpop.f32.mrf.mxu0
    %3404 = vdwg.mxu0
    %3405 = vmatpush.bf16.msra.mxu0 %v2592
    %3406 = vmatpush.bf16.msra.mxu0 %v2591
    %3407 = vmatpush.bf16.msra.mxu0 %v2590
    %3408 = vmatpush.bf16.msra.mxu0 %v2589
    %3409 = vmatpush.bf16.msra.mxu0 %v2588
    %3410 = vmatpush.bf16.msra.mxu0 %v2587
    %3411 = vmatpush.bf16.msra.mxu0 %v2586
    %3412 = vmatpush.bf16.msra.mxu0 %v2585
    %3413 = vmatmul.bf16.gmra.mxu0 %v845
    %v3414 = vpop.f32.mrf.mxu0
    %v3415 = vadd.f32 %v3402, %v3414
    %v3416 = vpop.f32.mrf.mxu0
    %3417 = vdwg.mxu0
    %3418 = vmatpush.bf16.msra.mxu0 %v2600
    %3419 = vmatpush.bf16.msra.mxu0 %v2599
    %3420 = vmatpush.bf16.msra.mxu0 %v2598
    %3421 = vmatpush.bf16.msra.mxu0 %v2597
    %3422 = vmatpush.bf16.msra.mxu0 %v2596
    %3423 = vmatpush.bf16.msra.mxu0 %v2595
    %3424 = vmatpush.bf16.msra.mxu0 %v2594
    %3425 = vmatpush.bf16.msra.mxu0 %v2593
    %3426 = vmatmul.bf16.gmra.mxu0 %v846
    %v3427 = vpop.f32.mrf.mxu0
    %v3428 = vadd.f32 %v3415, %v3427
    %v3429 = vpop.f32.mrf.mxu0
    %3430 = vdwg.mxu0
    %3431 = vmatpush.bf16.msra.mxu0 %v2608
    %3432 = vmatpush.bf16.msra.mxu0 %v2607
    %3433 = vmatpush.bf16.msra.mxu0 %v2606
    %3434 = vmatpush.bf16.msra.mxu0 %v2605
    %3435 = vmatpush.bf16.msra.mxu0 %v2604
    %3436 = vmatpush.bf16.msra.mxu0 %v2603
    %3437 = vmatpush.bf16.msra.mxu0 %v2602
    %3438 = vmatpush.bf16.msra.mxu0 %v2601
    %3439 = vmatmul.bf16.gmra.mxu0 %v847
    %v3440 = vpop.f32.mrf.mxu0
    %v3441 = vadd.f32 %v3428, %v3440
    %v3442 = vpop.f32.mrf.mxu0
    %3443 = vdwg.mxu0
    %3444 = vmatpush.bf16.msra.mxu0 %v2616
    %3445 = vmatpush.bf16.msra.mxu0 %v2615
    %3446 = vmatpush.bf16.msra.mxu0 %v2614
    %3447 = vmatpush.bf16.msra.mxu0 %v2613
    %3448 = vmatpush.bf16.msra.mxu0 %v2612
    %3449 = vmatpush.bf16.msra.mxu0 %v2611
    %3450 = vmatpush.bf16.msra.mxu0 %v2610
    %3451 = vmatpush.bf16.msra.mxu0 %v2609
    %3452 = vmatmul.bf16.gmra.mxu0 %v848
    %v3453 = vpop.f32.mrf.mxu0
    %v3454 = vadd.f32 %v3441, %v3453
    %v3455 = vpop.f32.mrf.mxu0
    %3456 = vdwg.mxu0
    %3457 = vmatpush.bf16.msra.mxu0 %v2624
    %3458 = vmatpush.bf16.msra.mxu0 %v2623
    %3459 = vmatpush.bf16.msra.mxu0 %v2622
    %3460 = vmatpush.bf16.msra.mxu0 %v2621
    %3461 = vmatpush.bf16.msra.mxu0 %v2620
    %3462 = vmatpush.bf16.msra.mxu0 %v2619
    %3463 = vmatpush.bf16.msra.mxu0 %v2618
    %3464 = vmatpush.bf16.msra.mxu0 %v2617
    %3465 = vmatmul.bf16.gmra.mxu0 %v851
    %v3466 = vpop.f32.mrf.mxu0
    %v3467 = vadd.f32 %v3454, %v3466
    %v3468 = vpop.f32.mrf.mxu0
    %3469 = vdwg.mxu0
    %3470 = vmatpush.bf16.msra.mxu0 %v2632
    %3471 = vmatpush.bf16.msra.mxu0 %v2631
    %3472 = vmatpush.bf16.msra.mxu0 %v2630
    %3473 = vmatpush.bf16.msra.mxu0 %v2629
    %3474 = vmatpush.bf16.msra.mxu0 %v2628
    %3475 = vmatpush.bf16.msra.mxu0 %v2627
    %3476 = vmatpush.bf16.msra.mxu0 %v2626
    %3477 = vmatpush.bf16.msra.mxu0 %v2625
    %3478 = vmatmul.bf16.gmra.mxu0 %v852
    %v3479 = vpop.f32.mrf.mxu0
    %v3480 = vadd.f32 %v3467, %v3479
    %v3481 = vpop.f32.mrf.mxu0
    %3482 = vdwg.mxu0
    %3483 = vmatpush.bf16.msra.mxu0 %v2640
    %3484 = vmatpush.bf16.msra.mxu0 %v2639
    %3485 = vmatpush.bf16.msra.mxu0 %v2638
    %3486 = vmatpush.bf16.msra.mxu0 %v2637
    %3487 = vmatpush.bf16.msra.mxu0 %v2636
    %3488 = vmatpush.bf16.msra.mxu0 %v2635
    %3489 = vmatpush.bf16.msra.mxu0 %v2634
    %3490 = vmatpush.bf16.msra.mxu0 %v2633
    %3491 = vmatmul.bf16.gmra.mxu0 %v853
    %v3492 = vpop.f32.mrf.mxu0
    %v3493 = vadd.f32 %v3480, %v3492
    %v3494 = vpop.f32.mrf.mxu0
    %3495 = vdwg.mxu0
    %3496 = vmatpush.bf16.msra.mxu0 %v2648
    %3497 = vmatpush.bf16.msra.mxu0 %v2647
    %3498 = vmatpush.bf16.msra.mxu0 %v2646
    %3499 = vmatpush.bf16.msra.mxu0 %v2645
    %3500 = vmatpush.bf16.msra.mxu0 %v2644
    %3501 = vmatpush.bf16.msra.mxu0 %v2643
    %3502 = vmatpush.bf16.msra.mxu0 %v2642
    %3503 = vmatpush.bf16.msra.mxu0 %v2641
    %3504 = vmatmul.bf16.gmra.mxu0 %v854
    %v3505 = vpop.f32.mrf.mxu0
    %v3506 = vadd.f32 %v3493, %v3505
    %v3507 = vpop.f32.mrf.mxu0
    %3508 = vdwg.mxu0
    %3509 = vmatpush.bf16.msra.mxu0 %v2656
    %3510 = vmatpush.bf16.msra.mxu0 %v2655
    %3511 = vmatpush.bf16.msra.mxu0 %v2654
    %3512 = vmatpush.bf16.msra.mxu0 %v2653
    %3513 = vmatpush.bf16.msra.mxu0 %v2652
    %3514 = vmatpush.bf16.msra.mxu0 %v2651
    %3515 = vmatpush.bf16.msra.mxu0 %v2650
    %3516 = vmatpush.bf16.msra.mxu0 %v2649
    %3517 = vmatmul.bf16.gmra.mxu0 %v855
    %v3518 = vpop.f32.mrf.mxu0
    %v3519 = vadd.f32 %v3506, %v3518
    %v3520 = vpop.f32.mrf.mxu0
    %3521 = vdwg.mxu0
    %3522 = vmatpush.bf16.msra.mxu0 %v2664
    %3523 = vmatpush.bf16.msra.mxu0 %v2663
    %3524 = vmatpush.bf16.msra.mxu0 %v2662
    %3525 = vmatpush.bf16.msra.mxu0 %v2661
    %3526 = vmatpush.bf16.msra.mxu0 %v2660
    %3527 = vmatpush.bf16.msra.mxu0 %v2659
    %3528 = vmatpush.bf16.msra.mxu0 %v2658
    %3529 = vmatpush.bf16.msra.mxu0 %v2657
    %3530 = vmatmul.bf16.gmra.mxu0 %v856
    %v3531 = vpop.f32.mrf.mxu0
    %v3532 = vadd.f32 %v3519, %v3531
    %v3533 = vpop.f32.mrf.mxu0
    %3534 = vdwg.mxu0
    %3535 = vmatpush.bf16.msra.mxu0 %v2672
    %3536 = vmatpush.bf16.msra.mxu0 %v2671
    %3537 = vmatpush.bf16.msra.mxu0 %v2670
    %3538 = vmatpush.bf16.msra.mxu0 %v2669
    %3539 = vmatpush.bf16.msra.mxu0 %v2668
    %3540 = vmatpush.bf16.msra.mxu0 %v2667
    %3541 = vmatpush.bf16.msra.mxu0 %v2666
    %3542 = vmatpush.bf16.msra.mxu0 %v2665
    %3543 = vmatmul.bf16.gmra.mxu0 %v857
    %v3544 = vpop.f32.mrf.mxu0
    %v3545 = vadd.f32 %v3532, %v3544
    %v3546 = vpop.f32.mrf.mxu0
    %3547 = vdwg.mxu0
    %3548 = vmatpush.bf16.msra.mxu0 %v2680
    %3549 = vmatpush.bf16.msra.mxu0 %v2679
    %3550 = vmatpush.bf16.msra.mxu0 %v2678
    %3551 = vmatpush.bf16.msra.mxu0 %v2677
    %3552 = vmatpush.bf16.msra.mxu0 %v2676
    %3553 = vmatpush.bf16.msra.mxu0 %v2675
    %3554 = vmatpush.bf16.msra.mxu0 %v2674
    %3555 = vmatpush.bf16.msra.mxu0 %v2673
    %3556 = vmatmul.bf16.gmra.mxu0 %v858
    %v3557 = vpop.f32.mrf.mxu0
    %v3558 = vadd.f32 %v3545, %v3557
    %v3559 = vpop.f32.mrf.mxu0
    %3560 = vdwg.mxu0
    %3561 = vmatpush.bf16.msra.mxu0 %v2688
    %3562 = vmatpush.bf16.msra.mxu0 %v2687
    %3563 = vmatpush.bf16.msra.mxu0 %v2686
    %3564 = vmatpush.bf16.msra.mxu0 %v2685
    %3565 = vmatpush.bf16.msra.mxu0 %v2684
    %3566 = vmatpush.bf16.msra.mxu0 %v2683
    %3567 = vmatpush.bf16.msra.mxu0 %v2682
    %3568 = vmatpush.bf16.msra.mxu0 %v2681
    %3569 = vmatmul.bf16.gmra.mxu0 %v861
    %v3570 = vpop.f32.mrf.mxu0
    %v3571 = vadd.f32 %v3558, %v3570
    %v3572 = vpop.f32.mrf.mxu0
    %3573 = vdwg.mxu0
    %3574 = vmatpush.bf16.msra.mxu0 %v2696
    %3575 = vmatpush.bf16.msra.mxu0 %v2695
    %3576 = vmatpush.bf16.msra.mxu0 %v2694
    %3577 = vmatpush.bf16.msra.mxu0 %v2693
    %3578 = vmatpush.bf16.msra.mxu0 %v2692
    %3579 = vmatpush.bf16.msra.mxu0 %v2691
    %3580 = vmatpush.bf16.msra.mxu0 %v2690
    %3581 = vmatpush.bf16.msra.mxu0 %v2689
    %3582 = vmatmul.bf16.gmra.mxu0 %v862
    %v3583 = vpop.f32.mrf.mxu0
    %v3584 = vadd.f32 %v3571, %v3583
    %v3585 = vpop.f32.mrf.mxu0
    %3586 = vdwg.mxu0
    %3587 = vmatpush.bf16.msra.mxu0 %v2704
    %3588 = vmatpush.bf16.msra.mxu0 %v2703
    %3589 = vmatpush.bf16.msra.mxu0 %v2702
    %3590 = vmatpush.bf16.msra.mxu0 %v2701
    %3591 = vmatpush.bf16.msra.mxu0 %v2700
    %3592 = vmatpush.bf16.msra.mxu0 %v2699
    %3593 = vmatpush.bf16.msra.mxu0 %v2698
    %3594 = vmatpush.bf16.msra.mxu0 %v2697
    %3595 = vmatmul.bf16.gmra.mxu0 %v863
    %v3596 = vpop.f32.mrf.mxu0
    %v3597 = vadd.f32 %v3584, %v3596
    %v3598 = vpop.f32.mrf.mxu0
    %3599 = vdwg.mxu0
    %3600 = vmatpush.bf16.msra.mxu0 %v2712
    %3601 = vmatpush.bf16.msra.mxu0 %v2711
    %3602 = vmatpush.bf16.msra.mxu0 %v2710
    %3603 = vmatpush.bf16.msra.mxu0 %v2709
    %3604 = vmatpush.bf16.msra.mxu0 %v2708
    %3605 = vmatpush.bf16.msra.mxu0 %v2707
    %3606 = vmatpush.bf16.msra.mxu0 %v2706
    %3607 = vmatpush.bf16.msra.mxu0 %v2705
    %3608 = vmatmul.bf16.gmra.mxu0 %v864
    %v3609 = vpop.f32.mrf.mxu0
    %v3610 = vadd.f32 %v3597, %v3609
    %v3611 = vpop.f32.mrf.mxu0
    %3612 = vdwg.mxu0
    %3613 = vmatpush.bf16.msra.mxu0 %v2720
    %3614 = vmatpush.bf16.msra.mxu0 %v2719
    %3615 = vmatpush.bf16.msra.mxu0 %v2718
    %3616 = vmatpush.bf16.msra.mxu0 %v2717
    %3617 = vmatpush.bf16.msra.mxu0 %v2716
    %3618 = vmatpush.bf16.msra.mxu0 %v2715
    %3619 = vmatpush.bf16.msra.mxu0 %v2714
    %3620 = vmatpush.bf16.msra.mxu0 %v2713
    %3621 = vmatmul.bf16.gmra.mxu0 %v865
    %v3622 = vpop.f32.mrf.mxu0
    %v3623 = vadd.f32 %v3610, %v3622
    %v3624 = vpop.f32.mrf.mxu0
    %3625 = vdwg.mxu0
    %3626 = vmatpush.bf16.msra.mxu0 %v2728
    %3627 = vmatpush.bf16.msra.mxu0 %v2727
    %3628 = vmatpush.bf16.msra.mxu0 %v2726
    %3629 = vmatpush.bf16.msra.mxu0 %v2725
    %3630 = vmatpush.bf16.msra.mxu0 %v2724
    %3631 = vmatpush.bf16.msra.mxu0 %v2723
    %3632 = vmatpush.bf16.msra.mxu0 %v2722
    %3633 = vmatpush.bf16.msra.mxu0 %v2721
    %3634 = vmatmul.bf16.gmra.mxu0 %v866
    %v3635 = vpop.f32.mrf.mxu0
    %v3636 = vadd.f32 %v3623, %v3635
    %v3637 = vpop.f32.mrf.mxu0
    %3638 = vdwg.mxu0
    %3639 = vmatpush.bf16.msra.mxu0 %v2736
    %3640 = vmatpush.bf16.msra.mxu0 %v2735
    %3641 = vmatpush.bf16.msra.mxu0 %v2734
    %3642 = vmatpush.bf16.msra.mxu0 %v2733
    %3643 = vmatpush.bf16.msra.mxu0 %v2732
    %3644 = vmatpush.bf16.msra.mxu0 %v2731
    %3645 = vmatpush.bf16.msra.mxu0 %v2730
    %3646 = vmatpush.bf16.msra.mxu0 %v2729
    %3647 = vmatmul.bf16.gmra.mxu0 %v867
    %v3648 = vpop.f32.mrf.mxu0
    %v3649 = vadd.f32 %v3636, %v3648
    %v3650 = vpop.f32.mrf.mxu0
    %3651 = vdwg.mxu0
    %3652 = vmatpush.bf16.msra.mxu0 %v2744
    %3653 = vmatpush.bf16.msra.mxu0 %v2743
    %3654 = vmatpush.bf16.msra.mxu0 %v2742
    %3655 = vmatpush.bf16.msra.mxu0 %v2741
    %3656 = vmatpush.bf16.msra.mxu0 %v2740
    %3657 = vmatpush.bf16.msra.mxu0 %v2739
    %3658 = vmatpush.bf16.msra.mxu0 %v2738
    %3659 = vmatpush.bf16.msra.mxu0 %v2737
    %3660 = vmatmul.bf16.gmra.mxu0 %v868
    %v3661 = vpop.f32.mrf.mxu0
    %v3662 = vadd.f32 %v3649, %v3661
    %v3663 = vpop.f32.mrf.mxu0
    %3664 = vdwg.mxu0
    %3665 = vmatpush.bf16.msra.mxu0 %v2752
    %3666 = vmatpush.bf16.msra.mxu0 %v2751
    %3667 = vmatpush.bf16.msra.mxu0 %v2750
    %3668 = vmatpush.bf16.msra.mxu0 %v2749
    %3669 = vmatpush.bf16.msra.mxu0 %v2748
    %3670 = vmatpush.bf16.msra.mxu0 %v2747
    %3671 = vmatpush.bf16.msra.mxu0 %v2746
    %3672 = vmatpush.bf16.msra.mxu0 %v2745
    %3673 = vmatmul.bf16.gmra.mxu0 %v871
    %v3674 = vpop.f32.mrf.mxu0
    %v3675 = vadd.f32 %v3662, %v3674
    %v3676 = vpop.f32.mrf.mxu0
    %3677 = vdwg.mxu0
    %3678 = vmatpush.bf16.msra.mxu0 %v2760
    %3679 = vmatpush.bf16.msra.mxu0 %v2759
    %3680 = vmatpush.bf16.msra.mxu0 %v2758
    %3681 = vmatpush.bf16.msra.mxu0 %v2757
    %3682 = vmatpush.bf16.msra.mxu0 %v2756
    %3683 = vmatpush.bf16.msra.mxu0 %v2755
    %3684 = vmatpush.bf16.msra.mxu0 %v2754
    %3685 = vmatpush.bf16.msra.mxu0 %v2753
    %3686 = vmatmul.bf16.gmra.mxu0 %v872
    %v3687 = vpop.f32.mrf.mxu0
    %v3688 = vadd.f32 %v3675, %v3687
    %v3689 = vpop.f32.mrf.mxu0
    %3690 = vdwg.mxu0
    %3691 = vmatpush.bf16.msra.mxu0 %v2768
    %3692 = vmatpush.bf16.msra.mxu0 %v2767
    %3693 = vmatpush.bf16.msra.mxu0 %v2766
    %3694 = vmatpush.bf16.msra.mxu0 %v2765
    %3695 = vmatpush.bf16.msra.mxu0 %v2764
    %3696 = vmatpush.bf16.msra.mxu0 %v2763
    %3697 = vmatpush.bf16.msra.mxu0 %v2762
    %3698 = vmatpush.bf16.msra.mxu0 %v2761
    %3699 = vmatmul.bf16.gmra.mxu0 %v873
    %v3700 = vpop.f32.mrf.mxu0
    %v3701 = vadd.f32 %v3688, %v3700
    %v3702 = vpop.f32.mrf.mxu0
    %3703 = vdwg.mxu0
    %3704 = vmatpush.bf16.msra.mxu0 %v2776
    %3705 = vmatpush.bf16.msra.mxu0 %v2775
    %3706 = vmatpush.bf16.msra.mxu0 %v2774
    %3707 = vmatpush.bf16.msra.mxu0 %v2773
    %3708 = vmatpush.bf16.msra.mxu0 %v2772
    %3709 = vmatpush.bf16.msra.mxu0 %v2771
    %3710 = vmatpush.bf16.msra.mxu0 %v2770
    %3711 = vmatpush.bf16.msra.mxu0 %v2769
    %3712 = vmatmul.bf16.gmra.mxu0 %v874
    %v3713 = vpop.f32.mrf.mxu0
    %v3714 = vadd.f32 %v3701, %v3713
    %v3715 = vpop.f32.mrf.mxu0
    %3716 = vdwg.mxu0
    %3717 = vmatpush.bf16.msra.mxu0 %v2784
    %3718 = vmatpush.bf16.msra.mxu0 %v2783
    %3719 = vmatpush.bf16.msra.mxu0 %v2782
    %3720 = vmatpush.bf16.msra.mxu0 %v2781
    %3721 = vmatpush.bf16.msra.mxu0 %v2780
    %3722 = vmatpush.bf16.msra.mxu0 %v2779
    %3723 = vmatpush.bf16.msra.mxu0 %v2778
    %3724 = vmatpush.bf16.msra.mxu0 %v2777
    %3725 = vmatmul.bf16.gmra.mxu0 %v875
    %v3726 = vpop.f32.mrf.mxu0
    %v3727 = vadd.f32 %v3714, %v3726
    %v3728 = vpop.f32.mrf.mxu0
    %3729 = vdwg.mxu0
    %3730 = vmatpush.bf16.msra.mxu0 %v2792
    %3731 = vmatpush.bf16.msra.mxu0 %v2791
    %3732 = vmatpush.bf16.msra.mxu0 %v2790
    %3733 = vmatpush.bf16.msra.mxu0 %v2789
    %3734 = vmatpush.bf16.msra.mxu0 %v2788
    %3735 = vmatpush.bf16.msra.mxu0 %v2787
    %3736 = vmatpush.bf16.msra.mxu0 %v2786
    %3737 = vmatpush.bf16.msra.mxu0 %v2785
    %3738 = vmatmul.bf16.gmra.mxu0 %v876
    %v3739 = vpop.f32.mrf.mxu0
    %v3740 = vadd.f32 %v3727, %v3739
    %v3741 = vpop.f32.mrf.mxu0
    %3742 = vdwg.mxu0
    %3743 = vmatpush.bf16.msra.mxu0 %v2800
    %3744 = vmatpush.bf16.msra.mxu0 %v2799
    %3745 = vmatpush.bf16.msra.mxu0 %v2798
    %3746 = vmatpush.bf16.msra.mxu0 %v2797
    %3747 = vmatpush.bf16.msra.mxu0 %v2796
    %3748 = vmatpush.bf16.msra.mxu0 %v2795
    %3749 = vmatpush.bf16.msra.mxu0 %v2794
    %3750 = vmatpush.bf16.msra.mxu0 %v2793
    %3751 = vmatmul.bf16.gmra.mxu0 %v877
    %v3752 = vpop.f32.mrf.mxu0
    %v3753 = vadd.f32 %v3740, %v3752
    %v3754 = vpop.f32.mrf.mxu0
    %3755 = vdwg.mxu0
    %3756 = vmatpush.bf16.msra.mxu0 %v2808
    %3757 = vmatpush.bf16.msra.mxu0 %v2807
    %3758 = vmatpush.bf16.msra.mxu0 %v2806
    %3759 = vmatpush.bf16.msra.mxu0 %v2805
    %3760 = vmatpush.bf16.msra.mxu0 %v2804
    %3761 = vmatpush.bf16.msra.mxu0 %v2803
    %3762 = vmatpush.bf16.msra.mxu0 %v2802
    %3763 = vmatpush.bf16.msra.mxu0 %v2801
    %3764 = vmatmul.bf16.gmra.mxu0 %v878
    %v3765 = vpop.f32.mrf.mxu0
    %v3766 = vadd.f32 %v3753, %v3765
    %v3767 = vpop.f32.mrf.mxu0
    %3768 = vdwg.mxu0
    %3769 = vmatpush.bf16.msra.mxu0 %v2816
    %3770 = vmatpush.bf16.msra.mxu0 %v2815
    %3771 = vmatpush.bf16.msra.mxu0 %v2814
    %3772 = vmatpush.bf16.msra.mxu0 %v2813
    %3773 = vmatpush.bf16.msra.mxu0 %v2812
    %3774 = vmatpush.bf16.msra.mxu0 %v2811
    %3775 = vmatpush.bf16.msra.mxu0 %v2810
    %3776 = vmatpush.bf16.msra.mxu0 %v2809
    %3777 = vmatmul.bf16.gmra.mxu0 %v881
    %v3778 = vpop.f32.mrf.mxu0
    %v3779 = vadd.f32 %v3766, %v3778
    %v3780 = vpop.f32.mrf.mxu0
    %3781 = vdwg.mxu0
    %3782 = vmatpush.bf16.msra.mxu0 %v2824
    %3783 = vmatpush.bf16.msra.mxu0 %v2823
    %3784 = vmatpush.bf16.msra.mxu0 %v2822
    %3785 = vmatpush.bf16.msra.mxu0 %v2821
    %3786 = vmatpush.bf16.msra.mxu0 %v2820
    %3787 = vmatpush.bf16.msra.mxu0 %v2819
    %3788 = vmatpush.bf16.msra.mxu0 %v2818
    %3789 = vmatpush.bf16.msra.mxu0 %v2817
    %3790 = vmatmul.bf16.gmra.mxu0 %v882
    %v3791 = vpop.f32.mrf.mxu0
    %v3792 = vadd.f32 %v3779, %v3791
    %v3793 = vpop.f32.mrf.mxu0
    %3794 = vdwg.mxu0
    %3795 = vmatpush.bf16.msra.mxu0 %v2832
    %3796 = vmatpush.bf16.msra.mxu0 %v2831
    %3797 = vmatpush.bf16.msra.mxu0 %v2830
    %3798 = vmatpush.bf16.msra.mxu0 %v2829
    %3799 = vmatpush.bf16.msra.mxu0 %v2828
    %3800 = vmatpush.bf16.msra.mxu0 %v2827
    %3801 = vmatpush.bf16.msra.mxu0 %v2826
    %3802 = vmatpush.bf16.msra.mxu0 %v2825
    %3803 = vmatmul.bf16.gmra.mxu0 %v883
    %v3804 = vpop.f32.mrf.mxu0
    %v3805 = vadd.f32 %v3792, %v3804
    %v3806 = vpop.f32.mrf.mxu0
    %3807 = vdwg.mxu0
    %3808 = vmatpush.bf16.msra.mxu0 %v2840
    %3809 = vmatpush.bf16.msra.mxu0 %v2839
    %3810 = vmatpush.bf16.msra.mxu0 %v2838
    %3811 = vmatpush.bf16.msra.mxu0 %v2837
    %3812 = vmatpush.bf16.msra.mxu0 %v2836
    %3813 = vmatpush.bf16.msra.mxu0 %v2835
    %3814 = vmatpush.bf16.msra.mxu0 %v2834
    %3815 = vmatpush.bf16.msra.mxu0 %v2833
    %3816 = vmatmul.bf16.gmra.mxu0 %v884
    %v3817 = vpop.f32.mrf.mxu0
    %v3818 = vadd.f32 %v3805, %v3817
    %v3819 = vpop.f32.mrf.mxu0
    %3820 = vdwg.mxu0
    %3821 = vmatpush.bf16.msra.mxu0 %v2848
    %3822 = vmatpush.bf16.msra.mxu0 %v2847
    %3823 = vmatpush.bf16.msra.mxu0 %v2846
    %3824 = vmatpush.bf16.msra.mxu0 %v2845
    %3825 = vmatpush.bf16.msra.mxu0 %v2844
    %3826 = vmatpush.bf16.msra.mxu0 %v2843
    %3827 = vmatpush.bf16.msra.mxu0 %v2842
    %3828 = vmatpush.bf16.msra.mxu0 %v2841
    %3829 = vmatmul.bf16.gmra.mxu0 %v885
    %v3830 = vpop.f32.mrf.mxu0
    %v3831 = vadd.f32 %v3818, %v3830
    %v3832 = vpop.f32.mrf.mxu0
    %3833 = vdwg.mxu0
    %3834 = vmatpush.bf16.msra.mxu0 %v2856
    %3835 = vmatpush.bf16.msra.mxu0 %v2855
    %3836 = vmatpush.bf16.msra.mxu0 %v2854
    %3837 = vmatpush.bf16.msra.mxu0 %v2853
    %3838 = vmatpush.bf16.msra.mxu0 %v2852
    %3839 = vmatpush.bf16.msra.mxu0 %v2851
    %3840 = vmatpush.bf16.msra.mxu0 %v2850
    %3841 = vmatpush.bf16.msra.mxu0 %v2849
    %3842 = vmatmul.bf16.gmra.mxu0 %v886
    %v3843 = vpop.f32.mrf.mxu0
    %v3844 = vadd.f32 %v3831, %v3843
    %v3845 = vpop.f32.mrf.mxu0
    %3846 = vdwg.mxu0
    %3847 = vmatpush.bf16.msra.mxu0 %v2864
    %3848 = vmatpush.bf16.msra.mxu0 %v2863
    %3849 = vmatpush.bf16.msra.mxu0 %v2862
    %3850 = vmatpush.bf16.msra.mxu0 %v2861
    %3851 = vmatpush.bf16.msra.mxu0 %v2860
    %3852 = vmatpush.bf16.msra.mxu0 %v2859
    %3853 = vmatpush.bf16.msra.mxu0 %v2858
    %3854 = vmatpush.bf16.msra.mxu0 %v2857
    %3855 = vmatmul.bf16.gmra.mxu0 %v887
    %v3856 = vpop.f32.mrf.mxu0
    %v3857 = vadd.f32 %v3844, %v3856
    %v3858 = vpop.f32.mrf.mxu0
    %3859 = vdwg.mxu0
    %3860 = vmatpush.bf16.msra.mxu0 %v2872
    %3861 = vmatpush.bf16.msra.mxu0 %v2871
    %3862 = vmatpush.bf16.msra.mxu0 %v2870
    %3863 = vmatpush.bf16.msra.mxu0 %v2869
    %3864 = vmatpush.bf16.msra.mxu0 %v2868
    %3865 = vmatpush.bf16.msra.mxu0 %v2867
    %3866 = vmatpush.bf16.msra.mxu0 %v2866
    %3867 = vmatpush.bf16.msra.mxu0 %v2865
    %3868 = vmatmul.bf16.gmra.mxu0 %v888
    %v3869 = vpop.f32.mrf.mxu0
    %v3870 = vadd.f32 %v3857, %v3869
    %v3871 = vpop.f32.mrf.mxu0
    %3872 = vdwg.mxu0
    %3873 = vmatpush.bf16.msra.mxu0 %v2880
    %3874 = vmatpush.bf16.msra.mxu0 %v2879
    %3875 = vmatpush.bf16.msra.mxu0 %v2878
    %3876 = vmatpush.bf16.msra.mxu0 %v2877
    %3877 = vmatpush.bf16.msra.mxu0 %v2876
    %3878 = vmatpush.bf16.msra.mxu0 %v2875
    %3879 = vmatpush.bf16.msra.mxu0 %v2874
    %3880 = vmatpush.bf16.msra.mxu0 %v2873
    %3881 = vmatmul.bf16.gmra.mxu0 %v891
    %v3882 = vpop.f32.mrf.mxu0
    %v3883 = vadd.f32 %v3870, %v3882
    %v3884 = vpop.f32.mrf.mxu0
    %3885 = vdwg.mxu0
    %3886 = vmatpush.bf16.msra.mxu0 %v2888
    %3887 = vmatpush.bf16.msra.mxu0 %v2887
    %3888 = vmatpush.bf16.msra.mxu0 %v2886
    %3889 = vmatpush.bf16.msra.mxu0 %v2885
    %3890 = vmatpush.bf16.msra.mxu0 %v2884
    %3891 = vmatpush.bf16.msra.mxu0 %v2883
    %3892 = vmatpush.bf16.msra.mxu0 %v2882
    %3893 = vmatpush.bf16.msra.mxu0 %v2881
    %3894 = vmatmul.bf16.gmra.mxu0 %v892
    %v3895 = vpop.f32.mrf.mxu0
    %v3896 = vadd.f32 %v3883, %v3895
    %v3897 = vpop.f32.mrf.mxu0
    %3898 = vdwg.mxu0
    %3899 = vmatpush.bf16.msra.mxu0 %v2896
    %3900 = vmatpush.bf16.msra.mxu0 %v2895
    %3901 = vmatpush.bf16.msra.mxu0 %v2894
    %3902 = vmatpush.bf16.msra.mxu0 %v2893
    %3903 = vmatpush.bf16.msra.mxu0 %v2892
    %3904 = vmatpush.bf16.msra.mxu0 %v2891
    %3905 = vmatpush.bf16.msra.mxu0 %v2890
    %3906 = vmatpush.bf16.msra.mxu0 %v2889
    %3907 = vmatmul.bf16.gmra.mxu0 %v893
    %v3908 = vpop.f32.mrf.mxu0
    %v3909 = vadd.f32 %v3896, %v3908
    %v3910 = vpop.f32.mrf.mxu0
    %3911 = vdwg.mxu0
    %3912 = vmatpush.bf16.msra.mxu0 %v2904
    %3913 = vmatpush.bf16.msra.mxu0 %v2903
    %3914 = vmatpush.bf16.msra.mxu0 %v2902
    %3915 = vmatpush.bf16.msra.mxu0 %v2901
    %3916 = vmatpush.bf16.msra.mxu0 %v2900
    %3917 = vmatpush.bf16.msra.mxu0 %v2899
    %3918 = vmatpush.bf16.msra.mxu0 %v2898
    %3919 = vmatpush.bf16.msra.mxu0 %v2897
    %3920 = vmatmul.bf16.gmra.mxu0 %v894
    %v3921 = vpop.f32.mrf.mxu0
    %v3922 = vadd.f32 %v3909, %v3921
    %v3923 = vpop.f32.mrf.mxu0
    %3924 = vdwg.mxu0
    %3925 = vmatpush.bf16.msra.mxu0 %v2912
    %3926 = vmatpush.bf16.msra.mxu0 %v2911
    %3927 = vmatpush.bf16.msra.mxu0 %v2910
    %3928 = vmatpush.bf16.msra.mxu0 %v2909
    %3929 = vmatpush.bf16.msra.mxu0 %v2908
    %3930 = vmatpush.bf16.msra.mxu0 %v2907
    %3931 = vmatpush.bf16.msra.mxu0 %v2906
    %3932 = vmatpush.bf16.msra.mxu0 %v2905
    %3933 = vmatmul.bf16.gmra.mxu0 %v895
    %v3934 = vpop.f32.mrf.mxu0
    %v3935 = vadd.f32 %v3922, %v3934
    %v3936 = vpop.f32.mrf.mxu0
    %3937 = vdwg.mxu0
    %3938 = vmatpush.bf16.msra.mxu0 %v2920
    %3939 = vmatpush.bf16.msra.mxu0 %v2919
    %3940 = vmatpush.bf16.msra.mxu0 %v2918
    %3941 = vmatpush.bf16.msra.mxu0 %v2917
    %3942 = vmatpush.bf16.msra.mxu0 %v2916
    %3943 = vmatpush.bf16.msra.mxu0 %v2915
    %3944 = vmatpush.bf16.msra.mxu0 %v2914
    %3945 = vmatpush.bf16.msra.mxu0 %v2913
    %3946 = vmatmul.bf16.gmra.mxu0 %v896
    %v3947 = vpop.f32.mrf.mxu0
    %v3948 = vadd.f32 %v3935, %v3947
    %v3949 = vpop.f32.mrf.mxu0
    %3950 = vdwg.mxu0
    %3951 = vmatpush.bf16.msra.mxu0 %v2928
    %3952 = vmatpush.bf16.msra.mxu0 %v2927
    %3953 = vmatpush.bf16.msra.mxu0 %v2926
    %3954 = vmatpush.bf16.msra.mxu0 %v2925
    %3955 = vmatpush.bf16.msra.mxu0 %v2924
    %3956 = vmatpush.bf16.msra.mxu0 %v2923
    %3957 = vmatpush.bf16.msra.mxu0 %v2922
    %3958 = vmatpush.bf16.msra.mxu0 %v2921
    %3959 = vmatmul.bf16.gmra.mxu0 %v897
    %v3960 = vpop.f32.mrf.mxu0
    %v3961 = vadd.f32 %v3948, %v3960
    %v3962 = vpop.f32.mrf.mxu0
    %3963 = vdwg.mxu0
    %3964 = vmatpush.bf16.msra.mxu0 %v2936
    %3965 = vmatpush.bf16.msra.mxu0 %v2935
    %3966 = vmatpush.bf16.msra.mxu0 %v2934
    %3967 = vmatpush.bf16.msra.mxu0 %v2933
    %3968 = vmatpush.bf16.msra.mxu0 %v2932
    %3969 = vmatpush.bf16.msra.mxu0 %v2931
    %3970 = vmatpush.bf16.msra.mxu0 %v2930
    %3971 = vmatpush.bf16.msra.mxu0 %v2929
    %3972 = vmatmul.bf16.gmra.mxu0 %v898
    %v3973 = vpop.f32.mrf.mxu0
    %v3974 = vadd.f32 %v3961, %v3973
    %v3975 = vpop.f32.mrf.mxu0
    %3976 = vdwg.mxu0
    %3977 = vmatpush.bf16.msra.mxu0 %v2944
    %3978 = vmatpush.bf16.msra.mxu0 %v2943
    %3979 = vmatpush.bf16.msra.mxu0 %v2942
    %3980 = vmatpush.bf16.msra.mxu0 %v2941
    %3981 = vmatpush.bf16.msra.mxu0 %v2940
    %3982 = vmatpush.bf16.msra.mxu0 %v2939
    %3983 = vmatpush.bf16.msra.mxu0 %v2938
    %3984 = vmatpush.bf16.msra.mxu0 %v2937
    %3985 = vmatmul.bf16.gmra.mxu0 %v901
    %v3986 = vpop.f32.mrf.mxu0
    %v3987 = vadd.f32 %v3974, %v3986
    %v3988 = vpop.f32.mrf.mxu0
    %3989 = vdwg.mxu0
    %3990 = vmatpush.bf16.msra.mxu0 %v2952
    %3991 = vmatpush.bf16.msra.mxu0 %v2951
    %3992 = vmatpush.bf16.msra.mxu0 %v2950
    %3993 = vmatpush.bf16.msra.mxu0 %v2949
    %3994 = vmatpush.bf16.msra.mxu0 %v2948
    %3995 = vmatpush.bf16.msra.mxu0 %v2947
    %3996 = vmatpush.bf16.msra.mxu0 %v2946
    %3997 = vmatpush.bf16.msra.mxu0 %v2945
    %3998 = vmatmul.bf16.gmra.mxu0 %v902
    %v3999 = vpop.f32.mrf.mxu0
    %v4000 = vadd.f32 %v3987, %v3999
    %v4001 = vpop.f32.mrf.mxu0
    %4002 = vdwg.mxu0
    %v4003 = vmax.f32 %v4000, 0.0
    %v4004 = vpack.c.bf16 %v4003, %v4003
    %v4005 = vld [vmem:[%s3] sm:$0xf]
    %v4006 = vld [vmem:[%s3 + $0x4] sm:$0xf]
    %v4007 = vld [vmem:[%s3 + $0x8] sm:$0xf]
    %v4008 = vld [vmem:[%s3 + $0xc] sm:$0xf]
    %v4009 = vld [vmem:[%s3 + $0x10] sm:$0xf]
    %v4010 = vld [vmem:[%s3 + $0x14] sm:$0xf]
    %v4011 = vld [vmem:[%s3 + $0x18] sm:$0xf]
    %v4012 = vld [vmem:[%s3 + $0x1c] sm:$0xf]
    %v4013 = vld [vmem:[%s3 + $0x20] sm:$0xf]
    %v4014 = vld [vmem:[%s3 + $0x24] sm:$0xf]
    %v4015 = vld [vmem:[%s3 + $0x28] sm:$0xf]
    %v4016 = vld [vmem:[%s3 + $0x2c] sm:$0xf]
    %v4017 = vld [vmem:[%s3 + $0x30] sm:$0xf]
    %v4018 = vld [vmem:[%s3 + $0x34] sm:$0xf]
    %v4019 = vld [vmem:[%s3 + $0x38] sm:$0xf]
    %v4020 = vld [vmem:[%s4] sm:$0x1]
    %v4022 = vperm.slane %v4020, 0
    %v4039 = vunpack.c.l.b16 %v4005
    %v4040 = vunpack.c.l.b16 %v4006
    %v4041 = vunpack.c.l.b16 %v4007
    %v4042 = vunpack.c.l.b16 %v4008
    %v4043 = vunpack.c.l.b16 %v4009
    %v4044 = vunpack.c.l.b16 %v4010
    %v4045 = vunpack.c.l.b16 %v4011
    %v4046 = vunpack.c.l.b16 %v4012
    %v4047 = vunpack.c.l.b16 %v4013
    %v4048 = vunpack.c.l.b16 %v4014
    %v4049 = vunpack.c.l.b16 %v4015
    %v4050 = vunpack.c.l.b16 %v4016
    %v4051 = vunpack.c.l.b16 %v4017
    %v4052 = vunpack.c.l.b16 %v4018
    %v4053 = vunpack.c.l.b16 %v4019
    %v4054 = vpack.c.b16 %v4040, %v4039
    %v4055 = vpack.c.b16 %v4042, %v4041
    %v4056 = vpack.c.b16 %v4044, %v4043
    %v4057 = vpack.c.b16 %v4046, %v4045
    %v4058 = vpack.c.b16 %v4048, %v4047
    %v4059 = vpack.c.b16 %v4050, %v4049
    %v4060 = vpack.c.b16 %v4052, %v4051
    %v4061 = vpack.c.b16 %v4053, %v4053
    %vm4069 = vcmask 982016
    %v4071 = vsel %vm4069, %v4004, 0
    %vm4073 = vcmask 1043456
    %v4075 = vsel %vm4073, %v4061, 0
    %4077 = vmatpush.bf16.msra.mxu0 %v4075
    %4078 = vmatpush.bf16.msra.mxu0 %v4060
    %4079 = vmatpush.bf16.msra.mxu0 %v4059
    %4080 = vmatpush.bf16.msra.mxu0 %v4058
    %4081 = vmatpush.bf16.msra.mxu0 %v4057
    %4082 = vmatpush.bf16.msra.mxu0 %v4056
    %4083 = vmatpush.bf16.msra.mxu0 %v4055
    %4084 = vmatpush.bf16.msra.mxu0 %v4054
    %4085 = vmatmul.bf16.gmra.mxu0 %v4071
    %v4086 = vpop.f32.mrf.mxu0
    %v4087 = vadd.f32 %v4022, %v4086
    %v4088 = vpop.f32.mrf.mxu0
    %4089 = vdwg.mxu0
    %v4090 = vmax.f32 %v4087, 0.0
    %v4091 = vpack.c.bf16 %v4090, %v4090
    %v4092 = vld [vmem:[%s5] sm:$0xf]
    %v4093 = vld [vmem:[%s5 + $0x4] sm:$0xf]
    %v4094 = vld [vmem:[%s5 + $0x8] sm:$0xf]
    %v4095 = vld [vmem:[%s5 + $0xc] sm:$0xf]
    %v4096 = vld [vmem:[%s5 + $0x10] sm:$0xf]
    %v4097 = vld [vmem:[%s5 + $0x14] sm:$0xf]
    %v4098 = vld [vmem:[%s5 + $0x18] sm:$0xf]
    %v4099 = vld [vmem:[%s5 + $0x1c] sm:$0xf]
    %v4100 = vld [vmem:[%s5 + $0x20] sm:$0xf]
    %v4101 = vld [vmem:[%s5 + $0x24] sm:$0xf]
    %v4102 = vld [vmem:[%s5 + $0x28] sm:$0x3]
    %v4103 = vld [vmem:[%s6] sm:$0x1]
    %v4105 = vperm.slane %v4103, 0
    %v4118 = vunpack.c.l.b16 %v4092
    %v4119 = vunpack.c.l.b16 %v4093
    %v4120 = vunpack.c.l.b16 %v4094
    %v4121 = vunpack.c.l.b16 %v4095
    %v4122 = vunpack.c.l.b16 %v4096
    %v4123 = vunpack.c.l.b16 %v4097
    %v4124 = vunpack.c.l.b16 %v4098
    %v4125 = vunpack.c.l.b16 %v4099
    %v4126 = vunpack.c.l.b16 %v4100
    %v4127 = vunpack.c.l.b16 %v4101
    %v4128 = vunpack.c.l.b16 %v4102
    %v4129 = vpack.c.b16 %v4119, %v4118
    %v4130 = vpack.c.b16 %v4121, %v4120
    %v4131 = vpack.c.b16 %v4123, %v4122
    %v4132 = vpack.c.b16 %v4125, %v4124
    %v4133 = vpack.c.b16 %v4127, %v4126
    %v4134 = vpack.c.b16 %v4128, %v4128
    %vm4140 = vcmask 687104
    %v4142 = vsel %vm4140, %v4091, 0
    %vm4144 = vcmask 1041408
    %v4146 = vsel %vm4144, %v4134, 0
    %4148 = vmatpush.bf16.msra.mxu0 0
    %4149 = vmatpush.bf16.msra.mxu0 0
    %4150 = vmatpush.bf16.msra.mxu0 %v4146
    %4151 = vmatpush.bf16.msra.mxu0 %v4133
    %4152 = vmatpush.bf16.msra.mxu0 %v4132
    %4153 = vmatpush.bf16.msra.mxu0 %v4131
    %4154 = vmatpush.bf16.msra.mxu0 %v4130
    %4155 = vmatpush.bf16.msra.mxu0 %v4129
    %4156 = vmatmul.bf16.gmra.mxu0 %v4142
    %v4157 = vpop.f32.mrf.mxu0
    %v4158 = vadd.f32 %v4105, %v4157
    %v4159 = vpop.f32.mrf.mxu0
    %4160 = vdwg.mxu0
    %vm4161 = vcmask 74752
    %4162 = vst.msk [vmem:[#allocation2] sm:$0x3] %vm4161, %v4158
    // Predicated region
    $region30: #{lipschitz_conv_model_forward.3} parent=1 // pred_check
      _
    $region31: #{lipschitz_conv_model_forward.3} parent=1 // pred_check_branch
      %4164 = sbr.rel (0) target = $region33
    $region32: #{lipschitz_conv_model_forward.3} parent=1 // pred_region
      %4166 = vsyncadd [#allocation3], 0
      %s4168 = sshll.u32 [#allocation2], 4
      %s4169 = int_to_ptr.vmem [resolvable:$true] %s4168
      %s4170 = sshll.u32 %s7, 4
      %s4171 = int_to_ptr.hbm [resolvable:$true] %s4170
      %4173 = dma.vmem_to_hbm [thread:$0]  %s4169, 32, %s4171, [#allocation3]
    $region33: #{lipschitz_conv_model_forward.3} parent=1 // pred_fallthru
      _
    // Predicated region
    $region34: #{lipschitz_conv_model_forward.3} parent=1 // pred_check
      _
    $region35: #{lipschitz_conv_model_forward.3} parent=1 // pred_check_branch
      %4175 = sbr.rel (0) target = $region37
    $region36: #{lipschitz_conv_model_forward.3} parent=1 // pred_region
      %4177 = dma.done [#allocation3], 32
    $region37: #{lipschitz_conv_model_forward.3} parent=1 // pred_fallthru
      _
    %4178 = vsyncpa [#allocation3], 1

</llo_original>
